<compile_context>
chip_gen: v5e
topology: v5e:2x2
jax: 0.10.0
libtpu: 0.0.40
codegen_flags: <defaults>
</compile_context>

<pallas_src>
import jax
import jax.numpy as jnp
from jax.experimental import pallas as pl
from jax.experimental.pallas import tpu as pltpu

_ROWS_TARGET = 128      # pack graphs until a super-block has ~128 node rows


# ---------------------------------------------------------------------------
# Fused Pallas kernel: one grid step = one super-block of GPB graphs
# ---------------------------------------------------------------------------
def _gsr_fused_kernel(x_ref, adj_ref, pool_ref,
                      w1, a1, b1, w2, a2, b2, w3, a3, b3,
                      w4, a4, b4, w5, a5, b5,
                      wo, bo,
                      node_ref, graph_ref):
    h = x_ref[...]              # [R, F_in]   (R = GPB * N node rows)
    adj = adj_ref[...]          # [R, R] block-diagonal; adj[i, j] = 1 iff edge j -> i
    neg = jnp.float32(-1e30)

    # 5 GAT layers, fully unrolled; everything stays in VMEM / vregs.
    for (w_r, a_r, b_r) in ((w1, a1, b1), (w2, a2, b2), (w3, a3, b3),
                            (w4, a4, b4), (w5, a5, b5)):
        ht = jnp.dot(h, w_r[...], preferred_element_type=jnp.float32)      # [R, HID]
        # both attention projections in one MXU op: col0 = <h, a_dst>, col1 = <h, a_src>
        proj = jnp.dot(ht, a_r[...], preferred_element_type=jnp.float32)   # [R, 2]
        d_col = proj[:, 0:1]                                               # [R, 1]
        s_row = proj[:, 1:2].T                                             # [1, R]
        e = d_col + s_row                   # e[i, j] = a_dst.h_i + a_src.h_j
        e = jnp.where(e > 0.0, e, 0.2 * e)  # LeakyReLU(0.2)
        e = jnp.where(adj > 0.0, e, neg)    # mask non-edges
        e = e - jnp.max(e, axis=-1, keepdims=True)
        p = jnp.exp(e) * adj
        denom = jnp.sum(p, axis=-1, keepdims=True)       # >= 1 (self-loops present)
        alpha = p * pl.reciprocal(denom, approx=True)    # EUP rcp, no VALU divide
        h = jnp.tanh(jnp.dot(alpha, ht, preferred_element_type=jnp.float32)
                     + b_r[...])

    # head: Linear(HID -> 1) + per-graph mean pool (pool rows carry 1/N)
    node = jnp.dot(h, wo[...], preferred_element_type=jnp.float32) + bo[...]   # [R, 1]
    node_ref[...] = node
    graph_ref[...] = jnp.dot(pool_ref[...], node,
                             preferred_element_type=jnp.float32)               # [GPB, 1]


# ---------------------------------------------------------------------------
# Python wrapper: pack B graphs into super-blocks and run the fused kernel
# ---------------------------------------------------------------------------
def _gsr_forward_impl(xs, adjs, gat_params, w_out, b_out):
    """xs:[B,N,F], adjs:[B,N,N] (self loops included).
    gat_params: 5 tuples (w [F_in,HID], a_cat [HID,2] col0=att_dst col1=att_src, b [1,HID]).
    Returns node_preds [B,N,1], graph_preds [B,1]."""
    B, N, F_in = xs.shape
    HID = gat_params[0][0].shape[1]
    gpb = max(1, _ROWS_TARGET // N)          # graphs per super-block
    rows = gpb * N                           # node rows per super-block (128 here)
    g_blocks = -(-B // gpb)
    b_pad = g_blocks * gpb

    if b_pad != B:                           # ghost graphs: zero features, self-loops only
        pad = b_pad - B
        xs = jnp.concatenate([xs, jnp.zeros((pad, N, F_in), xs.dtype)], axis=0)
        ghost = jnp.broadcast_to(jnp.eye(N, dtype=adjs.dtype), (pad, N, N))
        adjs = jnp.concatenate([adjs, ghost], axis=0)

    x_big = xs.reshape(g_blocks, rows, F_in)
    adj4 = adjs.reshape(g_blocks, gpb, N, N)
    adj_big = jnp.einsum("gkij,kl->gkilj", adj4,
                         jnp.eye(gpb, dtype=adjs.dtype)).reshape(g_blocks, rows, rows)
    pool = jnp.kron(jnp.eye(gpb, dtype=jnp.float32),
                    jnp.full((1, N), 1.0 / N, dtype=jnp.float32))   # [GPB, rows]

    def full(shape):                          # VMEM-resident, shared across grid steps
        nd = len(shape)
        return pl.BlockSpec(shape, lambda g: (0,) * nd)

    in_specs = [
        pl.BlockSpec((None, rows, F_in), lambda g: (g, 0, 0)),
        pl.BlockSpec((None, rows, rows), lambda g: (g, 0, 0)),
        full((gpb, rows)),
    ]
    flat_params = []
    for (w, a_cat, b) in gat_params:
        in_specs += [full(w.shape), full(a_cat.shape), full(b.shape)]
        flat_params += [w, a_cat, b]
    in_specs += [full(w_out.shape), full(b_out.shape)]

    out_specs = (pl.BlockSpec((None, rows, 1), lambda g: (g, 0, 0)),
                 pl.BlockSpec((None, gpb, 1), lambda g: (g, 0, 0)))
    out_shape = (jax.ShapeDtypeStruct((g_blocks, rows, 1), jnp.float32),
                 jax.ShapeDtypeStruct((g_blocks, gpb, 1), jnp.float32))

    # advisory cost estimate so XLA can schedule/overlap the custom call
    flops = 0
    f_cur = F_in
    for _ in range(5):
        flops += (2 * rows * f_cur * HID + 2 * rows * HID * 2
                  + 2 * rows * rows * HID + 8 * rows * rows)
        f_cur = HID
    flops += 2 * rows * HID + 2 * gpb * rows
    transc = 5 * (rows * rows + rows * HID + rows)
    w_bytes = 4 * (sum(int(w.size + a.size + b.size) for (w, a, b) in gat_params)
                   + int(w_out.size) + int(b_out.size))
    bytes_acc = g_blocks * 4 * (rows * F_in + rows * rows + rows + gpb) + w_bytes
    cost = pl.CostEstimate(flops=int(g_blocks * flops),
                           transcendentals=int(g_blocks * transc),
                           bytes_accessed=int(bytes_acc))

    node_big, graph_big = pl.pallas_call(
        _gsr_fused_kernel,
        grid=(g_blocks,),
        in_specs=in_specs,
        out_specs=out_specs,
        out_shape=out_shape,
        compiler_params=pltpu.CompilerParams(
            dimension_semantics=("parallel",)),     # shard super-blocks across TCs
        cost_estimate=cost,
    )(x_big, adj_big, pool, *flat_params, w_out, b_out)

    node_preds = node_big.reshape(b_pad, N, 1)[:B]
    graph_preds = graph_big.reshape(b_pad, 1)[:B]
    return node_preds, graph_preds


gsr_forward = jax.jit(_gsr_forward_impl)


# ---------------------------------------------------------------------------
# Pure-JAX single-graph reference (same math) for the correctness check
# ---------------------------------------------------------------------------
def _ref_forward_single(x, adj, gat_params, w_out, b_out):
    h = x
    for (w, a_cat, b) in gat_params:
        ht = h @ w
        proj = ht @ a_cat
        e = proj[:, 0:1] + proj[:, 1:2].T
        e = jnp.where(e > 0, e, 0.2 * e)
        e = jnp.where(adj > 0, e, jnp.float32(-1e30))
        e = e - e.max(-1, keepdims=True)
        p = jnp.exp(e) * adj
        alpha = p / p.sum(-1, keepdims=True)
        h = jnp.tanh(alpha @ ht + b)
    node = h @ w_out + b_out
    graph = node.mean(0, keepdims=True)
    return node, graph


# ---------------------------------------------------------------------------
if __name__ == "__main__":
    N, IN_C, HID = 8, 35, 28
    B = 24          # 24 molecules -> padded to 2 super-blocks of 16 graphs each

    key = jax.random.PRNGKey(0)
    keys = jax.random.split(key, 12)

    xs = jax.random.normal(keys[0], (B, N, IN_C), dtype=jnp.float32)

    # Per-graph connectivity: bidirectional chain 0-1-...-7; odd graphs also
    # close the ring (0<->7). Self-loops added (matches add_self_loops in PyG).
    adj_list = []
    for gi in range(B):
        src = list(range(N - 1)) + list(range(1, N))
        dst = list(range(1, N)) + list(range(N - 1))
        if gi % 2 == 1:
            src += [0, N - 1]
            dst += [N - 1, 0]
        a = jnp.zeros((N, N), jnp.float32)
        a = a.at[jnp.array(dst), jnp.array(src)].set(1.0)   # edge j->i  =>  a[i, j] = 1
        a = a.at[jnp.arange(N), jnp.arange(N)].set(1.0)     # self loops
        adj_list.append(a)
    adjs = jnp.stack(adj_list)

    # GATConv params: lin weight [F,HID], attention as one [HID,2] (col0=dst, col1=src), bias
    gat_params = []
    in_c = IN_C
    ki = 1
    for _ in range(5):
        w = 0.2 * jax.random.normal(keys[ki], (in_c, HID), dtype=jnp.float32); ki += 1
        a_cat = 0.2 * jax.random.normal(keys[ki], (HID, 2), dtype=jnp.float32); ki += 1
        b = jnp.zeros((1, HID), dtype=jnp.float32)
        gat_params.append((w, a_cat, b))
        in_c = HID
    w_out = 0.2 * jax.random.normal(keys[ki], (HID, 1), dtype=jnp.float32)
    b_out = jnp.zeros((1, 1), dtype=jnp.float32)

    node_preds, graph_preds = gsr_forward(xs, adjs, gat_params, w_out, b_out)
    jax.block_until_ready((node_preds, graph_preds))

    node_ref, graph_ref = jax.vmap(
        lambda x, a: _ref_forward_single(x, a, gat_params, w_out, b_out))(xs, adjs)

    assert node_preds.shape == (B, N, 1) and graph_preds.shape == (B, 1)
    # tolerance covers the EUP approximate reciprocal used in the kernel softmax
    assert jnp.allclose(node_preds, node_ref, atol=5e-3, rtol=5e-3), \
        float(jnp.max(jnp.abs(node_preds - node_ref)))
    assert jnp.allclose(graph_preds, graph_ref.reshape(B, 1), atol=5e-3, rtol=5e-3), \
        float(jnp.max(jnp.abs(graph_preds - graph_ref.reshape(B, 1))))

    print("KERNEL_OK")
</pallas_src>

<mosaic_0001>
module attributes {stable_mosaic.version = 11 : i64} {
  func.func @_gsr_fused_kernel(%arg0: i32, %arg1: memref<1x128x35xf32, #tpu.memory_space<vmem>>, %arg2: memref<1x128x128xf32, #tpu.memory_space<vmem>>, %arg3: memref<16x128xf32, #tpu.memory_space<vmem>>, %arg4: memref<35x28xf32, #tpu.memory_space<vmem>>, %arg5: memref<28x2xf32, #tpu.memory_space<vmem>>, %arg6: memref<1x28xf32, #tpu.memory_space<vmem>>, %arg7: memref<28x28xf32, #tpu.memory_space<vmem>>, %arg8: memref<28x2xf32, #tpu.memory_space<vmem>>, %arg9: memref<1x28xf32, #tpu.memory_space<vmem>>, %arg10: memref<28x28xf32, #tpu.memory_space<vmem>>, %arg11: memref<28x2xf32, #tpu.memory_space<vmem>>, %arg12: memref<1x28xf32, #tpu.memory_space<vmem>>, %arg13: memref<28x28xf32, #tpu.memory_space<vmem>>, %arg14: memref<28x2xf32, #tpu.memory_space<vmem>>, %arg15: memref<1x28xf32, #tpu.memory_space<vmem>>, %arg16: memref<28x28xf32, #tpu.memory_space<vmem>>, %arg17: memref<28x2xf32, #tpu.memory_space<vmem>>, %arg18: memref<1x28xf32, #tpu.memory_space<vmem>>, %arg19: memref<28x1xf32, #tpu.memory_space<vmem>>, %arg20: memref<1x1xf32, #tpu.memory_space<vmem>>, %arg21: memref<1x128x1xf32, #tpu.memory_space<vmem>>, %arg22: memref<1x16x1xf32, #tpu.memory_space<vmem>>) attributes {dimension_semantics = [#tpu.dimension_semantics<parallel>], iteration_bounds = array<i64: 2>, scalar_prefetch = 0 : i64, scratch_operands = 0 : i64, tpu.core_type = #tpu.core_type<tc>, window_params = [{transform_indices = @transform_0, window_bounds = array<i64: 1, 128, 35>}, {transform_indices = @transform_1, window_bounds = array<i64: 1, 128, 128>}, {pipeline_mode = #tpu.pipeline_mode<synchronous>, transform_indices = @transform_2, window_bounds = array<i64: 16, 128>}, {pipeline_mode = #tpu.pipeline_mode<synchronous>, transform_indices = @transform_3, window_bounds = array<i64: 35, 28>}, {pipeline_mode = #tpu.pipeline_mode<synchronous>, transform_indices = @transform_4, window_bounds = array<i64: 28, 2>}, {pipeline_mode = #tpu.pipeline_mode<synchronous>, transform_indices = @transform_5, window_bounds = array<i64: 1, 28>}, {pipeline_mode = #tpu.pipeline_mode<synchronous>, transform_indices = @transform_6, window_bounds = array<i64: 28, 28>}, {pipeline_mode = #tpu.pipeline_mode<synchronous>, transform_indices = @transform_7, window_bounds = array<i64: 28, 2>}, {pipeline_mode = #tpu.pipeline_mode<synchronous>, transform_indices = @transform_8, window_bounds = array<i64: 1, 28>}, {pipeline_mode = #tpu.pipeline_mode<synchronous>, transform_indices = @transform_9, window_bounds = array<i64: 28, 28>}, {pipeline_mode = #tpu.pipeline_mode<synchronous>, transform_indices = @transform_10, window_bounds = array<i64: 28, 2>}, {pipeline_mode = #tpu.pipeline_mode<synchronous>, transform_indices = @transform_11, window_bounds = array<i64: 1, 28>}, {pipeline_mode = #tpu.pipeline_mode<synchronous>, transform_indices = @transform_12, window_bounds = array<i64: 28, 28>}, {pipeline_mode = #tpu.pipeline_mode<synchronous>, transform_indices = @transform_13, window_bounds = array<i64: 28, 2>}, {pipeline_mode = #tpu.pipeline_mode<synchronous>, transform_indices = @transform_14, window_bounds = array<i64: 1, 28>}, {pipeline_mode = #tpu.pipeline_mode<synchronous>, transform_indices = @transform_15, window_bounds = array<i64: 28, 28>}, {pipeline_mode = #tpu.pipeline_mode<synchronous>, transform_indices = @transform_16, window_bounds = array<i64: 28, 2>}, {pipeline_mode = #tpu.pipeline_mode<synchronous>, transform_indices = @transform_17, window_bounds = array<i64: 1, 28>}, {pipeline_mode = #tpu.pipeline_mode<synchronous>, transform_indices = @transform_18, window_bounds = array<i64: 28, 1>}, {pipeline_mode = #tpu.pipeline_mode<synchronous>, transform_indices = @transform_19, window_bounds = array<i64: 1, 1>}, {transform_indices = @transform_20, window_bounds = array<i64: 1, 128, 1>}, {transform_indices = @transform_21, window_bounds = array<i64: 1, 16, 1>}]} {
    %c0 = arith.constant 0 : index
    %c0_0 = arith.constant 0 : index
    %c0_1 = arith.constant 0 : index
    %0 = vector.load %arg1[%c0, %c0_0, %c0_1] : memref<1x128x35xf32, #tpu.memory_space<vmem>>, vector<1x128x35xf32>
    %1 = vector.shape_cast %0 : vector<1x128x35xf32> to vector<128x35xf32>
    %c0_2 = arith.constant 0 : index
    %c0_3 = arith.constant 0 : index
    %c0_4 = arith.constant 0 : index
    %2 = vector.load %arg2[%c0_2, %c0_3, %c0_4] : memref<1x128x128xf32, #tpu.memory_space<vmem>>, vector<1x128x128xf32>
    %3 = vector.shape_cast %2 : vector<1x128x128xf32> to vector<128x128xf32>
    %c0_5 = arith.constant 0 : index
    %c0_6 = arith.constant 0 : index
    %4 = vector.load %arg4[%c0_5, %c0_6] : memref<35x28xf32, #tpu.memory_space<vmem>>, vector<35x28xf32>
    %cst = arith.constant dense<0.000000e+00> : vector<128x28xf32>
    %5 = tpu.matmul %1, %4, %cst {dimension_numbers = #tpu.dot_dimension_numbers<[1], [0], [0], [1], [0, 0, 1, 1], [], []>} : vector<128x35xf32>, vector<35x28xf32>, vector<128x28xf32> -> vector<128x28xf32>
    %c0_7 = arith.constant 0 : index
    %c0_8 = arith.constant 0 : index
    %6 = vector.load %arg5[%c0_7, %c0_8] : memref<28x2xf32, #tpu.memory_space<vmem>>, vector<28x2xf32>
    %cst_9 = arith.constant dense<0.000000e+00> : vector<128x2xf32>
    %7 = tpu.matmul %5, %6, %cst_9 {dimension_numbers = #tpu.dot_dimension_numbers<[1], [0], [0], [1], [0, 0, 1, 1], [], []>} : vector<128x28xf32>, vector<28x2xf32>, vector<128x2xf32> -> vector<128x2xf32>
    %8 = vector.extract_strided_slice %7 {offsets = [0, 0], sizes = [128, 1], strides = [1, 1]} : vector<128x2xf32> to vector<128x1xf32>
    %9 = vector.extract_strided_slice %7 {offsets = [0, 1], sizes = [128, 1], strides = [1, 1]} : vector<128x2xf32> to vector<128x1xf32>
    %10 = tpu.transpose %9, [1, 0] : vector<128x1xf32> -> vector<1x128xf32>
    %11 = vector.broadcast %8 : vector<128x1xf32> to vector<128x128xf32>
    %12 = vector.broadcast %10 : vector<1x128xf32> to vector<128x128xf32>
    %13 = arith.addf %11, %12 : vector<128x128xf32>
    %cst_10 = arith.constant 0.000000e+00 : f32
    %14 = vector.broadcast %cst_10 : f32 to vector<128x128xf32>
    %15 = arith.cmpf ogt, %13, %14 : vector<128x128xf32>
    %cst_11 = arith.constant 2.000000e-01 : f32
    %16 = vector.broadcast %cst_11 : f32 to vector<128x128xf32>
    %17 = arith.mulf %16, %13 : vector<128x128xf32>
    %18 = arith.select %15, %13, %17 : vector<128x128xi1>, vector<128x128xf32>
    %cst_12 = arith.constant 0.000000e+00 : f32
    %19 = vector.broadcast %cst_12 : f32 to vector<128x128xf32>
    %20 = arith.cmpf ogt, %3, %19 : vector<128x128xf32>
    %cst_13 = arith.constant -1.000000e+30 : f32
    %21 = vector.broadcast %cst_13 : f32 to vector<128x128xf32>
    %22 = arith.select %20, %18, %21 : vector<128x128xi1>, vector<128x128xf32>
    %cst_14 = arith.constant dense<0xFF800000> : vector<128xf32>
    %23 = vector.multi_reduction <maximumf>, %22, %cst_14 [1] : vector<128x128xf32> to vector<128xf32>
    %24 = vector.shape_cast %23 : vector<128xf32> to vector<128x1xf32>
    %25 = vector.broadcast %24 : vector<128x1xf32> to vector<128x128xf32>
    %26 = arith.subf %22, %25 : vector<128x128xf32>
    %27 = math.exp %26 : vector<128x128xf32>
    %28 = arith.mulf %27, %3 : vector<128x128xf32>
    %cst_15 = arith.constant dense<0.000000e+00> : vector<128xf32>
    %29 = vector.multi_reduction <add>, %28, %cst_15 [1] : vector<128x128xf32> to vector<128xf32>
    %30 = vector.shape_cast %29 : vector<128xf32> to vector<128x1xf32>
    %31 = tpu.reciprocal %30 {approx = true} : vector<128x1xf32> -> vector<128x1xf32>
    %32 = vector.broadcast %31 : vector<128x1xf32> to vector<128x128xf32>
    %33 = arith.mulf %28, %32 : vector<128x128xf32>
    %cst_16 = arith.constant dense<0.000000e+00> : vector<128x28xf32>
    %34 = tpu.matmul %33, %5, %cst_16 {dimension_numbers = #tpu.dot_dimension_numbers<[1], [0], [0], [1], [0, 0, 1, 1], [], []>} : vector<128x128xf32>, vector<128x28xf32>, vector<128x28xf32> -> vector<128x28xf32>
    %c0_17 = arith.constant 0 : index
    %c0_18 = arith.constant 0 : index
    %35 = vector.load %arg6[%c0_17, %c0_18] : memref<1x28xf32, #tpu.memory_space<vmem>>, vector<1x28xf32>
    %36 = vector.broadcast %35 : vector<1x28xf32> to vector<128x28xf32>
    %37 = arith.addf %34, %36 : vector<128x28xf32>
    %38 = math.tanh %37 : vector<128x28xf32>
    %c0_19 = arith.constant 0 : index
    %c0_20 = arith.constant 0 : index
    %39 = vector.load %arg7[%c0_19, %c0_20] : memref<28x28xf32, #tpu.memory_space<vmem>>, vector<28x28xf32>
    %cst_21 = arith.constant dense<0.000000e+00> : vector<128x28xf32>
    %40 = tpu.matmul %38, %39, %cst_21 {dimension_numbers = #tpu.dot_dimension_numbers<[1], [0], [0], [1], [0, 0, 1, 1], [], []>} : vector<128x28xf32>, vector<28x28xf32>, vector<128x28xf32> -> vector<128x28xf32>
    %c0_22 = arith.constant 0 : index
    %c0_23 = arith.constant 0 : index
    %41 = vector.load %arg8[%c0_22, %c0_23] : memref<28x2xf32, #tpu.memory_space<vmem>>, vector<28x2xf32>
    %cst_24 = arith.constant dense<0.000000e+00> : vector<128x2xf32>
    %42 = tpu.matmul %40, %41, %cst_24 {dimension_numbers = #tpu.dot_dimension_numbers<[1], [0], [0], [1], [0, 0, 1, 1], [], []>} : vector<128x28xf32>, vector<28x2xf32>, vector<128x2xf32> -> vector<128x2xf32>
    %43 = vector.extract_strided_slice %42 {offsets = [0, 0], sizes = [128, 1], strides = [1, 1]} : vector<128x2xf32> to vector<128x1xf32>
    %44 = vector.extract_strided_slice %42 {offsets = [0, 1], sizes = [128, 1], strides = [1, 1]} : vector<128x2xf32> to vector<128x1xf32>
    %45 = tpu.transpose %44, [1, 0] : vector<128x1xf32> -> vector<1x128xf32>
    %46 = vector.broadcast %43 : vector<128x1xf32> to vector<128x128xf32>
    %47 = vector.broadcast %45 : vector<1x128xf32> to vector<128x128xf32>
    %48 = arith.addf %46, %47 : vector<128x128xf32>
    %cst_25 = arith.constant 0.000000e+00 : f32
    %49 = vector.broadcast %cst_25 : f32 to vector<128x128xf32>
    %50 = arith.cmpf ogt, %48, %49 : vector<128x128xf32>
    %cst_26 = arith.constant 2.000000e-01 : f32
    %51 = vector.broadcast %cst_26 : f32 to vector<128x128xf32>
    %52 = arith.mulf %51, %48 : vector<128x128xf32>
    %53 = arith.select %50, %48, %52 : vector<128x128xi1>, vector<128x128xf32>
    %cst_27 = arith.constant 0.000000e+00 : f32
    %54 = vector.broadcast %cst_27 : f32 to vector<128x128xf32>
    %55 = arith.cmpf ogt, %3, %54 : vector<128x128xf32>
    %cst_28 = arith.constant -1.000000e+30 : f32
    %56 = vector.broadcast %cst_28 : f32 to vector<128x128xf32>
    %57 = arith.select %55, %53, %56 : vector<128x128xi1>, vector<128x128xf32>
    %cst_29 = arith.constant dense<0xFF800000> : vector<128xf32>
    %58 = vector.multi_reduction <maximumf>, %57, %cst_29 [1] : vector<128x128xf32> to vector<128xf32>
    %59 = vector.shape_cast %58 : vector<128xf32> to vector<128x1xf32>
    %60 = vector.broadcast %59 : vector<128x1xf32> to vector<128x128xf32>
    %61 = arith.subf %57, %60 : vector<128x128xf32>
    %62 = math.exp %61 : vector<128x128xf32>
    %63 = arith.mulf %62, %3 : vector<128x128xf32>
    %cst_30 = arith.constant dense<0.000000e+00> : vector<128xf32>
    %64 = vector.multi_reduction <add>, %63, %cst_30 [1] : vector<128x128xf32> to vector<128xf32>
    %65 = vector.shape_cast %64 : vector<128xf32> to vector<128x1xf32>
    %66 = tpu.reciprocal %65 {approx = true} : vector<128x1xf32> -> vector<128x1xf32>
    %67 = vector.broadcast %66 : vector<128x1xf32> to vector<128x128xf32>
    %68 = arith.mulf %63, %67 : vector<128x128xf32>
    %cst_31 = arith.constant dense<0.000000e+00> : vector<128x28xf32>
    %69 = tpu.matmul %68, %40, %cst_31 {dimension_numbers = #tpu.dot_dimension_numbers<[1], [0], [0], [1], [0, 0, 1, 1], [], []>} : vector<128x128xf32>, vector<128x28xf32>, vector<128x28xf32> -> vector<128x28xf32>
    %c0_32 = arith.constant 0 : index
    %c0_33 = arith.constant 0 : index
    %70 = vector.load %arg9[%c0_32, %c0_33] : memref<1x28xf32, #tpu.memory_space<vmem>>, vector<1x28xf32>
    %71 = vector.broadcast %70 : vector<1x28xf32> to vector<128x28xf32>
    %72 = arith.addf %69, %71 : vector<128x28xf32>
    %73 = math.tanh %72 : vector<128x28xf32>
    %c0_34 = arith.constant 0 : index
    %c0_35 = arith.constant 0 : index
    %74 = vector.load %arg10[%c0_34, %c0_35] : memref<28x28xf32, #tpu.memory_space<vmem>>, vector<28x28xf32>
    %cst_36 = arith.constant dense<0.000000e+00> : vector<128x28xf32>
    %75 = tpu.matmul %73, %74, %cst_36 {dimension_numbers = #tpu.dot_dimension_numbers<[1], [0], [0], [1], [0, 0, 1, 1], [], []>} : vector<128x28xf32>, vector<28x28xf32>, vector<128x28xf32> -> vector<128x28xf32>
    %c0_37 = arith.constant 0 : index
    %c0_38 = arith.constant 0 : index
    %76 = vector.load %arg11[%c0_37, %c0_38] : memref<28x2xf32, #tpu.memory_space<vmem>>, vector<28x2xf32>
    %cst_39 = arith.constant dense<0.000000e+00> : vector<128x2xf32>
    %77 = tpu.matmul %75, %76, %cst_39 {dimension_numbers = #tpu.dot_dimension_numbers<[1], [0], [0], [1], [0, 0, 1, 1], [], []>} : vector<128x28xf32>, vector<28x2xf32>, vector<128x2xf32> -> vector<128x2xf32>
    %78 = vector.extract_strided_slice %77 {offsets = [0, 0], sizes = [128, 1], strides = [1, 1]} : vector<128x2xf32> to vector<128x1xf32>
    %79 = vector.extract_strided_slice %77 {offsets = [0, 1], sizes = [128, 1], strides = [1, 1]} : vector<128x2xf32> to vector<128x1xf32>
    %80 = tpu.transpose %79, [1, 0] : vector<128x1xf32> -> vector<1x128xf32>
    %81 = vector.broadcast %78 : vector<128x1xf32> to vector<128x128xf32>
    %82 = vector.broadcast %80 : vector<1x128xf32> to vector<128x128xf32>
    %83 = arith.addf %81, %82 : vector<128x128xf32>
    %cst_40 = arith.constant 0.000000e+00 : f32
    %84 = vector.broadcast %cst_40 : f32 to vector<128x128xf32>
    %85 = arith.cmpf ogt, %83, %84 : vector<128x128xf32>
    %cst_41 = arith.constant 2.000000e-01 : f32
    %86 = vector.broadcast %cst_41 : f32 to vector<128x128xf32>
    %87 = arith.mulf %86, %83 : vector<128x128xf32>
    %88 = arith.select %85, %83, %87 : vector<128x128xi1>, vector<128x128xf32>
    %cst_42 = arith.constant 0.000000e+00 : f32
    %89 = vector.broadcast %cst_42 : f32 to vector<128x128xf32>
    %90 = arith.cmpf ogt, %3, %89 : vector<128x128xf32>
    %cst_43 = arith.constant -1.000000e+30 : f32
    %91 = vector.broadcast %cst_43 : f32 to vector<128x128xf32>
    %92 = arith.select %90, %88, %91 : vector<128x128xi1>, vector<128x128xf32>
    %cst_44 = arith.constant dense<0xFF800000> : vector<128xf32>
    %93 = vector.multi_reduction <maximumf>, %92, %cst_44 [1] : vector<128x128xf32> to vector<128xf32>
    %94 = vector.shape_cast %93 : vector<128xf32> to vector<128x1xf32>
    %95 = vector.broadcast %94 : vector<128x1xf32> to vector<128x128xf32>
    %96 = arith.subf %92, %95 : vector<128x128xf32>
    %97 = math.exp %96 : vector<128x128xf32>
    %98 = arith.mulf %97, %3 : vector<128x128xf32>
    %cst_45 = arith.constant dense<0.000000e+00> : vector<128xf32>
    %99 = vector.multi_reduction <add>, %98, %cst_45 [1] : vector<128x128xf32> to vector<128xf32>
    %100 = vector.shape_cast %99 : vector<128xf32> to vector<128x1xf32>
    %101 = tpu.reciprocal %100 {approx = true} : vector<128x1xf32> -> vector<128x1xf32>
    %102 = vector.broadcast %101 : vector<128x1xf32> to vector<128x128xf32>
    %103 = arith.mulf %98, %102 : vector<128x128xf32>
    %cst_46 = arith.constant dense<0.000000e+00> : vector<128x28xf32>
    %104 = tpu.matmul %103, %75, %cst_46 {dimension_numbers = #tpu.dot_dimension_numbers<[1], [0], [0], [1], [0, 0, 1, 1], [], []>} : vector<128x128xf32>, vector<128x28xf32>, vector<128x28xf32> -> vector<128x28xf32>
    %c0_47 = arith.constant 0 : index
    %c0_48 = arith.constant 0 : index
    %105 = vector.load %arg12[%c0_47, %c0_48] : memref<1x28xf32, #tpu.memory_space<vmem>>, vector<1x28xf32>
    %106 = vector.broadcast %105 : vector<1x28xf32> to vector<128x28xf32>
    %107 = arith.addf %104, %106 : vector<128x28xf32>
    %108 = math.tanh %107 : vector<128x28xf32>
    %c0_49 = arith.constant 0 : index
    %c0_50 = arith.constant 0 : index
    %109 = vector.load %arg13[%c0_49, %c0_50] : memref<28x28xf32, #tpu.memory_space<vmem>>, vector<28x28xf32>
    %cst_51 = arith.constant dense<0.000000e+00> : vector<128x28xf32>
    %110 = tpu.matmul %108, %109, %cst_51 {dimension_numbers = #tpu.dot_dimension_numbers<[1], [0], [0], [1], [0, 0, 1, 1], [], []>} : vector<128x28xf32>, vector<28x28xf32>, vector<128x28xf32> -> vector<128x28xf32>
    %c0_52 = arith.constant 0 : index
    %c0_53 = arith.constant 0 : index
    %111 = vector.load %arg14[%c0_52, %c0_53] : memref<28x2xf32, #tpu.memory_space<vmem>>, vector<28x2xf32>
    %cst_54 = arith.constant dense<0.000000e+00> : vector<128x2xf32>
    %112 = tpu.matmul %110, %111, %cst_54 {dimension_numbers = #tpu.dot_dimension_numbers<[1], [0], [0], [1], [0, 0, 1, 1], [], []>} : vector<128x28xf32>, vector<28x2xf32>, vector<128x2xf32> -> vector<128x2xf32>
    %113 = vector.extract_strided_slice %112 {offsets = [0, 0], sizes = [128, 1], strides = [1, 1]} : vector<128x2xf32> to vector<128x1xf32>
    %114 = vector.extract_strided_slice %112 {offsets = [0, 1], sizes = [128, 1], strides = [1, 1]} : vector<128x2xf32> to vector<128x1xf32>
    %115 = tpu.transpose %114, [1, 0] : vector<128x1xf32> -> vector<1x128xf32>
    %116 = vector.broadcast %113 : vector<128x1xf32> to vector<128x128xf32>
    %117 = vector.broadcast %115 : vector<1x128xf32> to vector<128x128xf32>
    %118 = arith.addf %116, %117 : vector<128x128xf32>
    %cst_55 = arith.constant 0.000000e+00 : f32
    %119 = vector.broadcast %cst_55 : f32 to vector<128x128xf32>
    %120 = arith.cmpf ogt, %118, %119 : vector<128x128xf32>
    %cst_56 = arith.constant 2.000000e-01 : f32
    %121 = vector.broadcast %cst_56 : f32 to vector<128x128xf32>
    %122 = arith.mulf %121, %118 : vector<128x128xf32>
    %123 = arith.select %120, %118, %122 : vector<128x128xi1>, vector<128x128xf32>
    %cst_57 = arith.constant 0.000000e+00 : f32
    %124 = vector.broadcast %cst_57 : f32 to vector<128x128xf32>
    %125 = arith.cmpf ogt, %3, %124 : vector<128x128xf32>
    %cst_58 = arith.constant -1.000000e+30 : f32
    %126 = vector.broadcast %cst_58 : f32 to vector<128x128xf32>
    %127 = arith.select %125, %123, %126 : vector<128x128xi1>, vector<128x128xf32>
    %cst_59 = arith.constant dense<0xFF800000> : vector<128xf32>
    %128 = vector.multi_reduction <maximumf>, %127, %cst_59 [1] : vector<128x128xf32> to vector<128xf32>
    %129 = vector.shape_cast %128 : vector<128xf32> to vector<128x1xf32>
    %130 = vector.broadcast %129 : vector<128x1xf32> to vector<128x128xf32>
    %131 = arith.subf %127, %130 : vector<128x128xf32>
    %132 = math.exp %131 : vector<128x128xf32>
    %133 = arith.mulf %132, %3 : vector<128x128xf32>
    %cst_60 = arith.constant dense<0.000000e+00> : vector<128xf32>
    %134 = vector.multi_reduction <add>, %133, %cst_60 [1] : vector<128x128xf32> to vector<128xf32>
    %135 = vector.shape_cast %134 : vector<128xf32> to vector<128x1xf32>
    %136 = tpu.reciprocal %135 {approx = true} : vector<128x1xf32> -> vector<128x1xf32>
    %137 = vector.broadcast %136 : vector<128x1xf32> to vector<128x128xf32>
    %138 = arith.mulf %133, %137 : vector<128x128xf32>
    %cst_61 = arith.constant dense<0.000000e+00> : vector<128x28xf32>
    %139 = tpu.matmul %138, %110, %cst_61 {dimension_numbers = #tpu.dot_dimension_numbers<[1], [0], [0], [1], [0, 0, 1, 1], [], []>} : vector<128x128xf32>, vector<128x28xf32>, vector<128x28xf32> -> vector<128x28xf32>
    %c0_62 = arith.constant 0 : index
    %c0_63 = arith.constant 0 : index
    %140 = vector.load %arg15[%c0_62, %c0_63] : memref<1x28xf32, #tpu.memory_space<vmem>>, vector<1x28xf32>
    %141 = vector.broadcast %140 : vector<1x28xf32> to vector<128x28xf32>
    %142 = arith.addf %139, %141 : vector<128x28xf32>
    %143 = math.tanh %142 : vector<128x28xf32>
    %c0_64 = arith.constant 0 : index
    %c0_65 = arith.constant 0 : index
    %144 = vector.load %arg16[%c0_64, %c0_65] : memref<28x28xf32, #tpu.memory_space<vmem>>, vector<28x28xf32>
    %cst_66 = arith.constant dense<0.000000e+00> : vector<128x28xf32>
    %145 = tpu.matmul %143, %144, %cst_66 {dimension_numbers = #tpu.dot_dimension_numbers<[1], [0], [0], [1], [0, 0, 1, 1], [], []>} : vector<128x28xf32>, vector<28x28xf32>, vector<128x28xf32> -> vector<128x28xf32>
    %c0_67 = arith.constant 0 : index
    %c0_68 = arith.constant 0 : index
    %146 = vector.load %arg17[%c0_67, %c0_68] : memref<28x2xf32, #tpu.memory_space<vmem>>, vector<28x2xf32>
    %cst_69 = arith.constant dense<0.000000e+00> : vector<128x2xf32>
    %147 = tpu.matmul %145, %146, %cst_69 {dimension_numbers = #tpu.dot_dimension_numbers<[1], [0], [0], [1], [0, 0, 1, 1], [], []>} : vector<128x28xf32>, vector<28x2xf32>, vector<128x2xf32> -> vector<128x2xf32>
    %148 = vector.extract_strided_slice %147 {offsets = [0, 0], sizes = [128, 1], strides = [1, 1]} : vector<128x2xf32> to vector<128x1xf32>
    %149 = vector.extract_strided_slice %147 {offsets = [0, 1], sizes = [128, 1], strides = [1, 1]} : vector<128x2xf32> to vector<128x1xf32>
    %150 = tpu.transpose %149, [1, 0] : vector<128x1xf32> -> vector<1x128xf32>
    %151 = vector.broadcast %148 : vector<128x1xf32> to vector<128x128xf32>
    %152 = vector.broadcast %150 : vector<1x128xf32> to vector<128x128xf32>
    %153 = arith.addf %151, %152 : vector<128x128xf32>
    %cst_70 = arith.constant 0.000000e+00 : f32
    %154 = vector.broadcast %cst_70 : f32 to vector<128x128xf32>
    %155 = arith.cmpf ogt, %153, %154 : vector<128x128xf32>
    %cst_71 = arith.constant 2.000000e-01 : f32
    %156 = vector.broadcast %cst_71 : f32 to vector<128x128xf32>
    %157 = arith.mulf %156, %153 : vector<128x128xf32>
    %158 = arith.select %155, %153, %157 : vector<128x128xi1>, vector<128x128xf32>
    %cst_72 = arith.constant 0.000000e+00 : f32
    %159 = vector.broadcast %cst_72 : f32 to vector<128x128xf32>
    %160 = arith.cmpf ogt, %3, %159 : vector<128x128xf32>
    %cst_73 = arith.constant -1.000000e+30 : f32
    %161 = vector.broadcast %cst_73 : f32 to vector<128x128xf32>
    %162 = arith.select %160, %158, %161 : vector<128x128xi1>, vector<128x128xf32>
    %cst_74 = arith.constant dense<0xFF800000> : vector<128xf32>
    %163 = vector.multi_reduction <maximumf>, %162, %cst_74 [1] : vector<128x128xf32> to vector<128xf32>
    %164 = vector.shape_cast %163 : vector<128xf32> to vector<128x1xf32>
    %165 = vector.broadcast %164 : vector<128x1xf32> to vector<128x128xf32>
    %166 = arith.subf %162, %165 : vector<128x128xf32>
    %167 = math.exp %166 : vector<128x128xf32>
    %168 = arith.mulf %167, %3 : vector<128x128xf32>
    %cst_75 = arith.constant dense<0.000000e+00> : vector<128xf32>
    %169 = vector.multi_reduction <add>, %168, %cst_75 [1] : vector<128x128xf32> to vector<128xf32>
    %170 = vector.shape_cast %169 : vector<128xf32> to vector<128x1xf32>
    %171 = tpu.reciprocal %170 {approx = true} : vector<128x1xf32> -> vector<128x1xf32>
    %172 = vector.broadcast %171 : vector<128x1xf32> to vector<128x128xf32>
    %173 = arith.mulf %168, %172 : vector<128x128xf32>
    %cst_76 = arith.constant dense<0.000000e+00> : vector<128x28xf32>
    %174 = tpu.matmul %173, %145, %cst_76 {dimension_numbers = #tpu.dot_dimension_numbers<[1], [0], [0], [1], [0, 0, 1, 1], [], []>} : vector<128x128xf32>, vector<128x28xf32>, vector<128x28xf32> -> vector<128x28xf32>
    %c0_77 = arith.constant 0 : index
    %c0_78 = arith.constant 0 : index
    %175 = vector.load %arg18[%c0_77, %c0_78] : memref<1x28xf32, #tpu.memory_space<vmem>>, vector<1x28xf32>
    %176 = vector.broadcast %175 : vector<1x28xf32> to vector<128x28xf32>
    %177 = arith.addf %174, %176 : vector<128x28xf32>
    %178 = math.tanh %177 : vector<128x28xf32>
    %c0_79 = arith.constant 0 : index
    %c0_80 = arith.constant 0 : index
    %179 = vector.load %arg19[%c0_79, %c0_80] : memref<28x1xf32, #tpu.memory_space<vmem>>, vector<28x1xf32>
    %cst_81 = arith.constant dense<0.000000e+00> : vector<128x1xf32>
    %180 = tpu.matmul %178, %179, %cst_81 {dimension_numbers = #tpu.dot_dimension_numbers<[1], [0], [0], [1], [0, 0, 1, 1], [], []>} : vector<128x28xf32>, vector<28x1xf32>, vector<128x1xf32> -> vector<128x1xf32>
    %c0_82 = arith.constant 0 : index
    %c0_83 = arith.constant 0 : index
    %181 = vector.load %arg20[%c0_82, %c0_83] : memref<1x1xf32, #tpu.memory_space<vmem>>, vector<1x1xf32>
    %182 = vector.broadcast %181 : vector<1x1xf32> to vector<128x1xf32>
    %183 = arith.addf %180, %182 : vector<128x1xf32>
    %c0_84 = arith.constant 0 : index
    %c0_85 = arith.constant 0 : index
    %c0_86 = arith.constant 0 : index
    %184 = vector.load %arg21[%c0_84, %c0_85, %c0_86] : memref<1x128x1xf32, #tpu.memory_space<vmem>>, vector<1x128x1xf32>
    %185 = vector.shape_cast %184 : vector<1x128x1xf32> to vector<128x1xf32>
    %186 = vector.shape_cast %183 : vector<128x1xf32> to vector<1x128x1xf32>
    tpu.vector_store %arg21[%c0_84, %c0_85, %c0_86], %186 {strides = array<i32>} : memref<1x128x1xf32, #tpu.memory_space<vmem>>, vector<1x128x1xf32>,
    %c0_87 = arith.constant 0 : index
    %c0_88 = arith.constant 0 : index
    %187 = vector.load %arg3[%c0_87, %c0_88] : memref<16x128xf32, #tpu.memory_space<vmem>>, vector<16x128xf32>
    %cst_89 = arith.constant dense<0.000000e+00> : vector<16x1xf32>
    %188 = tpu.matmul %187, %183, %cst_89 {dimension_numbers = #tpu.dot_dimension_numbers<[1], [0], [0], [1], [0, 0, 1, 1], [], []>} : vector<16x128xf32>, vector<128x1xf32>, vector<16x1xf32> -> vector<16x1xf32>
    %c0_90 = arith.constant 0 : index
    %c0_91 = arith.constant 0 : index
    %c0_92 = arith.constant 0 : index
    %189 = vector.load %arg22[%c0_90, %c0_91, %c0_92] : memref<1x16x1xf32, #tpu.memory_space<vmem>>, vector<1x16x1xf32>
    %190 = vector.shape_cast %189 : vector<1x16x1xf32> to vector<16x1xf32>
    %191 = vector.shape_cast %188 : vector<16x1xf32> to vector<1x16x1xf32>
    tpu.vector_store %arg22[%c0_90, %c0_91, %c0_92], %191 {strides = array<i32>} : memref<1x16x1xf32, #tpu.memory_space<vmem>>, vector<1x16x1xf32>,
    return
  }
  func.func @transform_0(%arg0: i32) -> (i32, i32, i32) {
    %c0_i32 = arith.constant 0 : i32
    %c0_i32_0 = arith.constant 0 : i32
    %c0_i32_1 = arith.constant 0 : i32
    return %arg0, %c0_i32, %c0_i32_0 : i32, i32, i32
  }
  func.func @transform_1(%arg0: i32) -> (i32, i32, i32) {
    %c0_i32 = arith.constant 0 : i32
    %c0_i32_0 = arith.constant 0 : i32
    %c0_i32_1 = arith.constant 0 : i32
    return %arg0, %c0_i32, %c0_i32_0 : i32, i32, i32
  }
  func.func @transform_2(%arg0: i32) -> (i32, i32) {
    %c0_i32 = arith.constant 0 : i32
    %c0_i32_0 = arith.constant 0 : i32
    %c0_i32_1 = arith.constant 0 : i32
    return %c0_i32, %c0_i32_0 : i32, i32
  }
  func.func @transform_3(%arg0: i32) -> (i32, i32) {
    %c0_i32 = arith.constant 0 : i32
    %c0_i32_0 = arith.constant 0 : i32
    %c0_i32_1 = arith.constant 0 : i32
    return %c0_i32, %c0_i32_0 : i32, i32
  }
  func.func @transform_4(%arg0: i32) -> (i32, i32) {
    %c0_i32 = arith.constant 0 : i32
    %c0_i32_0 = arith.constant 0 : i32
    %c0_i32_1 = arith.constant 0 : i32
    return %c0_i32, %c0_i32_0 : i32, i32
  }
  func.func @transform_5(%arg0: i32) -> (i32, i32) {
    %c0_i32 = arith.constant 0 : i32
    %c0_i32_0 = arith.constant 0 : i32
    %c0_i32_1 = arith.constant 0 : i32
    return %c0_i32, %c0_i32_0 : i32, i32
  }
  func.func @transform_6(%arg0: i32) -> (i32, i32) {
    %c0_i32 = arith.constant 0 : i32
    %c0_i32_0 = arith.constant 0 : i32
    %c0_i32_1 = arith.constant 0 : i32
    return %c0_i32, %c0_i32_0 : i32, i32
  }
  func.func @transform_7(%arg0: i32) -> (i32, i32) {
    %c0_i32 = arith.constant 0 : i32
    %c0_i32_0 = arith.constant 0 : i32
    %c0_i32_1 = arith.constant 0 : i32
    return %c0_i32, %c0_i32_0 : i32, i32
  }
  func.func @transform_8(%arg0: i32) -> (i32, i32) {
    %c0_i32 = arith.constant 0 : i32
    %c0_i32_0 = arith.constant 0 : i32
    %c0_i32_1 = arith.constant 0 : i32
    return %c0_i32, %c0_i32_0 : i32, i32
  }
  func.func @transform_9(%arg0: i32) -> (i32, i32) {
    %c0_i32 = arith.constant 0 : i32
    %c0_i32_0 = arith.constant 0 : i32
    %c0_i32_1 = arith.constant 0 : i32
    return %c0_i32, %c0_i32_0 : i32, i32
  }
  func.func @transform_10(%arg0: i32) -> (i32, i32) {
    %c0_i32 = arith.constant 0 : i32
    %c0_i32_0 = arith.constant 0 : i32
    %c0_i32_1 = arith.constant 0 : i32
    return %c0_i32, %c0_i32_0 : i32, i32
  }
  func.func @transform_11(%arg0: i32) -> (i32, i32) {
    %c0_i32 = arith.constant 0 : i32
    %c0_i32_0 = arith.constant 0 : i32
    %c0_i32_1 = arith.constant 0 : i32
    return %c0_i32, %c0_i32_0 : i32, i32
  }
  func.func @transform_12(%arg0: i32) -> (i32, i32) {
    %c0_i32 = arith.constant 0 : i32
    %c0_i32_0 = arith.constant 0 : i32
    %c0_i32_1 = arith.constant 0 : i32
    return %c0_i32, %c0_i32_0 : i32, i32
  }
  func.func @transform_13(%arg0: i32) -> (i32, i32) {
    %c0_i32 = arith.constant 0 : i32
    %c0_i32_0 = arith.constant 0 : i32
    %c0_i32_1 = arith.constant 0 : i32
    return %c0_i32, %c0_i32_0 : i32, i32
  }
  func.func @transform_14(%arg0: i32) -> (i32, i32) {
    %c0_i32 = arith.constant 0 : i32
    %c0_i32_0 = arith.constant 0 : i32
    %c0_i32_1 = arith.constant 0 : i32
    return %c0_i32, %c0_i32_0 : i32, i32
  }
  func.func @transform_15(%arg0: i32) -> (i32, i32) {
    %c0_i32 = arith.constant 0 : i32
    %c0_i32_0 = arith.constant 0 : i32
    %c0_i32_1 = arith.constant 0 : i32
    return %c0_i32, %c0_i32_0 : i32, i32
  }
  func.func @transform_16(%arg0: i32) -> (i32, i32) {
    %c0_i32 = arith.constant 0 : i32
    %c0_i32_0 = arith.constant 0 : i32
    %c0_i32_1 = arith.constant 0 : i32
    return %c0_i32, %c0_i32_0 : i32, i32
  }
  func.func @transform_17(%arg0: i32) -> (i32, i32) {
    %c0_i32 = arith.constant 0 : i32
    %c0_i32_0 = arith.constant 0 : i32
    %c0_i32_1 = arith.constant 0 : i32
    return %c0_i32, %c0_i32_0 : i32, i32
  }
  func.func @transform_18(%arg0: i32) -> (i32, i32) {
    %c0_i32 = arith.constant 0 : i32
    %c0_i32_0 = arith.constant 0 : i32
    %c0_i32_1 = arith.constant 0 : i32
    return %c0_i32, %c0_i32_0 : i32, i32
  }
  func.func @transform_19(%arg0: i32) -> (i32, i32) {
    %c0_i32 = arith.constant 0 : i32
    %c0_i32_0 = arith.constant 0 : i32
    %c0_i32_1 = arith.constant 0 : i32
    return %c0_i32, %c0_i32_0 : i32, i32
  }
  func.func @transform_20(%arg0: i32) -> (i32, i32, i32) {
    %c0_i32 = arith.constant 0 : i32
    %c0_i32_0 = arith.constant 0 : i32
    %c0_i32_1 = arith.constant 0 : i32
    return %arg0, %c0_i32, %c0_i32_0 : i32, i32, i32
  }
  func.func @transform_21(%arg0: i32) -> (i32, i32, i32) {
    %c0_i32 = arith.constant 0 : i32
    %c0_i32_0 = arith.constant 0 : i32
    %c0_i32_1 = arith.constant 0 : i32
    return %arg0, %c0_i32, %c0_i32_0 : i32, i32, i32
  }
}

</mosaic_0001>

<llo_original>
// kernel: _gsr_forward_impl.1
$region0: #{_gsr_forward_impl.1}
  #allocation0 [shape = 'u32[]', space=smem, size = 0x4, offset = 0x4, fixed_abs, tag = 'smem constant byte address 0x4 - core index']
  #allocation1 [shape = 'u32[72,128]{1,0:T(1,128)}', space=vmem, size = 0x9000, scoped, tag = 'internal scratch']
  #allocation2 [shape = 'f32[1,1]{1,0:T(1,128)S(1)}', space=vmem, size = 0x200, scoped, tag = 'scoped memory for _gsr_forward_impl.1']
  %s0 = inlined_call_operand.vmem [shape: f32[2,128,35], index: 0, kind: input, shape index: {}]
  %s1 = inlined_call_operand.vmem [shape: f32[2,128,128], index: 1, kind: input, shape index: {}]
  %s2 = inlined_call_operand.vmem [shape: f32[16,128], index: 2, kind: input, shape index: {}]
  %s3 = inlined_call_operand.vmem [shape: f32[35,28], index: 3, kind: input, shape index: {}]
  %s4 = inlined_call_operand.vmem [shape: f32[28,2], index: 4, kind: input, shape index: {}]
  %s5 = inlined_call_operand.vmem [shape: f32[1,28], index: 5, kind: input, shape index: {}]
  %s6 = inlined_call_operand.vmem [shape: f32[28,28], index: 6, kind: input, shape index: {}]
  %s7 = inlined_call_operand.vmem [shape: f32[28,2], index: 7, kind: input, shape index: {}]
  %s8 = inlined_call_operand.vmem [shape: f32[1,28], index: 8, kind: input, shape index: {}]
  %s9 = inlined_call_operand.vmem [shape: f32[28,28], index: 9, kind: input, shape index: {}]
  %s10 = inlined_call_operand.vmem [shape: f32[28,2], index: 10, kind: input, shape index: {}]
  %s11 = inlined_call_operand.vmem [shape: f32[1,28], index: 11, kind: input, shape index: {}]
  %s12 = inlined_call_operand.vmem [shape: f32[28,28], index: 12, kind: input, shape index: {}]
  %s13 = inlined_call_operand.vmem [shape: f32[28,2], index: 13, kind: input, shape index: {}]
  %s14 = inlined_call_operand.vmem [shape: f32[1,28], index: 14, kind: input, shape index: {}]
  %s15 = inlined_call_operand.vmem [shape: f32[28,28], index: 15, kind: input, shape index: {}]
  %s16 = inlined_call_operand.vmem [shape: f32[28,2], index: 16, kind: input, shape index: {}]
  %s17 = inlined_call_operand.vmem [shape: f32[1,28], index: 17, kind: input, shape index: {}]
  %s18 = inlined_call_operand.vmem [shape: f32[28,1], index: 18, kind: input, shape index: {}]
  %s19 = inlined_call_operand.<no memory space> [shape: f32[1,1], index: 19, kind: input, shape index: {}]
  %s20 = inlined_call_operand.vmem [shape: f32[2,128,1], index: 20, kind: output, shape index: {0}]
  %s21 = inlined_call_operand.vmem [shape: f32[2,16,1], index: 21, kind: output, shape index: {1}]
  %22 = xla_tuple %s20, %s21
  %s23 = sld [smem:[#allocation0]]
  $region121: #{_gsr_forward_impl.1} parent=0
    _
  %s25 = ssub.s32 1, %s23
  %s26 = scalar_select 0, %s25, %s23
  %v27 = vstv %s19
  %28 = vst [vmem:[#allocation2] sm:$0x1] %v27
  loop: start=0, step=1, limit=4
  $region2: #{_gsr_forward_impl.1} parent=0 // loop_pre_header
    _
  $region3: #{_gsr_forward_impl.1} parent=0 // loop_header
    %s30 = sphi 0, %s34
    %p31 = scmp.ge.s32.totalorder %s30, 4
    %s40 = sphi 0, %s42
    %s43 = sphi 0, %s40
    %s44 = sphi 0, %s43
    %s60 = sphi 0, %s44
    %s66 = sphi 0, %s68
    %s69 = sphi 0, %s66
    %s70 = sphi 0, %s69
    %s86 = sphi 0, %s70
    %s90 = sphi 0, %s90
    %s92 = sphi 0, %s90
    %s93 = sphi 0, %s92
    %s107 = sphi 0, %s93
    %s111 = sphi 0, %s111
    %s113 = sphi 0, %s111
    %s114 = sphi 0, %s113
    %s128 = sphi 0, %s114
    %s132 = sphi 0, %s132
    %s134 = sphi 0, %s132
    %s135 = sphi 0, %s134
    %s149 = sphi 0, %s135
    %s153 = sphi 0, %s153
    %s155 = sphi 0, %s153
    %s156 = sphi 0, %s155
    %s170 = sphi 0, %s156
    %s174 = sphi 0, %s174
    %s176 = sphi 0, %s174
    %s177 = sphi 0, %s176
    %s191 = sphi 0, %s177
    %s195 = sphi 0, %s195
    %s197 = sphi 0, %s195
    %s198 = sphi 0, %s197
    %s212 = sphi 0, %s198
    %s216 = sphi 0, %s216
    %s218 = sphi 0, %s216
    %s219 = sphi 0, %s218
    %s233 = sphi 0, %s219
    %s237 = sphi 0, %s237
    %s239 = sphi 0, %s237
    %s240 = sphi 0, %s239
    %s254 = sphi 0, %s240
    %s258 = sphi 0, %s258
    %s260 = sphi 0, %s258
    %s261 = sphi 0, %s260
    %s275 = sphi 0, %s261
    %s279 = sphi 0, %s279
    %s281 = sphi 0, %s279
    %s282 = sphi 0, %s281
    %s296 = sphi 0, %s282
    %s300 = sphi 0, %s300
    %s302 = sphi 0, %s300
    %s303 = sphi 0, %s302
    %s317 = sphi 0, %s303
    %s321 = sphi 0, %s321
    %s323 = sphi 0, %s321
    %s324 = sphi 0, %s323
    %s338 = sphi 0, %s324
    %s342 = sphi 0, %s342
    %s344 = sphi 0, %s342
    %s345 = sphi 0, %s344
    %s359 = sphi 0, %s345
    %s363 = sphi 0, %s363
    %s365 = sphi 0, %s363
    %s366 = sphi 0, %s365
    %s380 = sphi 0, %s366
    %s384 = sphi 0, %s384
    %s386 = sphi 0, %s384
    %s387 = sphi 0, %s386
    %s401 = sphi 0, %s387
    %s405 = sphi 0, %s405
    %s407 = sphi 0, %s405
    %s408 = sphi 0, %s407
    %s422 = sphi 0, %s408
    %s426 = sphi 0, %s426
    %s428 = sphi 0, %s426
    %s429 = sphi 0, %s428
    %s443 = sphi 0, %s429
    %s447 = sphi 0, %s447
    %s449 = sphi 0, %s447
    %s450 = sphi 0, %s449
    %s464 = sphi 0, %s450
    %s470 = sphi 0, %s472
    %s473 = sphi 0, %s470
    %s474 = sphi 0, %s473
    %s490 = sphi 0, %s474
    %s496 = sphi 0, %s498
    %s499 = sphi 0, %s496
    %s500 = sphi 0, %s499
    %s516 = sphi 0, %s500
  $region4: #{_gsr_forward_impl.1} parent=0 // loop_header_branch
    %33 = sbr.rel (%p31) target = $region8
  $region5: #{_gsr_forward_impl.1} parent=0 // loop_body
    %s35 = ssub.s32 %s30, 1
    %s36 = ssub.s32 %s30, 2
    %s37 = sadd.s32 %s30, 1
    %s38 = ssub.s32 %s30, %s37
    %p39 = scmp.eq.s32.totalorder %s38, 0
    %s41 = sadd.s32 %s40, 1
    %s42 = scalar_select %p39, %s40, %s41
    %p45 = pneg %p39
    %p46 = scmp.eq.s32.totalorder %s30, 1
    %p47 = por %p45, %p46
    %p48 = scmp.ne.s32.totalorder %s40, %s43
    %p49 = scmp.eq.s32.totalorder %s30, 0
    %p50 = por %p48, %p49
    %p51 = scmp.ne.s32.totalorder %s40, %s43
    %p52 = scmp.eq.s32.totalorder %s35, 1
    %p53 = por %p51, %p52
    %p54 = scmp.ne.s32.totalorder %s43, %s44
    %p55 = scmp.eq.s32.totalorder %s35, 0
    %p56 = por %p54, %p55
    %p57 = scmp.ne.s32.totalorder %s43, %s44
    %p58 = scmp.eq.s32.totalorder %s36, 1
    %p59 = por %p57, %p58
    %p61 = scmp.ne.s32.totalorder %s44, %s60
    %p62 = scmp.eq.s32.totalorder %s36, 0
    %p63 = por %p61, %p62
    %s64 = ssub.s32 %s30, %s37
    %p65 = scmp.eq.s32.totalorder %s64, 0
    %s67 = sadd.s32 %s66, 1
    %s68 = scalar_select %p65, %s66, %s67
    %p71 = pneg %p65
    %p72 = scmp.eq.s32.totalorder %s30, 1
    %p73 = por %p71, %p72
    %p74 = scmp.ne.s32.totalorder %s66, %s69
    %p75 = scmp.eq.s32.totalorder %s30, 0
    %p76 = por %p74, %p75
    %p77 = scmp.ne.s32.totalorder %s66, %s69
    %p78 = scmp.eq.s32.totalorder %s35, 1
    %p79 = por %p77, %p78
    %p80 = scmp.ne.s32.totalorder %s69, %s70
    %p81 = scmp.eq.s32.totalorder %s35, 0
    %p82 = por %p80, %p81
    %p83 = scmp.ne.s32.totalorder %s69, %s70
    %p84 = scmp.eq.s32.totalorder %s36, 1
    %p85 = por %p83, %p84
    %p87 = scmp.ne.s32.totalorder %s70, %s86
    %p88 = scmp.eq.s32.totalorder %s36, 0
    %p89 = por %p87, %p88
    %s91 = sadd.s32 %s90, 1
    %p94 = scmp.eq.s32.totalorder %s30, 1
    %p95 = scmp.ne.s32.totalorder %s90, %s92
    %p96 = scmp.eq.s32.totalorder %s30, 0
    %p97 = por %p95, %p96
    %p98 = scmp.ne.s32.totalorder %s90, %s92
    %p99 = scmp.eq.s32.totalorder %s35, 1
    %p100 = por %p98, %p99
    %p101 = scmp.ne.s32.totalorder %s92, %s93
    %p102 = scmp.eq.s32.totalorder %s35, 0
    %p103 = por %p101, %p102
    %p104 = scmp.ne.s32.totalorder %s92, %s93
    %p105 = scmp.eq.s32.totalorder %s36, 1
    %p106 = por %p104, %p105
    %p108 = scmp.ne.s32.totalorder %s93, %s107
    %p109 = scmp.eq.s32.totalorder %s36, 0
    %p110 = por %p108, %p109
    %s112 = sadd.s32 %s111, 1
    %p115 = scmp.eq.s32.totalorder %s30, 1
    %p116 = scmp.ne.s32.totalorder %s111, %s113
    %p117 = scmp.eq.s32.totalorder %s30, 0
    %p118 = por %p116, %p117
    %p119 = scmp.ne.s32.totalorder %s111, %s113
    %p120 = scmp.eq.s32.totalorder %s35, 1
    %p121 = por %p119, %p120
    %p122 = scmp.ne.s32.totalorder %s113, %s114
    %p123 = scmp.eq.s32.totalorder %s35, 0
    %p124 = por %p122, %p123
    %p125 = scmp.ne.s32.totalorder %s113, %s114
    %p126 = scmp.eq.s32.totalorder %s36, 1
    %p127 = por %p125, %p126
    %p129 = scmp.ne.s32.totalorder %s114, %s128
    %p130 = scmp.eq.s32.totalorder %s36, 0
    %p131 = por %p129, %p130
    %s133 = sadd.s32 %s132, 1
    %p136 = scmp.eq.s32.totalorder %s30, 1
    %p137 = scmp.ne.s32.totalorder %s132, %s134
    %p138 = scmp.eq.s32.totalorder %s30, 0
    %p139 = por %p137, %p138
    %p140 = scmp.ne.s32.totalorder %s132, %s134
    %p141 = scmp.eq.s32.totalorder %s35, 1
    %p142 = por %p140, %p141
    %p143 = scmp.ne.s32.totalorder %s134, %s135
    %p144 = scmp.eq.s32.totalorder %s35, 0
    %p145 = por %p143, %p144
    %p146 = scmp.ne.s32.totalorder %s134, %s135
    %p147 = scmp.eq.s32.totalorder %s36, 1
    %p148 = por %p146, %p147
    %p150 = scmp.ne.s32.totalorder %s135, %s149
    %p151 = scmp.eq.s32.totalorder %s36, 0
    %p152 = por %p150, %p151
    %s154 = sadd.s32 %s153, 1
    %p157 = scmp.eq.s32.totalorder %s30, 1
    %p158 = scmp.ne.s32.totalorder %s153, %s155
    %p159 = scmp.eq.s32.totalorder %s30, 0
    %p160 = por %p158, %p159
    %p161 = scmp.ne.s32.totalorder %s153, %s155
    %p162 = scmp.eq.s32.totalorder %s35, 1
    %p163 = por %p161, %p162
    %p164 = scmp.ne.s32.totalorder %s155, %s156
    %p165 = scmp.eq.s32.totalorder %s35, 0
    %p166 = por %p164, %p165
    %p167 = scmp.ne.s32.totalorder %s155, %s156
    %p168 = scmp.eq.s32.totalorder %s36, 1
    %p169 = por %p167, %p168
    %p171 = scmp.ne.s32.totalorder %s156, %s170
    %p172 = scmp.eq.s32.totalorder %s36, 0
    %p173 = por %p171, %p172
    %s175 = sadd.s32 %s174, 1
    %p178 = scmp.eq.s32.totalorder %s30, 1
    %p179 = scmp.ne.s32.totalorder %s174, %s176
    %p180 = scmp.eq.s32.totalorder %s30, 0
    %p181 = por %p179, %p180
    %p182 = scmp.ne.s32.totalorder %s174, %s176
    %p183 = scmp.eq.s32.totalorder %s35, 1
    %p184 = por %p182, %p183
    %p185 = scmp.ne.s32.totalorder %s176, %s177
    %p186 = scmp.eq.s32.totalorder %s35, 0
    %p187 = por %p185, %p186
    %p188 = scmp.ne.s32.totalorder %s176, %s177
    %p189 = scmp.eq.s32.totalorder %s36, 1
    %p190 = por %p188, %p189
    %p192 = scmp.ne.s32.totalorder %s177, %s191
    %p193 = scmp.eq.s32.totalorder %s36, 0
    %p194 = por %p192, %p193
    %s196 = sadd.s32 %s195, 1
    %p199 = scmp.eq.s32.totalorder %s30, 1
    %p200 = scmp.ne.s32.totalorder %s195, %s197
    %p201 = scmp.eq.s32.totalorder %s30, 0
    %p202 = por %p200, %p201
    %p203 = scmp.ne.s32.totalorder %s195, %s197
    %p204 = scmp.eq.s32.totalorder %s35, 1
    %p205 = por %p203, %p204
    %p206 = scmp.ne.s32.totalorder %s197, %s198
    %p207 = scmp.eq.s32.totalorder %s35, 0
    %p208 = por %p206, %p207
    %p209 = scmp.ne.s32.totalorder %s197, %s198
    %p210 = scmp.eq.s32.totalorder %s36, 1
    %p211 = por %p209, %p210
    %p213 = scmp.ne.s32.totalorder %s198, %s212
    %p214 = scmp.eq.s32.totalorder %s36, 0
    %p215 = por %p213, %p214
    %s217 = sadd.s32 %s216, 1
    %p220 = scmp.eq.s32.totalorder %s30, 1
    %p221 = scmp.ne.s32.totalorder %s216, %s218
    %p222 = scmp.eq.s32.totalorder %s30, 0
    %p223 = por %p221, %p222
    %p224 = scmp.ne.s32.totalorder %s216, %s218
    %p225 = scmp.eq.s32.totalorder %s35, 1
    %p226 = por %p224, %p225
    %p227 = scmp.ne.s32.totalorder %s218, %s219
    %p228 = scmp.eq.s32.totalorder %s35, 0
    %p229 = por %p227, %p228
    %p230 = scmp.ne.s32.totalorder %s218, %s219
    %p231 = scmp.eq.s32.totalorder %s36, 1
    %p232 = por %p230, %p231
    %p234 = scmp.ne.s32.totalorder %s219, %s233
    %p235 = scmp.eq.s32.totalorder %s36, 0
    %p236 = por %p234, %p235
    %s238 = sadd.s32 %s237, 1
    %p241 = scmp.eq.s32.totalorder %s30, 1
    %p242 = scmp.ne.s32.totalorder %s237, %s239
    %p243 = scmp.eq.s32.totalorder %s30, 0
    %p244 = por %p242, %p243
    %p245 = scmp.ne.s32.totalorder %s237, %s239
    %p246 = scmp.eq.s32.totalorder %s35, 1
    %p247 = por %p245, %p246
    %p248 = scmp.ne.s32.totalorder %s239, %s240
    %p249 = scmp.eq.s32.totalorder %s35, 0
    %p250 = por %p248, %p249
    %p251 = scmp.ne.s32.totalorder %s239, %s240
    %p252 = scmp.eq.s32.totalorder %s36, 1
    %p253 = por %p251, %p252
    %p255 = scmp.ne.s32.totalorder %s240, %s254
    %p256 = scmp.eq.s32.totalorder %s36, 0
    %p257 = por %p255, %p256
    %s259 = sadd.s32 %s258, 1
    %p262 = scmp.eq.s32.totalorder %s30, 1
    %p263 = scmp.ne.s32.totalorder %s258, %s260
    %p264 = scmp.eq.s32.totalorder %s30, 0
    %p265 = por %p263, %p264
    %p266 = scmp.ne.s32.totalorder %s258, %s260
    %p267 = scmp.eq.s32.totalorder %s35, 1
    %p268 = por %p266, %p267
    %p269 = scmp.ne.s32.totalorder %s260, %s261
    %p270 = scmp.eq.s32.totalorder %s35, 0
    %p271 = por %p269, %p270
    %p272 = scmp.ne.s32.totalorder %s260, %s261
    %p273 = scmp.eq.s32.totalorder %s36, 1
    %p274 = por %p272, %p273
    %p276 = scmp.ne.s32.totalorder %s261, %s275
    %p277 = scmp.eq.s32.totalorder %s36, 0
    %p278 = por %p276, %p277
    %s280 = sadd.s32 %s279, 1
    %p283 = scmp.eq.s32.totalorder %s30, 1
    %p284 = scmp.ne.s32.totalorder %s279, %s281
    %p285 = scmp.eq.s32.totalorder %s30, 0
    %p286 = por %p284, %p285
    %p287 = scmp.ne.s32.totalorder %s279, %s281
    %p288 = scmp.eq.s32.totalorder %s35, 1
    %p289 = por %p287, %p288
    %p290 = scmp.ne.s32.totalorder %s281, %s282
    %p291 = scmp.eq.s32.totalorder %s35, 0
    %p292 = por %p290, %p291
    %p293 = scmp.ne.s32.totalorder %s281, %s282
    %p294 = scmp.eq.s32.totalorder %s36, 1
    %p295 = por %p293, %p294
    %p297 = scmp.ne.s32.totalorder %s282, %s296
    %p298 = scmp.eq.s32.totalorder %s36, 0
    %p299 = por %p297, %p298
    %s301 = sadd.s32 %s300, 1
    %p304 = scmp.eq.s32.totalorder %s30, 1
    %p305 = scmp.ne.s32.totalorder %s300, %s302
    %p306 = scmp.eq.s32.totalorder %s30, 0
    %p307 = por %p305, %p306
    %p308 = scmp.ne.s32.totalorder %s300, %s302
    %p309 = scmp.eq.s32.totalorder %s35, 1
    %p310 = por %p308, %p309
    %p311 = scmp.ne.s32.totalorder %s302, %s303
    %p312 = scmp.eq.s32.totalorder %s35, 0
    %p313 = por %p311, %p312
    %p314 = scmp.ne.s32.totalorder %s302, %s303
    %p315 = scmp.eq.s32.totalorder %s36, 1
    %p316 = por %p314, %p315
    %p318 = scmp.ne.s32.totalorder %s303, %s317
    %p319 = scmp.eq.s32.totalorder %s36, 0
    %p320 = por %p318, %p319
    %s322 = sadd.s32 %s321, 1
    %p325 = scmp.eq.s32.totalorder %s30, 1
    %p326 = scmp.ne.s32.totalorder %s321, %s323
    %p327 = scmp.eq.s32.totalorder %s30, 0
    %p328 = por %p326, %p327
    %p329 = scmp.ne.s32.totalorder %s321, %s323
    %p330 = scmp.eq.s32.totalorder %s35, 1
    %p331 = por %p329, %p330
    %p332 = scmp.ne.s32.totalorder %s323, %s324
    %p333 = scmp.eq.s32.totalorder %s35, 0
    %p334 = por %p332, %p333
    %p335 = scmp.ne.s32.totalorder %s323, %s324
    %p336 = scmp.eq.s32.totalorder %s36, 1
    %p337 = por %p335, %p336
    %p339 = scmp.ne.s32.totalorder %s324, %s338
    %p340 = scmp.eq.s32.totalorder %s36, 0
    %p341 = por %p339, %p340
    %s343 = sadd.s32 %s342, 1
    %p346 = scmp.eq.s32.totalorder %s30, 1
    %p347 = scmp.ne.s32.totalorder %s342, %s344
    %p348 = scmp.eq.s32.totalorder %s30, 0
    %p349 = por %p347, %p348
    %p350 = scmp.ne.s32.totalorder %s342, %s344
    %p351 = scmp.eq.s32.totalorder %s35, 1
    %p352 = por %p350, %p351
    %p353 = scmp.ne.s32.totalorder %s344, %s345
    %p354 = scmp.eq.s32.totalorder %s35, 0
    %p355 = por %p353, %p354
    %p356 = scmp.ne.s32.totalorder %s344, %s345
    %p357 = scmp.eq.s32.totalorder %s36, 1
    %p358 = por %p356, %p357
    %p360 = scmp.ne.s32.totalorder %s345, %s359
    %p361 = scmp.eq.s32.totalorder %s36, 0
    %p362 = por %p360, %p361
    %s364 = sadd.s32 %s363, 1
    %p367 = scmp.eq.s32.totalorder %s30, 1
    %p368 = scmp.ne.s32.totalorder %s363, %s365
    %p369 = scmp.eq.s32.totalorder %s30, 0
    %p370 = por %p368, %p369
    %p371 = scmp.ne.s32.totalorder %s363, %s365
    %p372 = scmp.eq.s32.totalorder %s35, 1
    %p373 = por %p371, %p372
    %p374 = scmp.ne.s32.totalorder %s365, %s366
    %p375 = scmp.eq.s32.totalorder %s35, 0
    %p376 = por %p374, %p375
    %p377 = scmp.ne.s32.totalorder %s365, %s366
    %p378 = scmp.eq.s32.totalorder %s36, 1
    %p379 = por %p377, %p378
    %p381 = scmp.ne.s32.totalorder %s366, %s380
    %p382 = scmp.eq.s32.totalorder %s36, 0
    %p383 = por %p381, %p382
    %s385 = sadd.s32 %s384, 1
    %p388 = scmp.eq.s32.totalorder %s30, 1
    %p389 = scmp.ne.s32.totalorder %s384, %s386
    %p390 = scmp.eq.s32.totalorder %s30, 0
    %p391 = por %p389, %p390
    %p392 = scmp.ne.s32.totalorder %s384, %s386
    %p393 = scmp.eq.s32.totalorder %s35, 1
    %p394 = por %p392, %p393
    %p395 = scmp.ne.s32.totalorder %s386, %s387
    %p396 = scmp.eq.s32.totalorder %s35, 0
    %p397 = por %p395, %p396
    %p398 = scmp.ne.s32.totalorder %s386, %s387
    %p399 = scmp.eq.s32.totalorder %s36, 1
    %p400 = por %p398, %p399
    %p402 = scmp.ne.s32.totalorder %s387, %s401
    %p403 = scmp.eq.s32.totalorder %s36, 0
    %p404 = por %p402, %p403
    %s406 = sadd.s32 %s405, 1
    %p409 = scmp.eq.s32.totalorder %s30, 1
    %p410 = scmp.ne.s32.totalorder %s405, %s407
    %p411 = scmp.eq.s32.totalorder %s30, 0
    %p412 = por %p410, %p411
    %p413 = scmp.ne.s32.totalorder %s405, %s407
    %p414 = scmp.eq.s32.totalorder %s35, 1
    %p415 = por %p413, %p414
    %p416 = scmp.ne.s32.totalorder %s407, %s408
    %p417 = scmp.eq.s32.totalorder %s35, 0
    %p418 = por %p416, %p417
    %p419 = scmp.ne.s32.totalorder %s407, %s408
    %p420 = scmp.eq.s32.totalorder %s36, 1
    %p421 = por %p419, %p420
    %p423 = scmp.ne.s32.totalorder %s408, %s422
    %p424 = scmp.eq.s32.totalorder %s36, 0
    %p425 = por %p423, %p424
    %s427 = sadd.s32 %s426, 1
    %p430 = scmp.eq.s32.totalorder %s30, 1
    %p431 = scmp.ne.s32.totalorder %s426, %s428
    %p432 = scmp.eq.s32.totalorder %s30, 0
    %p433 = por %p431, %p432
    %p434 = scmp.ne.s32.totalorder %s426, %s428
    %p435 = scmp.eq.s32.totalorder %s35, 1
    %p436 = por %p434, %p435
    %p437 = scmp.ne.s32.totalorder %s428, %s429
    %p438 = scmp.eq.s32.totalorder %s35, 0
    %p439 = por %p437, %p438
    %p440 = scmp.ne.s32.totalorder %s428, %s429
    %p441 = scmp.eq.s32.totalorder %s36, 1
    %p442 = por %p440, %p441
    %p444 = scmp.ne.s32.totalorder %s429, %s443
    %p445 = scmp.eq.s32.totalorder %s36, 0
    %p446 = por %p444, %p445
    %s448 = sadd.s32 %s447, 1
    %p451 = scmp.eq.s32.totalorder %s30, 1
    %p452 = scmp.ne.s32.totalorder %s447, %s449
    %p453 = scmp.eq.s32.totalorder %s30, 0
    %p454 = por %p452, %p453
    %p455 = scmp.ne.s32.totalorder %s447, %s449
    %p456 = scmp.eq.s32.totalorder %s35, 1
    %p457 = por %p455, %p456
    %p458 = scmp.ne.s32.totalorder %s449, %s450
    %p459 = scmp.eq.s32.totalorder %s35, 0
    %p460 = por %p458, %p459
    %p461 = scmp.ne.s32.totalorder %s449, %s450
    %p462 = scmp.eq.s32.totalorder %s36, 1
    %p463 = por %p461, %p462
    %p465 = scmp.ne.s32.totalorder %s450, %s464
    %p466 = scmp.eq.s32.totalorder %s36, 0
    %p467 = por %p465, %p466
    %s468 = ssub.s32 %s30, %s37
    %p469 = scmp.eq.s32.totalorder %s468, 0
    %s471 = sadd.s32 %s470, 1
    %s472 = scalar_select %p469, %s470, %s471
    %p475 = pneg %p469
    %p476 = scmp.eq.s32.totalorder %s30, 1
    %p477 = por %p475, %p476
    %p478 = scmp.ne.s32.totalorder %s470, %s473
    %p479 = scmp.eq.s32.totalorder %s30, 0
    %p480 = por %p478, %p479
    %p481 = scmp.ne.s32.totalorder %s470, %s473
    %p482 = scmp.eq.s32.totalorder %s35, 1
    %p483 = por %p481, %p482
    %p484 = scmp.ne.s32.totalorder %s473, %s474
    %p485 = scmp.eq.s32.totalorder %s35, 0
    %p486 = por %p484, %p485
    %p487 = scmp.ne.s32.totalorder %s473, %s474
    %p488 = scmp.eq.s32.totalorder %s36, 1
    %p489 = por %p487, %p488
    %p491 = scmp.ne.s32.totalorder %s474, %s490
    %p492 = scmp.eq.s32.totalorder %s36, 0
    %p493 = por %p491, %p492
    %s494 = ssub.s32 %s30, %s37
    %p495 = scmp.eq.s32.totalorder %s494, 0
    %s497 = sadd.s32 %s496, 1
    %s498 = scalar_select %p495, %s496, %s497
    %p501 = pneg %p495
    %p502 = scmp.eq.s32.totalorder %s30, 1
    %p503 = por %p501, %p502
    %p504 = scmp.ne.s32.totalorder %s496, %s499
    %p505 = scmp.eq.s32.totalorder %s30, 0
    %p506 = por %p504, %p505
    %p507 = scmp.ne.s32.totalorder %s496, %s499
    %p508 = scmp.eq.s32.totalorder %s35, 1
    %p509 = por %p507, %p508
    %p510 = scmp.ne.s32.totalorder %s499, %s500
    %p511 = scmp.eq.s32.totalorder %s35, 0
    %p512 = por %p510, %p511
    %p513 = scmp.ne.s32.totalorder %s499, %s500
    %p514 = scmp.eq.s32.totalorder %s36, 1
    %p515 = por %p513, %p514
    %p517 = scmp.ne.s32.totalorder %s500, %s516
    %p518 = scmp.eq.s32.totalorder %s36, 0
    %p519 = por %p517, %p518
    %p520 = scmp.le.s32.totalorder 1, %s30
    %p521 = scmp.lt.s32.totalorder %s30, 3
    %p522 = pnand %p520, %p521
    %p523 = pneg %p522
    // Predicated region
    $region9: #{_gsr_forward_impl.1} parent=5 // pred_check
      _
    $region10: #{_gsr_forward_impl.1} parent=5 // pred_check_branch
      %525 = sbr.rel (%p522) target = $region12
    $region11: #{_gsr_forward_impl.1} parent=5 // pred_region
      %s526 = ssub.s32 %s30, 1
      // Predicated region
      $region13: #{_gsr_forward_impl.1} parent=11 // pred_check
        %p527 = pneg %p103
      $region14: #{_gsr_forward_impl.1} parent=11 // pred_check_branch
        %529 = sbr.rel (%p527) target = $region16
      $region15: #{_gsr_forward_impl.1} parent=11 // pred_region
        _
      $region16: #{_gsr_forward_impl.1} parent=11 // pred_fallthru
        _
      // Predicated region
      $region17: #{_gsr_forward_impl.1} parent=11 // pred_check
        %p530 = pneg %p124
      $region18: #{_gsr_forward_impl.1} parent=11 // pred_check_branch
        %532 = sbr.rel (%p530) target = $region20
      $region19: #{_gsr_forward_impl.1} parent=11 // pred_region
        _
      $region20: #{_gsr_forward_impl.1} parent=11 // pred_fallthru
        _
      // Predicated region
      $region21: #{_gsr_forward_impl.1} parent=11 // pred_check
        %p533 = pneg %p145
      $region22: #{_gsr_forward_impl.1} parent=11 // pred_check_branch
        %535 = sbr.rel (%p533) target = $region24
      $region23: #{_gsr_forward_impl.1} parent=11 // pred_region
        _
      $region24: #{_gsr_forward_impl.1} parent=11 // pred_fallthru
        _
      // Predicated region
      $region25: #{_gsr_forward_impl.1} parent=11 // pred_check
        %p536 = pneg %p166
      $region26: #{_gsr_forward_impl.1} parent=11 // pred_check_branch
        %538 = sbr.rel (%p536) target = $region28
      $region27: #{_gsr_forward_impl.1} parent=11 // pred_region
        _
      $region28: #{_gsr_forward_impl.1} parent=11 // pred_fallthru
        _
      // Predicated region
      $region29: #{_gsr_forward_impl.1} parent=11 // pred_check
        %p539 = pneg %p187
      $region30: #{_gsr_forward_impl.1} parent=11 // pred_check_branch
        %541 = sbr.rel (%p539) target = $region32
      $region31: #{_gsr_forward_impl.1} parent=11 // pred_region
        _
      $region32: #{_gsr_forward_impl.1} parent=11 // pred_fallthru
        _
      // Predicated region
      $region33: #{_gsr_forward_impl.1} parent=11 // pred_check
        %p542 = pneg %p208
      $region34: #{_gsr_forward_impl.1} parent=11 // pred_check_branch
        %544 = sbr.rel (%p542) target = $region36
      $region35: #{_gsr_forward_impl.1} parent=11 // pred_region
        _
      $region36: #{_gsr_forward_impl.1} parent=11 // pred_fallthru
        _
      // Predicated region
      $region37: #{_gsr_forward_impl.1} parent=11 // pred_check
        %p545 = pneg %p229
      $region38: #{_gsr_forward_impl.1} parent=11 // pred_check_branch
        %547 = sbr.rel (%p545) target = $region40
      $region39: #{_gsr_forward_impl.1} parent=11 // pred_region
        _
      $region40: #{_gsr_forward_impl.1} parent=11 // pred_fallthru
        _
      // Predicated region
      $region41: #{_gsr_forward_impl.1} parent=11 // pred_check
        %p548 = pneg %p250
      $region42: #{_gsr_forward_impl.1} parent=11 // pred_check_branch
        %550 = sbr.rel (%p548) target = $region44
      $region43: #{_gsr_forward_impl.1} parent=11 // pred_region
        _
      $region44: #{_gsr_forward_impl.1} parent=11 // pred_fallthru
        _
      // Predicated region
      $region45: #{_gsr_forward_impl.1} parent=11 // pred_check
        %p551 = pneg %p271
      $region46: #{_gsr_forward_impl.1} parent=11 // pred_check_branch
        %553 = sbr.rel (%p551) target = $region48
      $region47: #{_gsr_forward_impl.1} parent=11 // pred_region
        _
      $region48: #{_gsr_forward_impl.1} parent=11 // pred_fallthru
        _
      // Predicated region
      $region49: #{_gsr_forward_impl.1} parent=11 // pred_check
        %p554 = pneg %p292
      $region50: #{_gsr_forward_impl.1} parent=11 // pred_check_branch
        %556 = sbr.rel (%p554) target = $region52
      $region51: #{_gsr_forward_impl.1} parent=11 // pred_region
        _
      $region52: #{_gsr_forward_impl.1} parent=11 // pred_fallthru
        _
      // Predicated region
      $region53: #{_gsr_forward_impl.1} parent=11 // pred_check
        %p557 = pneg %p313
      $region54: #{_gsr_forward_impl.1} parent=11 // pred_check_branch
        %559 = sbr.rel (%p557) target = $region56
      $region55: #{_gsr_forward_impl.1} parent=11 // pred_region
        _
      $region56: #{_gsr_forward_impl.1} parent=11 // pred_fallthru
        _
      // Predicated region
      $region57: #{_gsr_forward_impl.1} parent=11 // pred_check
        %p560 = pneg %p334
      $region58: #{_gsr_forward_impl.1} parent=11 // pred_check_branch
        %562 = sbr.rel (%p560) target = $region60
      $region59: #{_gsr_forward_impl.1} parent=11 // pred_region
        _
      $region60: #{_gsr_forward_impl.1} parent=11 // pred_fallthru
        _
      // Predicated region
      $region61: #{_gsr_forward_impl.1} parent=11 // pred_check
        %p563 = pneg %p355
      $region62: #{_gsr_forward_impl.1} parent=11 // pred_check_branch
        %565 = sbr.rel (%p563) target = $region64
      $region63: #{_gsr_forward_impl.1} parent=11 // pred_region
        _
      $region64: #{_gsr_forward_impl.1} parent=11 // pred_fallthru
        _
      // Predicated region
      $region65: #{_gsr_forward_impl.1} parent=11 // pred_check
        %p566 = pneg %p376
      $region66: #{_gsr_forward_impl.1} parent=11 // pred_check_branch
        %568 = sbr.rel (%p566) target = $region68
      $region67: #{_gsr_forward_impl.1} parent=11 // pred_region
        _
      $region68: #{_gsr_forward_impl.1} parent=11 // pred_fallthru
        _
      // Predicated region
      $region69: #{_gsr_forward_impl.1} parent=11 // pred_check
        %p569 = pneg %p397
      $region70: #{_gsr_forward_impl.1} parent=11 // pred_check_branch
        %571 = sbr.rel (%p569) target = $region72
      $region71: #{_gsr_forward_impl.1} parent=11 // pred_region
        _
      $region72: #{_gsr_forward_impl.1} parent=11 // pred_fallthru
        _
      // Predicated region
      $region73: #{_gsr_forward_impl.1} parent=11 // pred_check
        %p572 = pneg %p418
      $region74: #{_gsr_forward_impl.1} parent=11 // pred_check_branch
        %574 = sbr.rel (%p572) target = $region76
      $region75: #{_gsr_forward_impl.1} parent=11 // pred_region
        _
      $region76: #{_gsr_forward_impl.1} parent=11 // pred_fallthru
        _
      // Predicated region
      $region77: #{_gsr_forward_impl.1} parent=11 // pred_check
        %p575 = pneg %p439
      $region78: #{_gsr_forward_impl.1} parent=11 // pred_check_branch
        %577 = sbr.rel (%p575) target = $region80
      $region79: #{_gsr_forward_impl.1} parent=11 // pred_region
        _
      $region80: #{_gsr_forward_impl.1} parent=11 // pred_fallthru
        _
      // Predicated region
      $region81: #{_gsr_forward_impl.1} parent=11 // pred_check
        %p578 = pneg %p460
      $region82: #{_gsr_forward_impl.1} parent=11 // pred_check_branch
        %580 = sbr.rel (%p578) target = $region84
      $region83: #{_gsr_forward_impl.1} parent=11 // pred_region
        _
      $region84: #{_gsr_forward_impl.1} parent=11 // pred_fallthru
        _
    $region12: #{_gsr_forward_impl.1} parent=5 // pred_fallthru
      _
    %p581 = scmp.lt.s32.totalorder %s30, 2
    // Predicated region
    $region85: #{_gsr_forward_impl.1} parent=5 // pred_check
      %p582 = pneg %p581
    $region86: #{_gsr_forward_impl.1} parent=5 // pred_check_branch
      %584 = sbr.rel (%p582) target = $region88
    $region87: #{_gsr_forward_impl.1} parent=5 // pred_region
      // Predicated region
      $region89: #{_gsr_forward_impl.1} parent=87 // pred_check
        %p585 = pneg %p50
      $region90: #{_gsr_forward_impl.1} parent=87 // pred_check_branch
        %587 = sbr.rel (%p585) target = $region92
      $region91: #{_gsr_forward_impl.1} parent=87 // pred_region
        %p588 = scmp.lt.s32.totalorder %s30, 1
        %s589 = scalar_select %p588, %s30, 1
        %s590 = smul.addr %s589, 16
        %s591 = smul.addr %s590, 8
        %s592 = scalar_lea.vmem %s0, %s591
      $region92: #{_gsr_forward_impl.1} parent=87 // pred_fallthru
        _
      // Predicated region
      $region93: #{_gsr_forward_impl.1} parent=87 // pred_check
        %p593 = pneg %p76
      $region94: #{_gsr_forward_impl.1} parent=87 // pred_check_branch
        %595 = sbr.rel (%p593) target = $region96
      $region95: #{_gsr_forward_impl.1} parent=87 // pred_region
        %p596 = scmp.lt.s32.totalorder %s30, 1
        %s597 = scalar_select %p596, %s30, 1
        %s598 = smul.addr %s597, 16
        %s599 = smul.addr %s598, 8
        %s600 = scalar_lea.vmem %s1, %s599
      $region96: #{_gsr_forward_impl.1} parent=87 // pred_fallthru
        _
    $region88: #{_gsr_forward_impl.1} parent=5 // pred_fallthru
      _
    %p601 = scmp.le.s32.totalorder 1, %s30
    %p602 = scmp.lt.s32.totalorder %s30, 3
    %p603 = pnand %p601, %p602
    %p604 = pneg %p603
    // Predicated region
    $region97: #{_gsr_forward_impl.1} parent=5 // pred_check
      _
    $region98: #{_gsr_forward_impl.1} parent=5 // pred_check_branch
      %606 = sbr.rel (%p603) target = $region100
    $region99: #{_gsr_forward_impl.1} parent=5 // pred_region
      %s607 = ssub.s32 %s30, 1
      %p608 = scmp.lt.s32.totalorder %s35, 1
      %s609 = scalar_select %p608, %s35, 1
      %s610 = smul.addr %s609, 16
      %s611 = smul.addr %s610, 8
      %s612 = scalar_lea.vmem %s0, %s611
      %p613 = pneg %p56
      %p614 = pneg %p53
      %p615 = scmp.lt.s32.totalorder %s35, 1
      %s616 = scalar_select %p615, %s35, 1
      %s617 = smul.addr %s616, 16
      %s618 = smul.addr %s617, 8
      %s619 = scalar_lea.vmem %s1, %s618
      %p620 = pneg %p82
      %p621 = pneg %p79
      %p622 = pneg %p103
      %p623 = pneg %p100
      %p624 = pneg %p124
      %p625 = pneg %p121
      %p626 = pneg %p145
      %p627 = pneg %p142
      %p628 = pneg %p166
      %p629 = pneg %p163
      %p630 = pneg %p187
      %p631 = pneg %p184
      %p632 = pneg %p208
      %p633 = pneg %p205
      %p634 = pneg %p229
      %p635 = pneg %p226
      %p636 = pneg %p250
      %p637 = pneg %p247
      %p638 = pneg %p271
      %p639 = pneg %p268
      %p640 = pneg %p292
      %p641 = pneg %p289
      %p642 = pneg %p313
      %p643 = pneg %p310
      %p644 = pneg %p334
      %p645 = pneg %p331
      %p646 = pneg %p355
      %p647 = pneg %p352
      %p648 = pneg %p376
      %p649 = pneg %p373
      %p650 = pneg %p397
      %p651 = pneg %p394
      %p652 = pneg %p418
      %p653 = pneg %p415
      %p654 = pneg %p439
      %p655 = pneg %p436
      %p656 = pneg %p460
      %p657 = pneg %p457
      %p658 = pneg %p486
      %p659 = pneg %p483
      %p660 = scmp.lt.s32.totalorder %s35, 1
      %s661 = scalar_select %p660, %s35, 1
      %s662 = smul.addr %s661, 16
      %s663 = smul.addr %s662, 8
      %s664 = scalar_lea.vmem %s20, %s663
      %p665 = pneg %p512
      %p666 = pneg %p509
      %p667 = scmp.lt.s32.totalorder %s35, 1
      %s668 = scalar_select %p667, %s35, 1
      %s669 = smul.addr %s668, 2
      %s670 = smul.addr %s669, 8
      %s671 = scalar_lea.vmem %s21, %s670
      %p672 = scmp.lt.s32.totalorder %s35, 1
      %s673 = scalar_select %p672, %s35, 1
      %s674 = smul.addr %s673, 16
      %s675 = smul.addr %s674, 8
      %s676 = scalar_lea.vmem %s0, %s675
      %p677 = scmp.lt.s32.totalorder %s35, 1
      %s678 = scalar_select %p677, %s35, 1
      %s679 = smul.addr %s678, 16
      %s680 = smul.addr %s679, 8
      %s681 = scalar_lea.vmem %s1, %s680
      %p682 = scmp.lt.s32.totalorder %s35, 1
      %s683 = scalar_select %p682, %s35, 1
      %s684 = smul.addr %s683, 16
      %s685 = smul.addr %s684, 8
      %s686 = scalar_lea.vmem %s20, %s685
      %p687 = scmp.lt.s32.totalorder %s35, 1
      %s688 = scalar_select %p687, %s35, 1
      %s689 = smul.addr %s688, 2
      %s690 = smul.addr %s689, 8
      %s691 = scalar_lea.vmem %s21, %s690
      %v692 = vld [vmem:[%s676] sm:$0xff]
      %v693 = vld [vmem:[%s676 + $0x8] sm:$0xff]
      %v694 = vld [vmem:[%s676 + $0x10] sm:$0xff]
      %v695 = vld [vmem:[%s676 + $0x18] sm:$0xff]
      %v696 = vld [vmem:[%s676 + $0x20] sm:$0xff]
      %v697 = vld [vmem:[%s676 + $0x28] sm:$0xff]
      %v698 = vld [vmem:[%s676 + $0x30] sm:$0xff]
      %v699 = vld [vmem:[%s676 + $0x38] sm:$0xff]
      %v700 = vld [vmem:[%s676 + $0x40] sm:$0xff]
      %v701 = vld [vmem:[%s676 + $0x48] sm:$0xff]
      %v702 = vld [vmem:[%s676 + $0x50] sm:$0xff]
      %v703 = vld [vmem:[%s676 + $0x58] sm:$0xff]
      %v704 = vld [vmem:[%s676 + $0x60] sm:$0xff]
      %v705 = vld [vmem:[%s676 + $0x68] sm:$0xff]
      %v706 = vld [vmem:[%s676 + $0x70] sm:$0xff]
      %v707 = vld [vmem:[%s676 + $0x78] sm:$0xff]
      %v708 = vld [vmem:[%s681] sm:$0xff]
      %v709 = vld [vmem:[%s681 + $0x8] sm:$0xff]
      %v710 = vld [vmem:[%s681 + $0x10] sm:$0xff]
      %v711 = vld [vmem:[%s681 + $0x18] sm:$0xff]
      %v712 = vld [vmem:[%s681 + $0x20] sm:$0xff]
      %v713 = vld [vmem:[%s681 + $0x28] sm:$0xff]
      %v714 = vld [vmem:[%s681 + $0x30] sm:$0xff]
      %v715 = vld [vmem:[%s681 + $0x38] sm:$0xff]
      %v716 = vld [vmem:[%s681 + $0x40] sm:$0xff]
      %v717 = vld [vmem:[%s681 + $0x48] sm:$0xff]
      %v718 = vld [vmem:[%s681 + $0x50] sm:$0xff]
      %v719 = vld [vmem:[%s681 + $0x58] sm:$0xff]
      %v720 = vld [vmem:[%s681 + $0x60] sm:$0xff]
      %v721 = vld [vmem:[%s681 + $0x68] sm:$0xff]
      %v722 = vld [vmem:[%s681 + $0x70] sm:$0xff]
      %v723 = vld [vmem:[%s681 + $0x78] sm:$0xff]
      %v724 = vld [vmem:[%s3] sm:$0xff]
      %v725 = vld [vmem:[%s3 + $0x8] sm:$0xff]
      %v726 = vld [vmem:[%s3 + $0x10] sm:$0xff]
      %v727 = vld [vmem:[%s3 + $0x18] sm:$0xff]
      %v728 = vld [vmem:[%s3 + $0x20] sm:$0x7]
      %vm729 = vcmask 285696
      %v731 = vsel %vm729, %v692, 0
      %v734 = vsel %vm729, %v693, 0
      %v737 = vsel %vm729, %v694, 0
      %v740 = vsel %vm729, %v695, 0
      %v743 = vsel %vm729, %v696, 0
      %v746 = vsel %vm729, %v697, 0
      %v749 = vsel %vm729, %v698, 0
      %v752 = vsel %vm729, %v699, 0
      %v755 = vsel %vm729, %v700, 0
      %v758 = vsel %vm729, %v701, 0
      %v761 = vsel %vm729, %v702, 0
      %v764 = vsel %vm729, %v703, 0
      %v767 = vsel %vm729, %v704, 0
      %v770 = vsel %vm729, %v705, 0
      %v773 = vsel %vm729, %v706, 0
      %v776 = vsel %vm729, %v707, 0
      %vm778 = vcmask 1042432
      %v780 = vsel %vm778, %v728, 0
      %782 = vmatpush.msra.mxu0 0.0
      %783 = vmatpush.msra.mxu0 0.0
      %784 = vmatpush.msra.mxu0 0.0
      %785 = vmatpush.msra.mxu0 0.0
      %786 = vmatpush.msra.mxu0 0.0
      %787 = vmatpush.msra.mxu0 0.0
      %788 = vmatpush.msra.mxu0 0.0
      %789 = vmatpush.msra.mxu0 0.0
      %790 = vmatpush.msra.mxu0 0.0
      %791 = vmatpush.msra.mxu0 0.0
      %792 = vmatpush.msra.mxu0 0.0
      %793 = vmatpush.msra.mxu0 %v780
      %794 = vmatpush.msra.mxu0 %v727
      %795 = vmatpush.msra.mxu0 %v726
      %796 = vmatpush.msra.mxu0 %v725
      %797 = vmatpush.msra.mxu0 %v724
      %798 = vmatmul.f32.gmra.mxu0 %v731
      %v799 = vpop.f32.mrf.mxu0
      %v800 = vadd.f32 0.0, %v799
      %801 = vmatmul.f32.gmra.mxu0 %v734
      %v802 = vpop.f32.mrf.mxu0
      %v803 = vadd.f32 0.0, %v802
      %804 = vmatmul.f32.gmra.mxu0 %v737
      %v805 = vpop.f32.mrf.mxu0
      %v806 = vadd.f32 0.0, %v805
      %807 = vmatmul.f32.gmra.mxu0 %v740
      %v808 = vpop.f32.mrf.mxu0
      %v809 = vadd.f32 0.0, %v808
      %810 = vmatmul.f32.gmra.mxu0 %v743
      %v811 = vpop.f32.mrf.mxu0
      %v812 = vadd.f32 0.0, %v811
      %813 = vmatmul.f32.gmra.mxu0 %v746
      %v814 = vpop.f32.mrf.mxu0
      %v815 = vadd.f32 0.0, %v814
      %816 = vmatmul.f32.gmra.mxu0 %v749
      %v817 = vpop.f32.mrf.mxu0
      %v818 = vadd.f32 0.0, %v817
      %819 = vmatmul.f32.gmra.mxu0 %v752
      %v820 = vpop.f32.mrf.mxu0
      %v821 = vadd.f32 0.0, %v820
      %822 = vmatmul.f32.gmra.mxu0 %v755
      %v823 = vpop.f32.mrf.mxu0
      %v824 = vadd.f32 0.0, %v823
      %825 = vmatmul.f32.gmra.mxu0 %v758
      %v826 = vpop.f32.mrf.mxu0
      %v827 = vadd.f32 0.0, %v826
      %828 = vmatmul.f32.gmra.mxu0 %v761
      %v829 = vpop.f32.mrf.mxu0
      %v830 = vadd.f32 0.0, %v829
      %831 = vmatmul.f32.gmra.mxu0 %v764
      %v832 = vpop.f32.mrf.mxu0
      %v833 = vadd.f32 0.0, %v832
      %834 = vmatmul.f32.gmra.mxu0 %v767
      %v835 = vpop.f32.mrf.mxu0
      %v836 = vadd.f32 0.0, %v835
      %837 = vmatmul.f32.gmra.mxu0 %v770
      %v838 = vpop.f32.mrf.mxu0
      %v839 = vadd.f32 0.0, %v838
      %840 = vmatmul.f32.gmra.mxu0 %v773
      %v841 = vpop.f32.mrf.mxu0
      %v842 = vadd.f32 0.0, %v841
      %843 = vmatmul.f32.gmra.mxu0 %v776
      %v844 = vpop.f32.mrf.mxu0
      %v845 = vadd.f32 0.0, %v844
      %846 = vdwg.mxu0
      %v847 = vld [vmem:[%s4] sm:$0xff]
      %v848 = vld [vmem:[%s4 + $0x8] sm:$0xff]
      %v849 = vld [vmem:[%s4 + $0x10] sm:$0xff]
      %v850 = vld [vmem:[%s4 + $0x18] sm:$0xf]
      %vm851 = vcmask 228352
      %v853 = vsel %vm851, %v800, 0
      %v856 = vsel %vm851, %v803, 0
      %v859 = vsel %vm851, %v806, 0
      %v862 = vsel %vm851, %v809, 0
      %v865 = vsel %vm851, %v812, 0
      %v868 = vsel %vm851, %v815, 0
      %v871 = vsel %vm851, %v818, 0
      %v874 = vsel %vm851, %v821, 0
      %v877 = vsel %vm851, %v824, 0
      %v880 = vsel %vm851, %v827, 0
      %v883 = vsel %vm851, %v830, 0
      %v886 = vsel %vm851, %v833, 0
      %v889 = vsel %vm851, %v836, 0
      %v892 = vsel %vm851, %v839, 0
      %v895 = vsel %vm851, %v842, 0
      %v898 = vsel %vm851, %v845, 0
      %vm900 = vcmask 1043456
      %v902 = vsel %vm900, %v850, 0
      %904 = vmatpush.msra.mxu0 0.0
      %905 = vmatpush.msra.mxu0 0.0
      %906 = vmatpush.msra.mxu0 0.0
      %907 = vmatpush.msra.mxu0 0.0
      %908 = vmatpush.msra.mxu0 0.0
      %909 = vmatpush.msra.mxu0 0.0
      %910 = vmatpush.msra.mxu0 0.0
      %911 = vmatpush.msra.mxu0 0.0
      %912 = vmatpush.msra.mxu0 0.0
      %913 = vmatpush.msra.mxu0 0.0
      %914 = vmatpush.msra.mxu0 0.0
      %915 = vmatpush.msra.mxu0 0.0
      %916 = vmatpush.msra.mxu0 %v902
      %917 = vmatpush.msra.mxu0 %v849
      %918 = vmatpush.msra.mxu0 %v848
      %919 = vmatpush.msra.mxu0 %v847
      %920 = vmatmul.f32.gmra.mxu0 %v853
      %v921 = vpop.f32.mrf.mxu0
      %v922 = vadd.f32 0.0, %v921
      %923 = vmatmul.f32.gmra.mxu0 %v856
      %v924 = vpop.f32.mrf.mxu0
      %v925 = vadd.f32 0.0, %v924
      %926 = vmatmul.f32.gmra.mxu0 %v859
      %v927 = vpop.f32.mrf.mxu0
      %v928 = vadd.f32 0.0, %v927
      %929 = vmatmul.f32.gmra.mxu0 %v862
      %v930 = vpop.f32.mrf.mxu0
      %v931 = vadd.f32 0.0, %v930
      %932 = vmatmul.f32.gmra.mxu0 %v865
      %v933 = vpop.f32.mrf.mxu0
      %v934 = vadd.f32 0.0, %v933
      %935 = vmatmul.f32.gmra.mxu0 %v868
      %v936 = vpop.f32.mrf.mxu0
      %v937 = vadd.f32 0.0, %v936
      %938 = vmatmul.f32.gmra.mxu0 %v871
      %v939 = vpop.f32.mrf.mxu0
      %v940 = vadd.f32 0.0, %v939
      %941 = vmatmul.f32.gmra.mxu0 %v874
      %v942 = vpop.f32.mrf.mxu0
      %v943 = vadd.f32 0.0, %v942
      %944 = vmatmul.f32.gmra.mxu0 %v877
      %v945 = vpop.f32.mrf.mxu0
      %v946 = vadd.f32 0.0, %v945
      %947 = vmatmul.f32.gmra.mxu0 %v880
      %v948 = vpop.f32.mrf.mxu0
      %v949 = vadd.f32 0.0, %v948
      %950 = vmatmul.f32.gmra.mxu0 %v883
      %v951 = vpop.f32.mrf.mxu0
      %v952 = vadd.f32 0.0, %v951
      %953 = vmatmul.f32.gmra.mxu0 %v886
      %v954 = vpop.f32.mrf.mxu0
      %v955 = vadd.f32 0.0, %v954
      %956 = vmatmul.f32.gmra.mxu0 %v889
      %v957 = vpop.f32.mrf.mxu0
      %v958 = vadd.f32 0.0, %v957
      %959 = vmatmul.f32.gmra.mxu0 %v892
      %v960 = vpop.f32.mrf.mxu0
      %v961 = vadd.f32 0.0, %v960
      %962 = vmatmul.f32.gmra.mxu0 %v895
      %v963 = vpop.f32.mrf.mxu0
      %v964 = vadd.f32 0.0, %v963
      %965 = vmatmul.f32.gmra.mxu0 %v898
      %v966 = vpop.f32.mrf.mxu0
      %v967 = vadd.f32 0.0, %v966
      %968 = vdwg.mxu0
      %985 = vrot.lane.b32.xlu0 %v922, 127
      %v986 = vpop.permute.xlu0 %985
      %987 = vrot.lane.b32.xlu0 %v925, 127
      %v988 = vpop.permute.xlu0 %987
      %989 = vrot.lane.b32.xlu0 %v928, 127
      %v990 = vpop.permute.xlu0 %989
      %991 = vrot.lane.b32.xlu0 %v931, 127
      %v992 = vpop.permute.xlu0 %991
      %993 = vrot.lane.b32.xlu0 %v934, 127
      %v994 = vpop.permute.xlu0 %993
      %995 = vrot.lane.b32.xlu0 %v937, 127
      %v996 = vpop.permute.xlu0 %995
      %997 = vrot.lane.b32.xlu0 %v940, 127
      %v998 = vpop.permute.xlu0 %997
      %999 = vrot.lane.b32.xlu0 %v943, 127
      %v1000 = vpop.permute.xlu0 %999
      %1001 = vrot.lane.b32.xlu0 %v946, 127
      %v1002 = vpop.permute.xlu0 %1001
      %1003 = vrot.lane.b32.xlu0 %v949, 127
      %v1004 = vpop.permute.xlu0 %1003
      %1005 = vrot.lane.b32.xlu0 %v952, 127
      %v1006 = vpop.permute.xlu0 %1005
      %1007 = vrot.lane.b32.xlu0 %v955, 127
      %v1008 = vpop.permute.xlu0 %1007
      %1009 = vrot.lane.b32.xlu0 %v958, 127
      %v1010 = vpop.permute.xlu0 %1009
      %1011 = vrot.lane.b32.xlu0 %v961, 127
      %v1012 = vpop.permute.xlu0 %1011
      %1013 = vrot.lane.b32.xlu0 %v964, 127
      %v1014 = vpop.permute.xlu0 %1013
      %1015 = vrot.lane.b32.xlu0 %v967, 127
      %v1016 = vpop.permute.xlu0 %1015
      %1033 = vxpose.xlu0.b32.start [1/16] %v986, 128
      %1034 = vxpose.xlu0.b32.cont [2/16] %v988, 128
      %1035 = vxpose.xlu0.b32.cont [3/16] %v990, 128
      %1036 = vxpose.xlu0.b32.cont [4/16] %v992, 128
      %1037 = vxpose.xlu0.b32.cont [5/16] %v994, 128
      %1038 = vxpose.xlu0.b32.cont [6/16] %v996, 128
      %1039 = vxpose.xlu0.b32.cont [7/16] %v998, 128
      %1040 = vxpose.xlu0.b32.cont [8/16] %v1000, 128
      %1041 = vxpose.xlu0.b32.cont [9/16] %v1002, 128
      %1042 = vxpose.xlu0.b32.cont [10/16] %v1004, 128
      %1043 = vxpose.xlu0.b32.cont [11/16] %v1006, 128
      %1044 = vxpose.xlu0.b32.cont [12/16] %v1008, 128
      %1045 = vxpose.xlu0.b32.cont [13/16] %v1010, 128
      %1046 = vxpose.xlu0.b32.cont [14/16] %v1012, 128
      %1047 = vxpose.xlu0.b32.cont [15/16] %v1014, 128
      %1048 = vxpose.xlu0.b32.end [16/16] %v1016, 128
      %v1049 = vpop.trf.xlu0
      %v1050 = vpop.trf.xlu0
      %v1051 = vpop.trf.xlu0
      %v1052 = vpop.trf.xlu0
      %v1053 = vpop.trf.xlu0
      %v1054 = vpop.trf.xlu0
      %v1055 = vpop.trf.xlu0
      %v1056 = vpop.trf.xlu0
      %v1057 = vpop.trf.xlu0
      %v1058 = vpop.trf.xlu0
      %v1059 = vpop.trf.xlu0
      %v1060 = vpop.trf.xlu0
      %v1061 = vpop.trf.xlu0
      %v1062 = vpop.trf.xlu0
      %v1063 = vpop.trf.xlu0
      %v1064 = vpop.trf.xlu0
      %1065 = vset.pattern.permute.xlu0 0
      %1066 = vperm.xlu0 %1065, %v922
      %v1067 = vpop.permute.xlu0 %1066
      %1069 = vset.pattern.permute.xlu0 0
      %1070 = vperm.xlu0 %1069, %v925
      %v1071 = vpop.permute.xlu0 %1070
      %1073 = vset.pattern.permute.xlu0 0
      %1074 = vperm.xlu0 %1073, %v928
      %v1075 = vpop.permute.xlu0 %1074
      %1077 = vset.pattern.permute.xlu0 0
      %1078 = vperm.xlu0 %1077, %v931
      %v1079 = vpop.permute.xlu0 %1078
      %1081 = vset.pattern.permute.xlu0 0
      %1082 = vperm.xlu0 %1081, %v934
      %v1083 = vpop.permute.xlu0 %1082
      %1085 = vset.pattern.permute.xlu0 0
      %1086 = vperm.xlu0 %1085, %v937
      %v1087 = vpop.permute.xlu0 %1086
      %1089 = vset.pattern.permute.xlu0 0
      %1090 = vperm.xlu0 %1089, %v940
      %v1091 = vpop.permute.xlu0 %1090
      %1093 = vset.pattern.permute.xlu0 0
      %1094 = vperm.xlu0 %1093, %v943
      %v1095 = vpop.permute.xlu0 %1094
      %1097 = vset.pattern.permute.xlu0 0
      %1098 = vperm.xlu0 %1097, %v946
      %v1099 = vpop.permute.xlu0 %1098
      %1101 = vset.pattern.permute.xlu0 0
      %1102 = vperm.xlu0 %1101, %v949
      %v1103 = vpop.permute.xlu0 %1102
      %1105 = vset.pattern.permute.xlu0 0
      %1106 = vperm.xlu0 %1105, %v952
      %v1107 = vpop.permute.xlu0 %1106
      %1109 = vset.pattern.permute.xlu0 0
      %1110 = vperm.xlu0 %1109, %v955
      %v1111 = vpop.permute.xlu0 %1110
      %1113 = vset.pattern.permute.xlu0 0
      %1114 = vperm.xlu0 %1113, %v958
      %v1115 = vpop.permute.xlu0 %1114
      %1117 = vset.pattern.permute.xlu0 0
      %1118 = vperm.xlu0 %1117, %v961
      %v1119 = vpop.permute.xlu0 %1118
      %1121 = vset.pattern.permute.xlu0 0
      %1122 = vperm.xlu0 %1121, %v964
      %v1123 = vpop.permute.xlu0 %1122
      %1125 = vset.pattern.permute.xlu0 0
      %1126 = vperm.xlu0 %1125, %v967
      %v1127 = vpop.permute.xlu0 %1126
      %v1129 = vperm.slane %v1049, 0
      %v1130 = vadd.f32 %v1067, %v1129
      %v1131 = vadd.f32 %v1071, %v1129
      %v1132 = vadd.f32 %v1075, %v1129
      %v1133 = vadd.f32 %v1079, %v1129
      %v1134 = vadd.f32 %v1083, %v1129
      %v1135 = vadd.f32 %v1087, %v1129
      %v1136 = vadd.f32 %v1091, %v1129
      %v1137 = vadd.f32 %v1095, %v1129
      %v1138 = vadd.f32 %v1099, %v1129
      %v1139 = vadd.f32 %v1103, %v1129
      %v1140 = vadd.f32 %v1107, %v1129
      %v1141 = vadd.f32 %v1111, %v1129
      %v1142 = vadd.f32 %v1115, %v1129
      %v1143 = vadd.f32 %v1119, %v1129
      %v1144 = vadd.f32 %v1123, %v1129
      %v1145 = vadd.f32 %v1127, %v1129
      %vm1146 = vcmp.gt.f32.partialorder %v1130, 0.0
      %vm1147 = vcmp.gt.f32.partialorder %v1131, 0.0
      %vm1148 = vcmp.gt.f32.partialorder %v1132, 0.0
      %vm1149 = vcmp.gt.f32.partialorder %v1133, 0.0
      %vm1150 = vcmp.gt.f32.partialorder %v1134, 0.0
      %vm1151 = vcmp.gt.f32.partialorder %v1135, 0.0
      %vm1152 = vcmp.gt.f32.partialorder %v1136, 0.0
      %vm1153 = vcmp.gt.f32.partialorder %v1137, 0.0
      %vm1154 = vcmp.gt.f32.partialorder %v1138, 0.0
      %vm1155 = vcmp.gt.f32.partialorder %v1139, 0.0
      %vm1156 = vcmp.gt.f32.partialorder %v1140, 0.0
      %vm1157 = vcmp.gt.f32.partialorder %v1141, 0.0
      %vm1158 = vcmp.gt.f32.partialorder %v1142, 0.0
      %vm1159 = vcmp.gt.f32.partialorder %v1143, 0.0
      %vm1160 = vcmp.gt.f32.partialorder %v1144, 0.0
      %vm1161 = vcmp.gt.f32.partialorder %v1145, 0.0
      %v1162 = vmul.f32 %v1130, 0.2
      %v1163 = vmul.f32 %v1131, 0.2
      %v1164 = vmul.f32 %v1132, 0.2
      %v1165 = vmul.f32 %v1133, 0.2
      %v1166 = vmul.f32 %v1134, 0.2
      %v1167 = vmul.f32 %v1135, 0.2
      %v1168 = vmul.f32 %v1136, 0.2
      %v1169 = vmul.f32 %v1137, 0.2
      %v1170 = vmul.f32 %v1138, 0.2
      %v1171 = vmul.f32 %v1139, 0.2
      %v1172 = vmul.f32 %v1140, 0.2
      %v1173 = vmul.f32 %v1141, 0.2
      %v1174 = vmul.f32 %v1142, 0.2
      %v1175 = vmul.f32 %v1143, 0.2
      %v1176 = vmul.f32 %v1144, 0.2
      %v1177 = vmul.f32 %v1145, 0.2
      %v1178 = vsel %vm1146, %v1130, %v1162
      %v1179 = vsel %vm1147, %v1131, %v1163
      %v1180 = vsel %vm1148, %v1132, %v1164
      %v1181 = vsel %vm1149, %v1133, %v1165
      %v1182 = vsel %vm1150, %v1134, %v1166
      %v1183 = vsel %vm1151, %v1135, %v1167
      %v1184 = vsel %vm1152, %v1136, %v1168
      %v1185 = vsel %vm1153, %v1137, %v1169
      %v1186 = vsel %vm1154, %v1138, %v1170
      %v1187 = vsel %vm1155, %v1139, %v1171
      %v1188 = vsel %vm1156, %v1140, %v1172
      %v1189 = vsel %vm1157, %v1141, %v1173
      %v1190 = vsel %vm1158, %v1142, %v1174
      %v1191 = vsel %vm1159, %v1143, %v1175
      %v1192 = vsel %vm1160, %v1144, %v1176
      %v1193 = vsel %vm1161, %v1145, %v1177
      %vm1194 = vcmp.gt.f32.partialorder %v708, 0.0
      %vm1195 = vcmp.gt.f32.partialorder %v709, 0.0
      %vm1196 = vcmp.gt.f32.partialorder %v710, 0.0
      %vm1197 = vcmp.gt.f32.partialorder %v711, 0.0
      %vm1198 = vcmp.gt.f32.partialorder %v712, 0.0
      %vm1199 = vcmp.gt.f32.partialorder %v713, 0.0
      %vm1200 = vcmp.gt.f32.partialorder %v714, 0.0
      %vm1201 = vcmp.gt.f32.partialorder %v715, 0.0
      %vm1202 = vcmp.gt.f32.partialorder %v716, 0.0
      %vm1203 = vcmp.gt.f32.partialorder %v717, 0.0
      %vm1204 = vcmp.gt.f32.partialorder %v718, 0.0
      %vm1205 = vcmp.gt.f32.partialorder %v719, 0.0
      %vm1206 = vcmp.gt.f32.partialorder %v720, 0.0
      %vm1207 = vcmp.gt.f32.partialorder %v721, 0.0
      %vm1208 = vcmp.gt.f32.partialorder %v722, 0.0
      %vm1209 = vcmp.gt.f32.partialorder %v723, 0.0
      %v1210 = vsel %vm1194, %v1178, -1e+30
      %v1211 = vsel %vm1195, %v1179, -1e+30
      %v1212 = vsel %vm1196, %v1180, -1e+30
      %v1213 = vsel %vm1197, %v1181, -1e+30
      %v1214 = vsel %vm1198, %v1182, -1e+30
      %v1215 = vsel %vm1199, %v1183, -1e+30
      %v1216 = vsel %vm1200, %v1184, -1e+30
      %v1217 = vsel %vm1201, %v1185, -1e+30
      %v1218 = vsel %vm1202, %v1186, -1e+30
      %v1219 = vsel %vm1203, %v1187, -1e+30
      %v1220 = vsel %vm1204, %v1188, -1e+30
      %v1221 = vsel %vm1205, %v1189, -1e+30
      %v1222 = vsel %vm1206, %v1190, -1e+30
      %v1223 = vsel %vm1207, %v1191, -1e+30
      %v1224 = vsel %vm1208, %v1192, -1e+30
      %v1225 = vsel %vm1209, %v1193, -1e+30
      %1226 = vmax.xlane.f32.xlu0 %v1210
      %v1227 = vpop.xlane.xlu0 %1226
      %1228 = vmax.xlane.f32.xlu0 %v1211
      %v1229 = vpop.xlane.xlu0 %1228
      %1230 = vmax.xlane.f32.xlu0 %v1212
      %v1231 = vpop.xlane.xlu0 %1230
      %1232 = vmax.xlane.f32.xlu0 %v1213
      %v1233 = vpop.xlane.xlu0 %1232
      %1234 = vmax.xlane.f32.xlu0 %v1214
      %v1235 = vpop.xlane.xlu0 %1234
      %1236 = vmax.xlane.f32.xlu0 %v1215
      %v1237 = vpop.xlane.xlu0 %1236
      %1238 = vmax.xlane.f32.xlu0 %v1216
      %v1239 = vpop.xlane.xlu0 %1238
      %1240 = vmax.xlane.f32.xlu0 %v1217
      %v1241 = vpop.xlane.xlu0 %1240
      %1242 = vmax.xlane.f32.xlu0 %v1218
      %v1243 = vpop.xlane.xlu0 %1242
      %1244 = vmax.xlane.f32.xlu0 %v1219
      %v1245 = vpop.xlane.xlu0 %1244
      %1246 = vmax.xlane.f32.xlu0 %v1220
      %v1247 = vpop.xlane.xlu0 %1246
      %1248 = vmax.xlane.f32.xlu0 %v1221
      %v1249 = vpop.xlane.xlu0 %1248
      %1250 = vmax.xlane.f32.xlu0 %v1222
      %v1251 = vpop.xlane.xlu0 %1250
      %1252 = vmax.xlane.f32.xlu0 %v1223
      %v1253 = vpop.xlane.xlu0 %1252
      %1254 = vmax.xlane.f32.xlu0 %v1224
      %v1255 = vpop.xlane.xlu0 %1254
      %1256 = vmax.xlane.f32.xlu0 %v1225
      %v1257 = vpop.xlane.xlu0 %1256
      %v1258 = vsub.f32 %v1210, %v1227
      %v1259 = vsub.f32 %v1211, %v1229
      %v1260 = vsub.f32 %v1212, %v1231
      %v1261 = vsub.f32 %v1213, %v1233
      %v1262 = vsub.f32 %v1214, %v1235
      %v1263 = vsub.f32 %v1215, %v1237
      %v1264 = vsub.f32 %v1216, %v1239
      %v1265 = vsub.f32 %v1217, %v1241
      %v1266 = vsub.f32 %v1218, %v1243
      %v1267 = vsub.f32 %v1219, %v1245
      %v1268 = vsub.f32 %v1220, %v1247
      %v1269 = vsub.f32 %v1221, %v1249
      %v1270 = vsub.f32 %v1222, %v1251
      %v1271 = vsub.f32 %v1223, %v1253
      %v1272 = vsub.f32 %v1224, %v1255
      %v1273 = vsub.f32 %v1225, %v1257
      %v1274 = vmul.f32 %v1258, 1.442695
      %v1275 = vpow.pop %v1274
      %v1276 = vmul.f32 %v1259, 1.442695
      %v1277 = vpow.pop %v1276
      %v1278 = vmul.f32 %v1260, 1.442695
      %v1279 = vpow.pop %v1278
      %v1280 = vmul.f32 %v1261, 1.442695
      %v1281 = vpow.pop %v1280
      %v1282 = vmul.f32 %v1262, 1.442695
      %v1283 = vpow.pop %v1282
      %v1284 = vmul.f32 %v1263, 1.442695
      %v1285 = vpow.pop %v1284
      %v1286 = vmul.f32 %v1264, 1.442695
      %v1287 = vpow.pop %v1286
      %v1288 = vmul.f32 %v1265, 1.442695
      %v1289 = vpow.pop %v1288
      %v1290 = vmul.f32 %v1266, 1.442695
      %v1291 = vpow.pop %v1290
      %v1292 = vmul.f32 %v1267, 1.442695
      %v1293 = vpow.pop %v1292
      %v1294 = vmul.f32 %v1268, 1.442695
      %v1295 = vpow.pop %v1294
      %v1296 = vmul.f32 %v1269, 1.442695
      %v1297 = vpow.pop %v1296
      %v1298 = vmul.f32 %v1270, 1.442695
      %v1299 = vpow.pop %v1298
      %v1300 = vmul.f32 %v1271, 1.442695
      %v1301 = vpow.pop %v1300
      %v1302 = vmul.f32 %v1272, 1.442695
      %v1303 = vpow.pop %v1302
      %v1304 = vmul.f32 %v1273, 1.442695
      %v1305 = vpow.pop %v1304
      %v1306 = vmul.f32 %v1275, %v708
      %v1307 = vmul.f32 %v1277, %v709
      %v1308 = vmul.f32 %v1279, %v710
      %v1309 = vmul.f32 %v1281, %v711
      %v1310 = vmul.f32 %v1283, %v712
      %v1311 = vmul.f32 %v1285, %v713
      %v1312 = vmul.f32 %v1287, %v714
      %v1313 = vmul.f32 %v1289, %v715
      %v1314 = vmul.f32 %v1291, %v716
      %v1315 = vmul.f32 %v1293, %v717
      %v1316 = vmul.f32 %v1295, %v718
      %v1317 = vmul.f32 %v1297, %v719
      %v1318 = vmul.f32 %v1299, %v720
      %v1319 = vmul.f32 %v1301, %v721
      %v1320 = vmul.f32 %v1303, %v722
      %v1321 = vmul.f32 %v1305, %v723
      %1322 = vadd.xlane.f32.xlu0 %v1306
      %v1323 = vpop.xlane.xlu0 %1322
      %1324 = vadd.xlane.f32.xlu0 %v1307
      %v1325 = vpop.xlane.xlu0 %1324
      %1326 = vadd.xlane.f32.xlu0 %v1308
      %v1327 = vpop.xlane.xlu0 %1326
      %1328 = vadd.xlane.f32.xlu0 %v1309
      %v1329 = vpop.xlane.xlu0 %1328
      %1330 = vadd.xlane.f32.xlu0 %v1310
      %v1331 = vpop.xlane.xlu0 %1330
      %1332 = vadd.xlane.f32.xlu0 %v1311
      %v1333 = vpop.xlane.xlu0 %1332
      %1334 = vadd.xlane.f32.xlu0 %v1312
      %v1335 = vpop.xlane.xlu0 %1334
      %1336 = vadd.xlane.f32.xlu0 %v1313
      %v1337 = vpop.xlane.xlu0 %1336
      %1338 = vadd.xlane.f32.xlu0 %v1314
      %v1339 = vpop.xlane.xlu0 %1338
      %1340 = vadd.xlane.f32.xlu0 %v1315
      %v1341 = vpop.xlane.xlu0 %1340
      %1342 = vadd.xlane.f32.xlu0 %v1316
      %v1343 = vpop.xlane.xlu0 %1342
      %1344 = vadd.xlane.f32.xlu0 %v1317
      %v1345 = vpop.xlane.xlu0 %1344
      %1346 = vadd.xlane.f32.xlu0 %v1318
      %v1347 = vpop.xlane.xlu0 %1346
      %1348 = vadd.xlane.f32.xlu0 %v1319
      %v1349 = vpop.xlane.xlu0 %1348
      %1350 = vadd.xlane.f32.xlu0 %v1320
      %v1351 = vpop.xlane.xlu0 %1350
      %1352 = vadd.xlane.f32.xlu0 %v1321
      %v1353 = vpop.xlane.xlu0 %1352
      %v1354 = vrcp.pop %v1323
      %v1355 = vrcp.pop %v1325
      %v1356 = vrcp.pop %v1327
      %v1357 = vrcp.pop %v1329
      %v1358 = vrcp.pop %v1331
      %v1359 = vrcp.pop %v1333
      %v1360 = vrcp.pop %v1335
      %v1361 = vrcp.pop %v1337
      %v1362 = vrcp.pop %v1339
      %v1363 = vrcp.pop %v1341
      %v1364 = vrcp.pop %v1343
      %v1365 = vrcp.pop %v1345
      %v1366 = vrcp.pop %v1347
      %v1367 = vrcp.pop %v1349
      %v1368 = vrcp.pop %v1351
      %v1369 = vrcp.pop %v1353
      %v1370 = vmul.f32 %v1306, %v1354
      %v1371 = vmul.f32 %v1307, %v1355
      %v1372 = vmul.f32 %v1308, %v1356
      %v1373 = vmul.f32 %v1309, %v1357
      %v1374 = vmul.f32 %v1310, %v1358
      %v1375 = vmul.f32 %v1311, %v1359
      %v1376 = vmul.f32 %v1312, %v1360
      %v1377 = vmul.f32 %v1313, %v1361
      %v1378 = vmul.f32 %v1314, %v1362
      %v1379 = vmul.f32 %v1315, %v1363
      %v1380 = vmul.f32 %v1316, %v1364
      %v1381 = vmul.f32 %v1317, %v1365
      %v1382 = vmul.f32 %v1318, %v1366
      %v1383 = vmul.f32 %v1319, %v1367
      %v1384 = vmul.f32 %v1320, %v1368
      %v1385 = vmul.f32 %v1321, %v1369
      %v1386 = vld [vmem:[%s5] sm:$0x1]
      %v1388 = vperm.slane %v1386, 0
      %1390 = vmatpush.msra.mxu0 %v845
      %1391 = vmatpush.msra.mxu0 %v842
      %1392 = vmatpush.msra.mxu0 %v839
      %1393 = vmatpush.msra.mxu0 %v836
      %1394 = vmatpush.msra.mxu0 %v833
      %1395 = vmatpush.msra.mxu0 %v830
      %1396 = vmatpush.msra.mxu0 %v827
      %1397 = vmatpush.msra.mxu0 %v824
      %1398 = vmatpush.msra.mxu0 %v821
      %1399 = vmatpush.msra.mxu0 %v818
      %1400 = vmatpush.msra.mxu0 %v815
      %1401 = vmatpush.msra.mxu0 %v812
      %1402 = vmatpush.msra.mxu0 %v809
      %1403 = vmatpush.msra.mxu0 %v806
      %1404 = vmatpush.msra.mxu0 %v803
      %1405 = vmatpush.msra.mxu0 %v800
      %1406 = vmatmul.f32.gmra.mxu0 %v1370
      %v1407 = vpop.f32.mrf.mxu0
      %v1408 = vadd.f32 %v1388, %v1407
      %1409 = vmatmul.f32.gmra.mxu0 %v1371
      %v1410 = vpop.f32.mrf.mxu0
      %v1411 = vadd.f32 %v1388, %v1410
      %1412 = vmatmul.f32.gmra.mxu0 %v1372
      %v1413 = vpop.f32.mrf.mxu0
      %v1414 = vadd.f32 %v1388, %v1413
      %1415 = vmatmul.f32.gmra.mxu0 %v1373
      %v1416 = vpop.f32.mrf.mxu0
      %v1417 = vadd.f32 %v1388, %v1416
      %1418 = vmatmul.f32.gmra.mxu0 %v1374
      %v1419 = vpop.f32.mrf.mxu0
      %v1420 = vadd.f32 %v1388, %v1419
      %1421 = vmatmul.f32.gmra.mxu0 %v1375
      %v1422 = vpop.f32.mrf.mxu0
      %v1423 = vadd.f32 %v1388, %v1422
      %1424 = vmatmul.f32.gmra.mxu0 %v1376
      %v1425 = vpop.f32.mrf.mxu0
      %v1426 = vadd.f32 %v1388, %v1425
      %1427 = vmatmul.f32.gmra.mxu0 %v1377
      %v1428 = vpop.f32.mrf.mxu0
      %v1429 = vadd.f32 %v1388, %v1428
      %1430 = vmatmul.f32.gmra.mxu0 %v1378
      %v1431 = vpop.f32.mrf.mxu0
      %v1432 = vadd.f32 %v1388, %v1431
      %1433 = vmatmul.f32.gmra.mxu0 %v1379
      %v1434 = vpop.f32.mrf.mxu0
      %v1435 = vadd.f32 %v1388, %v1434
      %1436 = vmatmul.f32.gmra.mxu0 %v1380
      %v1437 = vpop.f32.mrf.mxu0
      %v1438 = vadd.f32 %v1388, %v1437
      %1439 = vmatmul.f32.gmra.mxu0 %v1381
      %v1440 = vpop.f32.mrf.mxu0
      %v1441 = vadd.f32 %v1388, %v1440
      %1442 = vmatmul.f32.gmra.mxu0 %v1382
      %v1443 = vpop.f32.mrf.mxu0
      %v1444 = vadd.f32 %v1388, %v1443
      %1445 = vmatmul.f32.gmra.mxu0 %v1383
      %v1446 = vpop.f32.mrf.mxu0
      %v1447 = vadd.f32 %v1388, %v1446
      %1448 = vmatmul.f32.gmra.mxu0 %v1384
      %v1449 = vpop.f32.mrf.mxu0
      %v1450 = vadd.f32 %v1388, %v1449
      %1451 = vmatmul.f32.gmra.mxu0 %v1385
      %v1452 = vpop.f32.mrf.mxu0
      %v1453 = vadd.f32 %v1388, %v1452
      %1454 = vdwg.mxu0
      %v1455 = vtanh.pop %v1408
      %v1456 = vtanh.pop %v1411
      %v1457 = vtanh.pop %v1414
      %v1458 = vtanh.pop %v1417
      %v1459 = vtanh.pop %v1420
      %v1460 = vtanh.pop %v1423
      %v1461 = vtanh.pop %v1426
      %v1462 = vtanh.pop %v1429
      %v1463 = vtanh.pop %v1432
      %v1464 = vtanh.pop %v1435
      %v1465 = vtanh.pop %v1438
      %v1466 = vtanh.pop %v1441
      %v1467 = vtanh.pop %v1444
      %v1468 = vtanh.pop %v1447
      %v1469 = vtanh.pop %v1450
      %v1470 = vtanh.pop %v1453
      %v1471 = vld [vmem:[%s6] sm:$0xff]
      %v1472 = vld [vmem:[%s6 + $0x8] sm:$0xff]
      %v1473 = vld [vmem:[%s6 + $0x10] sm:$0xff]
      %v1474 = vld [vmem:[%s6 + $0x18] sm:$0xf]
      %v1476 = vsel %vm851, %v1455, 0
      %v1479 = vsel %vm851, %v1456, 0
      %v1482 = vsel %vm851, %v1457, 0
      %v1485 = vsel %vm851, %v1458, 0
      %v1488 = vsel %vm851, %v1459, 0
      %v1491 = vsel %vm851, %v1460, 0
      %v1494 = vsel %vm851, %v1461, 0
      %v1497 = vsel %vm851, %v1462, 0
      %v1500 = vsel %vm851, %v1463, 0
      %v1503 = vsel %vm851, %v1464, 0
      %v1506 = vsel %vm851, %v1465, 0
      %v1509 = vsel %vm851, %v1466, 0
      %v1512 = vsel %vm851, %v1467, 0
      %v1515 = vsel %vm851, %v1468, 0
      %v1518 = vsel %vm851, %v1469, 0
      %v1521 = vsel %vm851, %v1470, 0
      %v1524 = vsel %vm900, %v1474, 0
      %1526 = vmatpush.msra.mxu0 0.0
      %1527 = vmatpush.msra.mxu0 0.0
      %1528 = vmatpush.msra.mxu0 0.0
      %1529 = vmatpush.msra.mxu0 0.0
      %1530 = vmatpush.msra.mxu0 0.0
      %1531 = vmatpush.msra.mxu0 0.0
      %1532 = vmatpush.msra.mxu0 0.0
      %1533 = vmatpush.msra.mxu0 0.0
      %1534 = vmatpush.msra.mxu0 0.0
      %1535 = vmatpush.msra.mxu0 0.0
      %1536 = vmatpush.msra.mxu0 0.0
      %1537 = vmatpush.msra.mxu0 0.0
      %1538 = vmatpush.msra.mxu0 %v1524
      %1539 = vmatpush.msra.mxu0 %v1473
      %1540 = vmatpush.msra.mxu0 %v1472
      %1541 = vmatpush.msra.mxu0 %v1471
      %1542 = vmatmul.f32.gmra.mxu0 %v1476
      %v1543 = vpop.f32.mrf.mxu0
      %v1544 = vadd.f32 0.0, %v1543
      %1545 = vmatmul.f32.gmra.mxu0 %v1479
      %v1546 = vpop.f32.mrf.mxu0
      %v1547 = vadd.f32 0.0, %v1546
      %1548 = vmatmul.f32.gmra.mxu0 %v1482
      %v1549 = vpop.f32.mrf.mxu0
      %v1550 = vadd.f32 0.0, %v1549
      %1551 = vmatmul.f32.gmra.mxu0 %v1485
      %v1552 = vpop.f32.mrf.mxu0
      %v1553 = vadd.f32 0.0, %v1552
      %1554 = vmatmul.f32.gmra.mxu0 %v1488
      %v1555 = vpop.f32.mrf.mxu0
      %v1556 = vadd.f32 0.0, %v1555
      %1557 = vmatmul.f32.gmra.mxu0 %v1491
      %v1558 = vpop.f32.mrf.mxu0
      %v1559 = vadd.f32 0.0, %v1558
      %1560 = vmatmul.f32.gmra.mxu0 %v1494
      %v1561 = vpop.f32.mrf.mxu0
      %v1562 = vadd.f32 0.0, %v1561
      %1563 = vmatmul.f32.gmra.mxu0 %v1497
      %v1564 = vpop.f32.mrf.mxu0
      %v1565 = vadd.f32 0.0, %v1564
      %1566 = vmatmul.f32.gmra.mxu0 %v1500
      %v1567 = vpop.f32.mrf.mxu0
      %v1568 = vadd.f32 0.0, %v1567
      %1569 = vmatmul.f32.gmra.mxu0 %v1503
      %v1570 = vpop.f32.mrf.mxu0
      %v1571 = vadd.f32 0.0, %v1570
      %1572 = vmatmul.f32.gmra.mxu0 %v1506
      %v1573 = vpop.f32.mrf.mxu0
      %v1574 = vadd.f32 0.0, %v1573
      %1575 = vmatmul.f32.gmra.mxu0 %v1509
      %v1576 = vpop.f32.mrf.mxu0
      %v1577 = vadd.f32 0.0, %v1576
      %1578 = vmatmul.f32.gmra.mxu0 %v1512
      %v1579 = vpop.f32.mrf.mxu0
      %v1580 = vadd.f32 0.0, %v1579
      %1581 = vmatmul.f32.gmra.mxu0 %v1515
      %v1582 = vpop.f32.mrf.mxu0
      %v1583 = vadd.f32 0.0, %v1582
      %1584 = vmatmul.f32.gmra.mxu0 %v1518
      %v1585 = vpop.f32.mrf.mxu0
      %v1586 = vadd.f32 0.0, %v1585
      %1587 = vmatmul.f32.gmra.mxu0 %v1521
      %v1588 = vpop.f32.mrf.mxu0
      %v1589 = vadd.f32 0.0, %v1588
      %1590 = vdwg.mxu0
      %v1591 = vld [vmem:[%s7] sm:$0xff]
      %v1592 = vld [vmem:[%s7 + $0x8] sm:$0xff]
      %v1593 = vld [vmem:[%s7 + $0x10] sm:$0xff]
      %v1594 = vld [vmem:[%s7 + $0x18] sm:$0xf]
      %v1596 = vsel %vm851, %v1544, 0
      %v1599 = vsel %vm851, %v1547, 0
      %v1602 = vsel %vm851, %v1550, 0
      %v1605 = vsel %vm851, %v1553, 0
      %v1608 = vsel %vm851, %v1556, 0
      %v1611 = vsel %vm851, %v1559, 0
      %v1614 = vsel %vm851, %v1562, 0
      %v1617 = vsel %vm851, %v1565, 0
      %v1620 = vsel %vm851, %v1568, 0
      %v1623 = vsel %vm851, %v1571, 0
      %v1626 = vsel %vm851, %v1574, 0
      %v1629 = vsel %vm851, %v1577, 0
      %v1632 = vsel %vm851, %v1580, 0
      %v1635 = vsel %vm851, %v1583, 0
      %v1638 = vsel %vm851, %v1586, 0
      %v1641 = vsel %vm851, %v1589, 0
      %v1644 = vsel %vm900, %v1594, 0
      %1646 = vmatpush.msra.mxu0 0.0
      %1647 = vmatpush.msra.mxu0 0.0
      %1648 = vmatpush.msra.mxu0 0.0
      %1649 = vmatpush.msra.mxu0 0.0
      %1650 = vmatpush.msra.mxu0 0.0
      %1651 = vmatpush.msra.mxu0 0.0
      %1652 = vmatpush.msra.mxu0 0.0
      %1653 = vmatpush.msra.mxu0 0.0
      %1654 = vmatpush.msra.mxu0 0.0
      %1655 = vmatpush.msra.mxu0 0.0
      %1656 = vmatpush.msra.mxu0 0.0
      %1657 = vmatpush.msra.mxu0 0.0
      %1658 = vmatpush.msra.mxu0 %v1644
      %1659 = vmatpush.msra.mxu0 %v1593
      %1660 = vmatpush.msra.mxu0 %v1592
      %1661 = vmatpush.msra.mxu0 %v1591
      %1662 = vmatmul.f32.gmra.mxu0 %v1596
      %v1663 = vpop.f32.mrf.mxu0
      %v1664 = vadd.f32 0.0, %v1663
      %1665 = vmatmul.f32.gmra.mxu0 %v1599
      %v1666 = vpop.f32.mrf.mxu0
      %v1667 = vadd.f32 0.0, %v1666
      %1668 = vmatmul.f32.gmra.mxu0 %v1602
      %v1669 = vpop.f32.mrf.mxu0
      %v1670 = vadd.f32 0.0, %v1669
      %1671 = vmatmul.f32.gmra.mxu0 %v1605
      %v1672 = vpop.f32.mrf.mxu0
      %v1673 = vadd.f32 0.0, %v1672
      %1674 = vmatmul.f32.gmra.mxu0 %v1608
      %v1675 = vpop.f32.mrf.mxu0
      %v1676 = vadd.f32 0.0, %v1675
      %1677 = vmatmul.f32.gmra.mxu0 %v1611
      %v1678 = vpop.f32.mrf.mxu0
      %v1679 = vadd.f32 0.0, %v1678
      %1680 = vmatmul.f32.gmra.mxu0 %v1614
      %v1681 = vpop.f32.mrf.mxu0
      %v1682 = vadd.f32 0.0, %v1681
      %1683 = vmatmul.f32.gmra.mxu0 %v1617
      %v1684 = vpop.f32.mrf.mxu0
      %v1685 = vadd.f32 0.0, %v1684
      %1686 = vmatmul.f32.gmra.mxu0 %v1620
      %v1687 = vpop.f32.mrf.mxu0
      %v1688 = vadd.f32 0.0, %v1687
      %1689 = vmatmul.f32.gmra.mxu0 %v1623
      %v1690 = vpop.f32.mrf.mxu0
      %v1691 = vadd.f32 0.0, %v1690
      %1692 = vmatmul.f32.gmra.mxu0 %v1626
      %v1693 = vpop.f32.mrf.mxu0
      %v1694 = vadd.f32 0.0, %v1693
      %1695 = vmatmul.f32.gmra.mxu0 %v1629
      %v1696 = vpop.f32.mrf.mxu0
      %v1697 = vadd.f32 0.0, %v1696
      %1698 = vmatmul.f32.gmra.mxu0 %v1632
      %v1699 = vpop.f32.mrf.mxu0
      %v1700 = vadd.f32 0.0, %v1699
      %1701 = vmatmul.f32.gmra.mxu0 %v1635
      %v1702 = vpop.f32.mrf.mxu0
      %v1703 = vadd.f32 0.0, %v1702
      %1704 = vmatmul.f32.gmra.mxu0 %v1638
      %v1705 = vpop.f32.mrf.mxu0
      %v1706 = vadd.f32 0.0, %v1705
      %1707 = vmatmul.f32.gmra.mxu0 %v1641
      %v1708 = vpop.f32.mrf.mxu0
      %v1709 = vadd.f32 0.0, %v1708
      %1710 = vdwg.mxu0
      %1727 = vrot.lane.b32.xlu0 %v1664, 127
      %v1728 = vpop.permute.xlu0 %1727
      %1729 = vrot.lane.b32.xlu0 %v1667, 127
      %v1730 = vpop.permute.xlu0 %1729
      %1731 = vrot.lane.b32.xlu0 %v1670, 127
      %v1732 = vpop.permute.xlu0 %1731
      %1733 = vrot.lane.b32.xlu0 %v1673, 127
      %v1734 = vpop.permute.xlu0 %1733
      %1735 = vrot.lane.b32.xlu0 %v1676, 127
      %v1736 = vpop.permute.xlu0 %1735
      %1737 = vrot.lane.b32.xlu0 %v1679, 127
      %v1738 = vpop.permute.xlu0 %1737
      %1739 = vrot.lane.b32.xlu0 %v1682, 127
      %v1740 = vpop.permute.xlu0 %1739
      %1741 = vrot.lane.b32.xlu0 %v1685, 127
      %v1742 = vpop.permute.xlu0 %1741
      %1743 = vrot.lane.b32.xlu0 %v1688, 127
      %v1744 = vpop.permute.xlu0 %1743
      %1745 = vrot.lane.b32.xlu0 %v1691, 127
      %v1746 = vpop.permute.xlu0 %1745
      %1747 = vrot.lane.b32.xlu0 %v1694, 127
      %v1748 = vpop.permute.xlu0 %1747
      %1749 = vrot.lane.b32.xlu0 %v1697, 127
      %v1750 = vpop.permute.xlu0 %1749
      %1751 = vrot.lane.b32.xlu0 %v1700, 127
      %v1752 = vpop.permute.xlu0 %1751
      %1753 = vrot.lane.b32.xlu0 %v1703, 127
      %v1754 = vpop.permute.xlu0 %1753
      %1755 = vrot.lane.b32.xlu0 %v1706, 127
      %v1756 = vpop.permute.xlu0 %1755
      %1757 = vrot.lane.b32.xlu0 %v1709, 127
      %v1758 = vpop.permute.xlu0 %1757
      %1775 = vxpose.xlu0.b32.start [1/16] %v1728, 128
      %1776 = vxpose.xlu0.b32.cont [2/16] %v1730, 128
      %1777 = vxpose.xlu0.b32.cont [3/16] %v1732, 128
      %1778 = vxpose.xlu0.b32.cont [4/16] %v1734, 128
      %1779 = vxpose.xlu0.b32.cont [5/16] %v1736, 128
      %1780 = vxpose.xlu0.b32.cont [6/16] %v1738, 128
      %1781 = vxpose.xlu0.b32.cont [7/16] %v1740, 128
      %1782 = vxpose.xlu0.b32.cont [8/16] %v1742, 128
      %1783 = vxpose.xlu0.b32.cont [9/16] %v1744, 128
      %1784 = vxpose.xlu0.b32.cont [10/16] %v1746, 128
      %1785 = vxpose.xlu0.b32.cont [11/16] %v1748, 128
      %1786 = vxpose.xlu0.b32.cont [12/16] %v1750, 128
      %1787 = vxpose.xlu0.b32.cont [13/16] %v1752, 128
      %1788 = vxpose.xlu0.b32.cont [14/16] %v1754, 128
      %1789 = vxpose.xlu0.b32.cont [15/16] %v1756, 128
      %1790 = vxpose.xlu0.b32.end [16/16] %v1758, 128
      %v1791 = vpop.trf.xlu0
      %v1792 = vpop.trf.xlu0
      %v1793 = vpop.trf.xlu0
      %v1794 = vpop.trf.xlu0
      %v1795 = vpop.trf.xlu0
      %v1796 = vpop.trf.xlu0
      %v1797 = vpop.trf.xlu0
      %v1798 = vpop.trf.xlu0
      %v1799 = vpop.trf.xlu0
      %v1800 = vpop.trf.xlu0
      %v1801 = vpop.trf.xlu0
      %v1802 = vpop.trf.xlu0
      %v1803 = vpop.trf.xlu0
      %v1804 = vpop.trf.xlu0
      %v1805 = vpop.trf.xlu0
      %v1806 = vpop.trf.xlu0
      %1807 = vset.pattern.permute.xlu0 0
      %1808 = vperm.xlu0 %1807, %v1664
      %v1809 = vpop.permute.xlu0 %1808
      %1811 = vset.pattern.permute.xlu0 0
      %1812 = vperm.xlu0 %1811, %v1667
      %v1813 = vpop.permute.xlu0 %1812
      %1815 = vset.pattern.permute.xlu0 0
      %1816 = vperm.xlu0 %1815, %v1670
      %v1817 = vpop.permute.xlu0 %1816
      %1819 = vset.pattern.permute.xlu0 0
      %1820 = vperm.xlu0 %1819, %v1673
      %v1821 = vpop.permute.xlu0 %1820
      %1823 = vset.pattern.permute.xlu0 0
      %1824 = vperm.xlu0 %1823, %v1676
      %v1825 = vpop.permute.xlu0 %1824
      %1827 = vset.pattern.permute.xlu0 0
      %1828 = vperm.xlu0 %1827, %v1679
      %v1829 = vpop.permute.xlu0 %1828
      %1831 = vset.pattern.permute.xlu0 0
      %1832 = vperm.xlu0 %1831, %v1682
      %v1833 = vpop.permute.xlu0 %1832
      %1835 = vset.pattern.permute.xlu0 0
      %1836 = vperm.xlu0 %1835, %v1685
      %v1837 = vpop.permute.xlu0 %1836
      %1839 = vset.pattern.permute.xlu0 0
      %1840 = vperm.xlu0 %1839, %v1688
      %v1841 = vpop.permute.xlu0 %1840
      %1843 = vset.pattern.permute.xlu0 0
      %1844 = vperm.xlu0 %1843, %v1691
      %v1845 = vpop.permute.xlu0 %1844
      %1847 = vset.pattern.permute.xlu0 0
      %1848 = vperm.xlu0 %1847, %v1694
      %v1849 = vpop.permute.xlu0 %1848
      %1851 = vset.pattern.permute.xlu0 0
      %1852 = vperm.xlu0 %1851, %v1697
      %v1853 = vpop.permute.xlu0 %1852
      %1855 = vset.pattern.permute.xlu0 0
      %1856 = vperm.xlu0 %1855, %v1700
      %v1857 = vpop.permute.xlu0 %1856
      %1859 = vset.pattern.permute.xlu0 0
      %1860 = vperm.xlu0 %1859, %v1703
      %v1861 = vpop.permute.xlu0 %1860
      %1863 = vset.pattern.permute.xlu0 0
      %1864 = vperm.xlu0 %1863, %v1706
      %v1865 = vpop.permute.xlu0 %1864
      %1867 = vset.pattern.permute.xlu0 0
      %1868 = vperm.xlu0 %1867, %v1709
      %v1869 = vpop.permute.xlu0 %1868
      %v1871 = vperm.slane %v1791, 0
      %v1872 = vadd.f32 %v1809, %v1871
      %v1873 = vadd.f32 %v1813, %v1871
      %v1874 = vadd.f32 %v1817, %v1871
      %v1875 = vadd.f32 %v1821, %v1871
      %v1876 = vadd.f32 %v1825, %v1871
      %v1877 = vadd.f32 %v1829, %v1871
      %v1878 = vadd.f32 %v1833, %v1871
      %v1879 = vadd.f32 %v1837, %v1871
      %v1880 = vadd.f32 %v1841, %v1871
      %v1881 = vadd.f32 %v1845, %v1871
      %v1882 = vadd.f32 %v1849, %v1871
      %v1883 = vadd.f32 %v1853, %v1871
      %v1884 = vadd.f32 %v1857, %v1871
      %v1885 = vadd.f32 %v1861, %v1871
      %v1886 = vadd.f32 %v1865, %v1871
      %v1887 = vadd.f32 %v1869, %v1871
      %vm1888 = vcmp.gt.f32.partialorder %v1872, 0.0
      %vm1889 = vcmp.gt.f32.partialorder %v1873, 0.0
      %vm1890 = vcmp.gt.f32.partialorder %v1874, 0.0
      %vm1891 = vcmp.gt.f32.partialorder %v1875, 0.0
      %vm1892 = vcmp.gt.f32.partialorder %v1876, 0.0
      %vm1893 = vcmp.gt.f32.partialorder %v1877, 0.0
      %vm1894 = vcmp.gt.f32.partialorder %v1878, 0.0
      %vm1895 = vcmp.gt.f32.partialorder %v1879, 0.0
      %vm1896 = vcmp.gt.f32.partialorder %v1880, 0.0
      %vm1897 = vcmp.gt.f32.partialorder %v1881, 0.0
      %vm1898 = vcmp.gt.f32.partialorder %v1882, 0.0
      %vm1899 = vcmp.gt.f32.partialorder %v1883, 0.0
      %vm1900 = vcmp.gt.f32.partialorder %v1884, 0.0
      %vm1901 = vcmp.gt.f32.partialorder %v1885, 0.0
      %vm1902 = vcmp.gt.f32.partialorder %v1886, 0.0
      %vm1903 = vcmp.gt.f32.partialorder %v1887, 0.0
      %v1904 = vmul.f32 %v1872, 0.2
      %v1905 = vmul.f32 %v1873, 0.2
      %v1906 = vmul.f32 %v1874, 0.2
      %v1907 = vmul.f32 %v1875, 0.2
      %v1908 = vmul.f32 %v1876, 0.2
      %v1909 = vmul.f32 %v1877, 0.2
      %v1910 = vmul.f32 %v1878, 0.2
      %v1911 = vmul.f32 %v1879, 0.2
      %v1912 = vmul.f32 %v1880, 0.2
      %v1913 = vmul.f32 %v1881, 0.2
      %v1914 = vmul.f32 %v1882, 0.2
      %v1915 = vmul.f32 %v1883, 0.2
      %v1916 = vmul.f32 %v1884, 0.2
      %v1917 = vmul.f32 %v1885, 0.2
      %v1918 = vmul.f32 %v1886, 0.2
      %v1919 = vmul.f32 %v1887, 0.2
      %v1920 = vsel %vm1888, %v1872, %v1904
      %v1921 = vsel %vm1889, %v1873, %v1905
      %v1922 = vsel %vm1890, %v1874, %v1906
      %v1923 = vsel %vm1891, %v1875, %v1907
      %v1924 = vsel %vm1892, %v1876, %v1908
      %v1925 = vsel %vm1893, %v1877, %v1909
      %v1926 = vsel %vm1894, %v1878, %v1910
      %v1927 = vsel %vm1895, %v1879, %v1911
      %v1928 = vsel %vm1896, %v1880, %v1912
      %v1929 = vsel %vm1897, %v1881, %v1913
      %v1930 = vsel %vm1898, %v1882, %v1914
      %v1931 = vsel %vm1899, %v1883, %v1915
      %v1932 = vsel %vm1900, %v1884, %v1916
      %v1933 = vsel %vm1901, %v1885, %v1917
      %v1934 = vsel %vm1902, %v1886, %v1918
      %v1935 = vsel %vm1903, %v1887, %v1919
      %v1936 = vsel %vm1194, %v1920, -1e+30
      %v1937 = vsel %vm1195, %v1921, -1e+30
      %v1938 = vsel %vm1196, %v1922, -1e+30
      %v1939 = vsel %vm1197, %v1923, -1e+30
      %v1940 = vsel %vm1198, %v1924, -1e+30
      %v1941 = vsel %vm1199, %v1925, -1e+30
      %v1942 = vsel %vm1200, %v1926, -1e+30
      %v1943 = vsel %vm1201, %v1927, -1e+30
      %v1944 = vsel %vm1202, %v1928, -1e+30
      %v1945 = vsel %vm1203, %v1929, -1e+30
      %v1946 = vsel %vm1204, %v1930, -1e+30
      %v1947 = vsel %vm1205, %v1931, -1e+30
      %v1948 = vsel %vm1206, %v1932, -1e+30
      %v1949 = vsel %vm1207, %v1933, -1e+30
      %v1950 = vsel %vm1208, %v1934, -1e+30
      %v1951 = vsel %vm1209, %v1935, -1e+30
      %1952 = vmax.xlane.f32.xlu0 %v1936
      %v1953 = vpop.xlane.xlu0 %1952
      %1954 = vmax.xlane.f32.xlu0 %v1937
      %v1955 = vpop.xlane.xlu0 %1954
      %1956 = vmax.xlane.f32.xlu0 %v1938
      %v1957 = vpop.xlane.xlu0 %1956
      %1958 = vmax.xlane.f32.xlu0 %v1939
      %v1959 = vpop.xlane.xlu0 %1958
      %1960 = vmax.xlane.f32.xlu0 %v1940
      %v1961 = vpop.xlane.xlu0 %1960
      %1962 = vmax.xlane.f32.xlu0 %v1941
      %v1963 = vpop.xlane.xlu0 %1962
      %1964 = vmax.xlane.f32.xlu0 %v1942
      %v1965 = vpop.xlane.xlu0 %1964
      %1966 = vmax.xlane.f32.xlu0 %v1943
      %v1967 = vpop.xlane.xlu0 %1966
      %1968 = vmax.xlane.f32.xlu0 %v1944
      %v1969 = vpop.xlane.xlu0 %1968
      %1970 = vmax.xlane.f32.xlu0 %v1945
      %v1971 = vpop.xlane.xlu0 %1970
      %1972 = vmax.xlane.f32.xlu0 %v1946
      %v1973 = vpop.xlane.xlu0 %1972
      %1974 = vmax.xlane.f32.xlu0 %v1947
      %v1975 = vpop.xlane.xlu0 %1974
      %1976 = vmax.xlane.f32.xlu0 %v1948
      %v1977 = vpop.xlane.xlu0 %1976
      %1978 = vmax.xlane.f32.xlu0 %v1949
      %v1979 = vpop.xlane.xlu0 %1978
      %1980 = vmax.xlane.f32.xlu0 %v1950
      %v1981 = vpop.xlane.xlu0 %1980
      %1982 = vmax.xlane.f32.xlu0 %v1951
      %v1983 = vpop.xlane.xlu0 %1982
      %v1984 = vsub.f32 %v1936, %v1953
      %v1985 = vsub.f32 %v1937, %v1955
      %v1986 = vsub.f32 %v1938, %v1957
      %v1987 = vsub.f32 %v1939, %v1959
      %v1988 = vsub.f32 %v1940, %v1961
      %v1989 = vsub.f32 %v1941, %v1963
      %v1990 = vsub.f32 %v1942, %v1965
      %v1991 = vsub.f32 %v1943, %v1967
      %v1992 = vsub.f32 %v1944, %v1969
      %v1993 = vsub.f32 %v1945, %v1971
      %v1994 = vsub.f32 %v1946, %v1973
      %v1995 = vsub.f32 %v1947, %v1975
      %v1996 = vsub.f32 %v1948, %v1977
      %v1997 = vsub.f32 %v1949, %v1979
      %v1998 = vsub.f32 %v1950, %v1981
      %v1999 = vsub.f32 %v1951, %v1983
      %v2000 = vmul.f32 %v1984, 1.442695
      %v2001 = vpow.pop %v2000
      %v2002 = vmul.f32 %v1985, 1.442695
      %v2003 = vpow.pop %v2002
      %v2004 = vmul.f32 %v1986, 1.442695
      %v2005 = vpow.pop %v2004
      %v2006 = vmul.f32 %v1987, 1.442695
      %v2007 = vpow.pop %v2006
      %v2008 = vmul.f32 %v1988, 1.442695
      %v2009 = vpow.pop %v2008
      %v2010 = vmul.f32 %v1989, 1.442695
      %v2011 = vpow.pop %v2010
      %v2012 = vmul.f32 %v1990, 1.442695
      %v2013 = vpow.pop %v2012
      %v2014 = vmul.f32 %v1991, 1.442695
      %v2015 = vpow.pop %v2014
      %v2016 = vmul.f32 %v1992, 1.442695
      %v2017 = vpow.pop %v2016
      %v2018 = vmul.f32 %v1993, 1.442695
      %v2019 = vpow.pop %v2018
      %v2020 = vmul.f32 %v1994, 1.442695
      %v2021 = vpow.pop %v2020
      %v2022 = vmul.f32 %v1995, 1.442695
      %v2023 = vpow.pop %v2022
      %v2024 = vmul.f32 %v1996, 1.442695
      %v2025 = vpow.pop %v2024
      %v2026 = vmul.f32 %v1997, 1.442695
      %v2027 = vpow.pop %v2026
      %v2028 = vmul.f32 %v1998, 1.442695
      %v2029 = vpow.pop %v2028
      %v2030 = vmul.f32 %v1999, 1.442695
      %v2031 = vpow.pop %v2030
      %v2032 = vmul.f32 %v2001, %v708
      %v2033 = vmul.f32 %v2003, %v709
      %v2034 = vmul.f32 %v2005, %v710
      %v2035 = vmul.f32 %v2007, %v711
      %v2036 = vmul.f32 %v2009, %v712
      %v2037 = vmul.f32 %v2011, %v713
      %v2038 = vmul.f32 %v2013, %v714
      %v2039 = vmul.f32 %v2015, %v715
      %v2040 = vmul.f32 %v2017, %v716
      %v2041 = vmul.f32 %v2019, %v717
      %v2042 = vmul.f32 %v2021, %v718
      %v2043 = vmul.f32 %v2023, %v719
      %v2044 = vmul.f32 %v2025, %v720
      %v2045 = vmul.f32 %v2027, %v721
      %v2046 = vmul.f32 %v2029, %v722
      %v2047 = vmul.f32 %v2031, %v723
      %2048 = vadd.xlane.f32.xlu0 %v2032
      %v2049 = vpop.xlane.xlu0 %2048
      %2050 = vadd.xlane.f32.xlu0 %v2033
      %v2051 = vpop.xlane.xlu0 %2050
      %2052 = vadd.xlane.f32.xlu0 %v2034
      %v2053 = vpop.xlane.xlu0 %2052
      %2054 = vadd.xlane.f32.xlu0 %v2035
      %v2055 = vpop.xlane.xlu0 %2054
      %2056 = vadd.xlane.f32.xlu0 %v2036
      %v2057 = vpop.xlane.xlu0 %2056
      %2058 = vadd.xlane.f32.xlu0 %v2037
      %v2059 = vpop.xlane.xlu0 %2058
      %2060 = vadd.xlane.f32.xlu0 %v2038
      %v2061 = vpop.xlane.xlu0 %2060
      %2062 = vadd.xlane.f32.xlu0 %v2039
      %v2063 = vpop.xlane.xlu0 %2062
      %2064 = vadd.xlane.f32.xlu0 %v2040
      %v2065 = vpop.xlane.xlu0 %2064
      %2066 = vadd.xlane.f32.xlu0 %v2041
      %v2067 = vpop.xlane.xlu0 %2066
      %2068 = vadd.xlane.f32.xlu0 %v2042
      %v2069 = vpop.xlane.xlu0 %2068
      %2070 = vadd.xlane.f32.xlu0 %v2043
      %v2071 = vpop.xlane.xlu0 %2070
      %2072 = vadd.xlane.f32.xlu0 %v2044
      %v2073 = vpop.xlane.xlu0 %2072
      %2074 = vadd.xlane.f32.xlu0 %v2045
      %v2075 = vpop.xlane.xlu0 %2074
      %2076 = vadd.xlane.f32.xlu0 %v2046
      %v2077 = vpop.xlane.xlu0 %2076
      %2078 = vadd.xlane.f32.xlu0 %v2047
      %v2079 = vpop.xlane.xlu0 %2078
      %v2080 = vrcp.pop %v2049
      %v2081 = vrcp.pop %v2051
      %v2082 = vrcp.pop %v2053
      %v2083 = vrcp.pop %v2055
      %v2084 = vrcp.pop %v2057
      %v2085 = vrcp.pop %v2059
      %v2086 = vrcp.pop %v2061
      %v2087 = vrcp.pop %v2063
      %v2088 = vrcp.pop %v2065
      %v2089 = vrcp.pop %v2067
      %v2090 = vrcp.pop %v2069
      %v2091 = vrcp.pop %v2071
      %v2092 = vrcp.pop %v2073
      %v2093 = vrcp.pop %v2075
      %v2094 = vrcp.pop %v2077
      %v2095 = vrcp.pop %v2079
      %v2096 = vmul.f32 %v2032, %v2080
      %v2097 = vmul.f32 %v2033, %v2081
      %v2098 = vmul.f32 %v2034, %v2082
      %v2099 = vmul.f32 %v2035, %v2083
      %v2100 = vmul.f32 %v2036, %v2084
      %v2101 = vmul.f32 %v2037, %v2085
      %v2102 = vmul.f32 %v2038, %v2086
      %v2103 = vmul.f32 %v2039, %v2087
      %v2104 = vmul.f32 %v2040, %v2088
      %v2105 = vmul.f32 %v2041, %v2089
      %v2106 = vmul.f32 %v2042, %v2090
      %v2107 = vmul.f32 %v2043, %v2091
      %v2108 = vmul.f32 %v2044, %v2092
      %v2109 = vmul.f32 %v2045, %v2093
      %v2110 = vmul.f32 %v2046, %v2094
      %v2111 = vmul.f32 %v2047, %v2095
      %v2112 = vld [vmem:[%s8] sm:$0x1]
      %v2114 = vperm.slane %v2112, 0
      %2116 = vmatpush.msra.mxu0 %v1589
      %2117 = vmatpush.msra.mxu0 %v1586
      %2118 = vmatpush.msra.mxu0 %v1583
      %2119 = vmatpush.msra.mxu0 %v1580
      %2120 = vmatpush.msra.mxu0 %v1577
      %2121 = vmatpush.msra.mxu0 %v1574
      %2122 = vmatpush.msra.mxu0 %v1571
      %2123 = vmatpush.msra.mxu0 %v1568
      %2124 = vmatpush.msra.mxu0 %v1565
      %2125 = vmatpush.msra.mxu0 %v1562
      %2126 = vmatpush.msra.mxu0 %v1559
      %2127 = vmatpush.msra.mxu0 %v1556
      %2128 = vmatpush.msra.mxu0 %v1553
      %2129 = vmatpush.msra.mxu0 %v1550
      %2130 = vmatpush.msra.mxu0 %v1547
      %2131 = vmatpush.msra.mxu0 %v1544
      %2132 = vmatmul.f32.gmra.mxu0 %v2096
      %v2133 = vpop.f32.mrf.mxu0
      %v2134 = vadd.f32 %v2114, %v2133
      %2135 = vmatmul.f32.gmra.mxu0 %v2097
      %v2136 = vpop.f32.mrf.mxu0
      %v2137 = vadd.f32 %v2114, %v2136
      %2138 = vmatmul.f32.gmra.mxu0 %v2098
      %v2139 = vpop.f32.mrf.mxu0
      %v2140 = vadd.f32 %v2114, %v2139
      %2141 = vmatmul.f32.gmra.mxu0 %v2099
      %v2142 = vpop.f32.mrf.mxu0
      %v2143 = vadd.f32 %v2114, %v2142
      %2144 = vmatmul.f32.gmra.mxu0 %v2100
      %v2145 = vpop.f32.mrf.mxu0
      %v2146 = vadd.f32 %v2114, %v2145
      %2147 = vmatmul.f32.gmra.mxu0 %v2101
      %v2148 = vpop.f32.mrf.mxu0
      %v2149 = vadd.f32 %v2114, %v2148
      %2150 = vmatmul.f32.gmra.mxu0 %v2102
      %v2151 = vpop.f32.mrf.mxu0
      %v2152 = vadd.f32 %v2114, %v2151
      %2153 = vmatmul.f32.gmra.mxu0 %v2103
      %v2154 = vpop.f32.mrf.mxu0
      %v2155 = vadd.f32 %v2114, %v2154
      %2156 = vmatmul.f32.gmra.mxu0 %v2104
      %v2157 = vpop.f32.mrf.mxu0
      %v2158 = vadd.f32 %v2114, %v2157
      %2159 = vmatmul.f32.gmra.mxu0 %v2105
      %v2160 = vpop.f32.mrf.mxu0
      %v2161 = vadd.f32 %v2114, %v2160
      %2162 = vmatmul.f32.gmra.mxu0 %v2106
      %v2163 = vpop.f32.mrf.mxu0
      %v2164 = vadd.f32 %v2114, %v2163
      %2165 = vmatmul.f32.gmra.mxu0 %v2107
      %v2166 = vpop.f32.mrf.mxu0
      %v2167 = vadd.f32 %v2114, %v2166
      %2168 = vmatmul.f32.gmra.mxu0 %v2108
      %v2169 = vpop.f32.mrf.mxu0
      %v2170 = vadd.f32 %v2114, %v2169
      %2171 = vmatmul.f32.gmra.mxu0 %v2109
      %v2172 = vpop.f32.mrf.mxu0
      %v2173 = vadd.f32 %v2114, %v2172
      %2174 = vmatmul.f32.gmra.mxu0 %v2110
      %v2175 = vpop.f32.mrf.mxu0
      %v2176 = vadd.f32 %v2114, %v2175
      %2177 = vmatmul.f32.gmra.mxu0 %v2111
      %v2178 = vpop.f32.mrf.mxu0
      %v2179 = vadd.f32 %v2114, %v2178
      %2180 = vdwg.mxu0
      %v2181 = vtanh.pop %v2134
      %v2182 = vtanh.pop %v2137
      %v2183 = vtanh.pop %v2140
      %v2184 = vtanh.pop %v2143
      %v2185 = vtanh.pop %v2146
      %v2186 = vtanh.pop %v2149
      %v2187 = vtanh.pop %v2152
      %v2188 = vtanh.pop %v2155
      %v2189 = vtanh.pop %v2158
      %v2190 = vtanh.pop %v2161
      %v2191 = vtanh.pop %v2164
      %v2192 = vtanh.pop %v2167
      %v2193 = vtanh.pop %v2170
      %v2194 = vtanh.pop %v2173
      %v2195 = vtanh.pop %v2176
      %v2196 = vtanh.pop %v2179
      %v2197 = vld [vmem:[%s9] sm:$0xff]
      %v2198 = vld [vmem:[%s9 + $0x8] sm:$0xff]
      %v2199 = vld [vmem:[%s9 + $0x10] sm:$0xff]
      %v2200 = vld [vmem:[%s9 + $0x18] sm:$0xf]
      %v2202 = vsel %vm851, %v2181, 0
      %v2205 = vsel %vm851, %v2182, 0
      %v2208 = vsel %vm851, %v2183, 0
      %v2211 = vsel %vm851, %v2184, 0
      %v2214 = vsel %vm851, %v2185, 0
      %v2217 = vsel %vm851, %v2186, 0
      %v2220 = vsel %vm851, %v2187, 0
      %v2223 = vsel %vm851, %v2188, 0
      %v2226 = vsel %vm851, %v2189, 0
      %v2229 = vsel %vm851, %v2190, 0
      %v2232 = vsel %vm851, %v2191, 0
      %v2235 = vsel %vm851, %v2192, 0
      %v2238 = vsel %vm851, %v2193, 0
      %v2241 = vsel %vm851, %v2194, 0
      %v2244 = vsel %vm851, %v2195, 0
      %v2247 = vsel %vm851, %v2196, 0
      %v2250 = vsel %vm900, %v2200, 0
      %2252 = vmatpush.msra.mxu0 0.0
      %2253 = vmatpush.msra.mxu0 0.0
      %2254 = vmatpush.msra.mxu0 0.0
      %2255 = vmatpush.msra.mxu0 0.0
      %2256 = vmatpush.msra.mxu0 0.0
      %2257 = vmatpush.msra.mxu0 0.0
      %2258 = vmatpush.msra.mxu0 0.0
      %2259 = vmatpush.msra.mxu0 0.0
      %2260 = vmatpush.msra.mxu0 0.0
      %2261 = vmatpush.msra.mxu0 0.0
      %2262 = vmatpush.msra.mxu0 0.0
      %2263 = vmatpush.msra.mxu0 0.0
      %2264 = vmatpush.msra.mxu0 %v2250
      %2265 = vmatpush.msra.mxu0 %v2199
      %2266 = vmatpush.msra.mxu0 %v2198
      %2267 = vmatpush.msra.mxu0 %v2197
      %2268 = vmatmul.f32.gmra.mxu0 %v2202
      %v2269 = vpop.f32.mrf.mxu0
      %v2270 = vadd.f32 0.0, %v2269
      %2271 = vmatmul.f32.gmra.mxu0 %v2205
      %v2272 = vpop.f32.mrf.mxu0
      %v2273 = vadd.f32 0.0, %v2272
      %2274 = vmatmul.f32.gmra.mxu0 %v2208
      %v2275 = vpop.f32.mrf.mxu0
      %v2276 = vadd.f32 0.0, %v2275
      %2277 = vmatmul.f32.gmra.mxu0 %v2211
      %v2278 = vpop.f32.mrf.mxu0
      %v2279 = vadd.f32 0.0, %v2278
      %2280 = vmatmul.f32.gmra.mxu0 %v2214
      %v2281 = vpop.f32.mrf.mxu0
      %v2282 = vadd.f32 0.0, %v2281
      %2283 = vmatmul.f32.gmra.mxu0 %v2217
      %v2284 = vpop.f32.mrf.mxu0
      %v2285 = vadd.f32 0.0, %v2284
      %2286 = vmatmul.f32.gmra.mxu0 %v2220
      %v2287 = vpop.f32.mrf.mxu0
      %v2288 = vadd.f32 0.0, %v2287
      %2289 = vmatmul.f32.gmra.mxu0 %v2223
      %v2290 = vpop.f32.mrf.mxu0
      %v2291 = vadd.f32 0.0, %v2290
      %2292 = vmatmul.f32.gmra.mxu0 %v2226
      %v2293 = vpop.f32.mrf.mxu0
      %v2294 = vadd.f32 0.0, %v2293
      %2295 = vmatmul.f32.gmra.mxu0 %v2229
      %v2296 = vpop.f32.mrf.mxu0
      %v2297 = vadd.f32 0.0, %v2296
      %2298 = vmatmul.f32.gmra.mxu0 %v2232
      %v2299 = vpop.f32.mrf.mxu0
      %v2300 = vadd.f32 0.0, %v2299
      %2301 = vmatmul.f32.gmra.mxu0 %v2235
      %v2302 = vpop.f32.mrf.mxu0
      %v2303 = vadd.f32 0.0, %v2302
      %2304 = vmatmul.f32.gmra.mxu0 %v2238
      %v2305 = vpop.f32.mrf.mxu0
      %v2306 = vadd.f32 0.0, %v2305
      %2307 = vmatmul.f32.gmra.mxu0 %v2241
      %v2308 = vpop.f32.mrf.mxu0
      %v2309 = vadd.f32 0.0, %v2308
      %2310 = vmatmul.f32.gmra.mxu0 %v2244
      %v2311 = vpop.f32.mrf.mxu0
      %v2312 = vadd.f32 0.0, %v2311
      %2313 = vmatmul.f32.gmra.mxu0 %v2247
      %v2314 = vpop.f32.mrf.mxu0
      %v2315 = vadd.f32 0.0, %v2314
      %2316 = vdwg.mxu0
      %v2317 = vld [vmem:[%s10] sm:$0xff]
      %v2318 = vld [vmem:[%s10 + $0x8] sm:$0xff]
      %v2319 = vld [vmem:[%s10 + $0x10] sm:$0xff]
      %v2320 = vld [vmem:[%s10 + $0x18] sm:$0xf]
      %v2322 = vsel %vm851, %v2270, 0
      %v2325 = vsel %vm851, %v2273, 0
      %v2328 = vsel %vm851, %v2276, 0
      %v2331 = vsel %vm851, %v2279, 0
      %v2334 = vsel %vm851, %v2282, 0
      %v2337 = vsel %vm851, %v2285, 0
      %v2340 = vsel %vm851, %v2288, 0
      %v2343 = vsel %vm851, %v2291, 0
      %v2346 = vsel %vm851, %v2294, 0
      %v2349 = vsel %vm851, %v2297, 0
      %v2352 = vsel %vm851, %v2300, 0
      %v2355 = vsel %vm851, %v2303, 0
      %v2358 = vsel %vm851, %v2306, 0
      %v2361 = vsel %vm851, %v2309, 0
      %v2364 = vsel %vm851, %v2312, 0
      %v2367 = vsel %vm851, %v2315, 0
      %v2370 = vsel %vm900, %v2320, 0
      %2372 = vmatpush.msra.mxu0 0.0
      %2373 = vmatpush.msra.mxu0 0.0
      %2374 = vmatpush.msra.mxu0 0.0
      %2375 = vmatpush.msra.mxu0 0.0
      %2376 = vmatpush.msra.mxu0 0.0
      %2377 = vmatpush.msra.mxu0 0.0
      %2378 = vmatpush.msra.mxu0 0.0
      %2379 = vmatpush.msra.mxu0 0.0
      %2380 = vmatpush.msra.mxu0 0.0
      %2381 = vmatpush.msra.mxu0 0.0
      %2382 = vmatpush.msra.mxu0 0.0
      %2383 = vmatpush.msra.mxu0 0.0
      %2384 = vmatpush.msra.mxu0 %v2370
      %2385 = vmatpush.msra.mxu0 %v2319
      %2386 = vmatpush.msra.mxu0 %v2318
      %2387 = vmatpush.msra.mxu0 %v2317
      %2388 = vmatmul.f32.gmra.mxu0 %v2322
      %v2389 = vpop.f32.mrf.mxu0
      %v2390 = vadd.f32 0.0, %v2389
      %2391 = vmatmul.f32.gmra.mxu0 %v2325
      %v2392 = vpop.f32.mrf.mxu0
      %v2393 = vadd.f32 0.0, %v2392
      %2394 = vmatmul.f32.gmra.mxu0 %v2328
      %v2395 = vpop.f32.mrf.mxu0
      %v2396 = vadd.f32 0.0, %v2395
      %2397 = vmatmul.f32.gmra.mxu0 %v2331
      %v2398 = vpop.f32.mrf.mxu0
      %v2399 = vadd.f32 0.0, %v2398
      %2400 = vmatmul.f32.gmra.mxu0 %v2334
      %v2401 = vpop.f32.mrf.mxu0
      %v2402 = vadd.f32 0.0, %v2401
      %2403 = vmatmul.f32.gmra.mxu0 %v2337
      %v2404 = vpop.f32.mrf.mxu0
      %v2405 = vadd.f32 0.0, %v2404
      %2406 = vmatmul.f32.gmra.mxu0 %v2340
      %v2407 = vpop.f32.mrf.mxu0
      %v2408 = vadd.f32 0.0, %v2407
      %2409 = vmatmul.f32.gmra.mxu0 %v2343
      %v2410 = vpop.f32.mrf.mxu0
      %v2411 = vadd.f32 0.0, %v2410
      %2412 = vmatmul.f32.gmra.mxu0 %v2346
      %v2413 = vpop.f32.mrf.mxu0
      %v2414 = vadd.f32 0.0, %v2413
      %2415 = vmatmul.f32.gmra.mxu0 %v2349
      %v2416 = vpop.f32.mrf.mxu0
      %v2417 = vadd.f32 0.0, %v2416
      %2418 = vmatmul.f32.gmra.mxu0 %v2352
      %v2419 = vpop.f32.mrf.mxu0
      %v2420 = vadd.f32 0.0, %v2419
      %2421 = vmatmul.f32.gmra.mxu0 %v2355
      %v2422 = vpop.f32.mrf.mxu0
      %v2423 = vadd.f32 0.0, %v2422
      %2424 = vmatmul.f32.gmra.mxu0 %v2358
      %v2425 = vpop.f32.mrf.mxu0
      %v2426 = vadd.f32 0.0, %v2425
      %2427 = vmatmul.f32.gmra.mxu0 %v2361
      %v2428 = vpop.f32.mrf.mxu0
      %v2429 = vadd.f32 0.0, %v2428
      %2430 = vmatmul.f32.gmra.mxu0 %v2364
      %v2431 = vpop.f32.mrf.mxu0
      %v2432 = vadd.f32 0.0, %v2431
      %2433 = vmatmul.f32.gmra.mxu0 %v2367
      %v2434 = vpop.f32.mrf.mxu0
      %v2435 = vadd.f32 0.0, %v2434
      %2436 = vdwg.mxu0
      %2453 = vrot.lane.b32.xlu0 %v2390, 127
      %v2454 = vpop.permute.xlu0 %2453
      %2455 = vrot.lane.b32.xlu0 %v2393, 127
      %v2456 = vpop.permute.xlu0 %2455
      %2457 = vrot.lane.b32.xlu0 %v2396, 127
      %v2458 = vpop.permute.xlu0 %2457
      %2459 = vrot.lane.b32.xlu0 %v2399, 127
      %v2460 = vpop.permute.xlu0 %2459
      %2461 = vrot.lane.b32.xlu0 %v2402, 127
      %v2462 = vpop.permute.xlu0 %2461
      %2463 = vrot.lane.b32.xlu0 %v2405, 127
      %v2464 = vpop.permute.xlu0 %2463
      %2465 = vrot.lane.b32.xlu0 %v2408, 127
      %v2466 = vpop.permute.xlu0 %2465
      %2467 = vrot.lane.b32.xlu0 %v2411, 127
      %v2468 = vpop.permute.xlu0 %2467
      %2469 = vrot.lane.b32.xlu0 %v2414, 127
      %v2470 = vpop.permute.xlu0 %2469
      %2471 = vrot.lane.b32.xlu0 %v2417, 127
      %v2472 = vpop.permute.xlu0 %2471
      %2473 = vrot.lane.b32.xlu0 %v2420, 127
      %v2474 = vpop.permute.xlu0 %2473
      %2475 = vrot.lane.b32.xlu0 %v2423, 127
      %v2476 = vpop.permute.xlu0 %2475
      %2477 = vrot.lane.b32.xlu0 %v2426, 127
      %v2478 = vpop.permute.xlu0 %2477
      %2479 = vrot.lane.b32.xlu0 %v2429, 127
      %v2480 = vpop.permute.xlu0 %2479
      %2481 = vrot.lane.b32.xlu0 %v2432, 127
      %v2482 = vpop.permute.xlu0 %2481
      %2483 = vrot.lane.b32.xlu0 %v2435, 127
      %v2484 = vpop.permute.xlu0 %2483
      %2501 = vxpose.xlu0.b32.start [1/16] %v2454, 128
      %2502 = vxpose.xlu0.b32.cont [2/16] %v2456, 128
      %2503 = vxpose.xlu0.b32.cont [3/16] %v2458, 128
      %2504 = vxpose.xlu0.b32.cont [4/16] %v2460, 128
      %2505 = vxpose.xlu0.b32.cont [5/16] %v2462, 128
      %2506 = vxpose.xlu0.b32.cont [6/16] %v2464, 128
      %2507 = vxpose.xlu0.b32.cont [7/16] %v2466, 128
      %2508 = vxpose.xlu0.b32.cont [8/16] %v2468, 128
      %2509 = vxpose.xlu0.b32.cont [9/16] %v2470, 128
      %2510 = vxpose.xlu0.b32.cont [10/16] %v2472, 128
      %2511 = vxpose.xlu0.b32.cont [11/16] %v2474, 128
      %2512 = vxpose.xlu0.b32.cont [12/16] %v2476, 128
      %2513 = vxpose.xlu0.b32.cont [13/16] %v2478, 128
      %2514 = vxpose.xlu0.b32.cont [14/16] %v2480, 128
      %2515 = vxpose.xlu0.b32.cont [15/16] %v2482, 128
      %2516 = vxpose.xlu0.b32.end [16/16] %v2484, 128
      %v2517 = vpop.trf.xlu0
      %v2518 = vpop.trf.xlu0
      %v2519 = vpop.trf.xlu0
      %v2520 = vpop.trf.xlu0
      %v2521 = vpop.trf.xlu0
      %v2522 = vpop.trf.xlu0
      %v2523 = vpop.trf.xlu0
      %v2524 = vpop.trf.xlu0
      %v2525 = vpop.trf.xlu0
      %v2526 = vpop.trf.xlu0
      %v2527 = vpop.trf.xlu0
      %v2528 = vpop.trf.xlu0
      %v2529 = vpop.trf.xlu0
      %v2530 = vpop.trf.xlu0
      %v2531 = vpop.trf.xlu0
      %v2532 = vpop.trf.xlu0
      %2533 = vset.pattern.permute.xlu0 0
      %2534 = vperm.xlu0 %2533, %v2390
      %v2535 = vpop.permute.xlu0 %2534
      %2537 = vset.pattern.permute.xlu0 0
      %2538 = vperm.xlu0 %2537, %v2393
      %v2539 = vpop.permute.xlu0 %2538
      %2541 = vset.pattern.permute.xlu0 0
      %2542 = vperm.xlu0 %2541, %v2396
      %v2543 = vpop.permute.xlu0 %2542
      %2545 = vset.pattern.permute.xlu0 0
      %2546 = vperm.xlu0 %2545, %v2399
      %v2547 = vpop.permute.xlu0 %2546
      %2549 = vset.pattern.permute.xlu0 0
      %2550 = vperm.xlu0 %2549, %v2402
      %v2551 = vpop.permute.xlu0 %2550
      %2553 = vset.pattern.permute.xlu0 0
      %2554 = vperm.xlu0 %2553, %v2405
      %v2555 = vpop.permute.xlu0 %2554
      %2557 = vset.pattern.permute.xlu0 0
      %2558 = vperm.xlu0 %2557, %v2408
      %v2559 = vpop.permute.xlu0 %2558
      %2561 = vset.pattern.permute.xlu0 0
      %2562 = vperm.xlu0 %2561, %v2411
      %v2563 = vpop.permute.xlu0 %2562
      %2565 = vset.pattern.permute.xlu0 0
      %2566 = vperm.xlu0 %2565, %v2414
      %v2567 = vpop.permute.xlu0 %2566
      %2569 = vset.pattern.permute.xlu0 0
      %2570 = vperm.xlu0 %2569, %v2417
      %v2571 = vpop.permute.xlu0 %2570
      %2573 = vset.pattern.permute.xlu0 0
      %2574 = vperm.xlu0 %2573, %v2420
      %v2575 = vpop.permute.xlu0 %2574
      %2577 = vset.pattern.permute.xlu0 0
      %2578 = vperm.xlu0 %2577, %v2423
      %v2579 = vpop.permute.xlu0 %2578
      %2581 = vset.pattern.permute.xlu0 0
      %2582 = vperm.xlu0 %2581, %v2426
      %v2583 = vpop.permute.xlu0 %2582
      %2585 = vset.pattern.permute.xlu0 0
      %2586 = vperm.xlu0 %2585, %v2429
      %v2587 = vpop.permute.xlu0 %2586
      %2589 = vset.pattern.permute.xlu0 0
      %2590 = vperm.xlu0 %2589, %v2432
      %v2591 = vpop.permute.xlu0 %2590
      %2593 = vset.pattern.permute.xlu0 0
      %2594 = vperm.xlu0 %2593, %v2435
      %v2595 = vpop.permute.xlu0 %2594
      %v2597 = vperm.slane %v2517, 0
      %v2598 = vadd.f32 %v2535, %v2597
      %v2599 = vadd.f32 %v2539, %v2597
      %v2600 = vadd.f32 %v2543, %v2597
      %v2601 = vadd.f32 %v2547, %v2597
      %v2602 = vadd.f32 %v2551, %v2597
      %v2603 = vadd.f32 %v2555, %v2597
      %v2604 = vadd.f32 %v2559, %v2597
      %v2605 = vadd.f32 %v2563, %v2597
      %v2606 = vadd.f32 %v2567, %v2597
      %v2607 = vadd.f32 %v2571, %v2597
      %v2608 = vadd.f32 %v2575, %v2597
      %v2609 = vadd.f32 %v2579, %v2597
      %v2610 = vadd.f32 %v2583, %v2597
      %v2611 = vadd.f32 %v2587, %v2597
      %v2612 = vadd.f32 %v2591, %v2597
      %v2613 = vadd.f32 %v2595, %v2597
      %vm2614 = vcmp.gt.f32.partialorder %v2598, 0.0
      %vm2615 = vcmp.gt.f32.partialorder %v2599, 0.0
      %vm2616 = vcmp.gt.f32.partialorder %v2600, 0.0
      %vm2617 = vcmp.gt.f32.partialorder %v2601, 0.0
      %vm2618 = vcmp.gt.f32.partialorder %v2602, 0.0
      %vm2619 = vcmp.gt.f32.partialorder %v2603, 0.0
      %vm2620 = vcmp.gt.f32.partialorder %v2604, 0.0
      %vm2621 = vcmp.gt.f32.partialorder %v2605, 0.0
      %vm2622 = vcmp.gt.f32.partialorder %v2606, 0.0
      %vm2623 = vcmp.gt.f32.partialorder %v2607, 0.0
      %vm2624 = vcmp.gt.f32.partialorder %v2608, 0.0
      %vm2625 = vcmp.gt.f32.partialorder %v2609, 0.0
      %vm2626 = vcmp.gt.f32.partialorder %v2610, 0.0
      %vm2627 = vcmp.gt.f32.partialorder %v2611, 0.0
      %vm2628 = vcmp.gt.f32.partialorder %v2612, 0.0
      %vm2629 = vcmp.gt.f32.partialorder %v2613, 0.0
      %v2630 = vmul.f32 %v2598, 0.2
      %v2631 = vmul.f32 %v2599, 0.2
      %v2632 = vmul.f32 %v2600, 0.2
      %v2633 = vmul.f32 %v2601, 0.2
      %v2634 = vmul.f32 %v2602, 0.2
      %v2635 = vmul.f32 %v2603, 0.2
      %v2636 = vmul.f32 %v2604, 0.2
      %v2637 = vmul.f32 %v2605, 0.2
      %v2638 = vmul.f32 %v2606, 0.2
      %v2639 = vmul.f32 %v2607, 0.2
      %v2640 = vmul.f32 %v2608, 0.2
      %v2641 = vmul.f32 %v2609, 0.2
      %v2642 = vmul.f32 %v2610, 0.2
      %v2643 = vmul.f32 %v2611, 0.2
      %v2644 = vmul.f32 %v2612, 0.2
      %v2645 = vmul.f32 %v2613, 0.2
      %v2646 = vsel %vm2614, %v2598, %v2630
      %v2647 = vsel %vm2615, %v2599, %v2631
      %v2648 = vsel %vm2616, %v2600, %v2632
      %v2649 = vsel %vm2617, %v2601, %v2633
      %v2650 = vsel %vm2618, %v2602, %v2634
      %v2651 = vsel %vm2619, %v2603, %v2635
      %v2652 = vsel %vm2620, %v2604, %v2636
      %v2653 = vsel %vm2621, %v2605, %v2637
      %v2654 = vsel %vm2622, %v2606, %v2638
      %v2655 = vsel %vm2623, %v2607, %v2639
      %v2656 = vsel %vm2624, %v2608, %v2640
      %v2657 = vsel %vm2625, %v2609, %v2641
      %v2658 = vsel %vm2626, %v2610, %v2642
      %v2659 = vsel %vm2627, %v2611, %v2643
      %v2660 = vsel %vm2628, %v2612, %v2644
      %v2661 = vsel %vm2629, %v2613, %v2645
      %v2662 = vsel %vm1194, %v2646, -1e+30
      %v2663 = vsel %vm1195, %v2647, -1e+30
      %v2664 = vsel %vm1196, %v2648, -1e+30
      %v2665 = vsel %vm1197, %v2649, -1e+30
      %v2666 = vsel %vm1198, %v2650, -1e+30
      %v2667 = vsel %vm1199, %v2651, -1e+30
      %v2668 = vsel %vm1200, %v2652, -1e+30
      %v2669 = vsel %vm1201, %v2653, -1e+30
      %v2670 = vsel %vm1202, %v2654, -1e+30
      %v2671 = vsel %vm1203, %v2655, -1e+30
      %v2672 = vsel %vm1204, %v2656, -1e+30
      %v2673 = vsel %vm1205, %v2657, -1e+30
      %v2674 = vsel %vm1206, %v2658, -1e+30
      %v2675 = vsel %vm1207, %v2659, -1e+30
      %v2676 = vsel %vm1208, %v2660, -1e+30
      %v2677 = vsel %vm1209, %v2661, -1e+30
      %2678 = vmax.xlane.f32.xlu0 %v2662
      %v2679 = vpop.xlane.xlu0 %2678
      %2680 = vmax.xlane.f32.xlu0 %v2663
      %v2681 = vpop.xlane.xlu0 %2680
      %2682 = vmax.xlane.f32.xlu0 %v2664
      %v2683 = vpop.xlane.xlu0 %2682
      %2684 = vmax.xlane.f32.xlu0 %v2665
      %v2685 = vpop.xlane.xlu0 %2684
      %2686 = vmax.xlane.f32.xlu0 %v2666
      %v2687 = vpop.xlane.xlu0 %2686
      %2688 = vmax.xlane.f32.xlu0 %v2667
      %v2689 = vpop.xlane.xlu0 %2688
      %2690 = vmax.xlane.f32.xlu0 %v2668
      %v2691 = vpop.xlane.xlu0 %2690
      %2692 = vmax.xlane.f32.xlu0 %v2669
      %v2693 = vpop.xlane.xlu0 %2692
      %2694 = vmax.xlane.f32.xlu0 %v2670
      %v2695 = vpop.xlane.xlu0 %2694
      %2696 = vmax.xlane.f32.xlu0 %v2671
      %v2697 = vpop.xlane.xlu0 %2696
      %2698 = vmax.xlane.f32.xlu0 %v2672
      %v2699 = vpop.xlane.xlu0 %2698
      %2700 = vmax.xlane.f32.xlu0 %v2673
      %v2701 = vpop.xlane.xlu0 %2700
      %2702 = vmax.xlane.f32.xlu0 %v2674
      %v2703 = vpop.xlane.xlu0 %2702
      %2704 = vmax.xlane.f32.xlu0 %v2675
      %v2705 = vpop.xlane.xlu0 %2704
      %2706 = vmax.xlane.f32.xlu0 %v2676
      %v2707 = vpop.xlane.xlu0 %2706
      %2708 = vmax.xlane.f32.xlu0 %v2677
      %v2709 = vpop.xlane.xlu0 %2708
      %v2710 = vsub.f32 %v2662, %v2679
      %v2711 = vsub.f32 %v2663, %v2681
      %v2712 = vsub.f32 %v2664, %v2683
      %v2713 = vsub.f32 %v2665, %v2685
      %v2714 = vsub.f32 %v2666, %v2687
      %v2715 = vsub.f32 %v2667, %v2689
      %v2716 = vsub.f32 %v2668, %v2691
      %v2717 = vsub.f32 %v2669, %v2693
      %v2718 = vsub.f32 %v2670, %v2695
      %v2719 = vsub.f32 %v2671, %v2697
      %v2720 = vsub.f32 %v2672, %v2699
      %v2721 = vsub.f32 %v2673, %v2701
      %v2722 = vsub.f32 %v2674, %v2703
      %v2723 = vsub.f32 %v2675, %v2705
      %v2724 = vsub.f32 %v2676, %v2707
      %v2725 = vsub.f32 %v2677, %v2709
      %v2726 = vmul.f32 %v2710, 1.442695
      %v2727 = vpow.pop %v2726
      %v2728 = vmul.f32 %v2711, 1.442695
      %v2729 = vpow.pop %v2728
      %v2730 = vmul.f32 %v2712, 1.442695
      %v2731 = vpow.pop %v2730
      %v2732 = vmul.f32 %v2713, 1.442695
      %v2733 = vpow.pop %v2732
      %v2734 = vmul.f32 %v2714, 1.442695
      %v2735 = vpow.pop %v2734
      %v2736 = vmul.f32 %v2715, 1.442695
      %v2737 = vpow.pop %v2736
      %v2738 = vmul.f32 %v2716, 1.442695
      %v2739 = vpow.pop %v2738
      %v2740 = vmul.f32 %v2717, 1.442695
      %v2741 = vpow.pop %v2740
      %v2742 = vmul.f32 %v2718, 1.442695
      %v2743 = vpow.pop %v2742
      %v2744 = vmul.f32 %v2719, 1.442695
      %v2745 = vpow.pop %v2744
      %v2746 = vmul.f32 %v2720, 1.442695
      %v2747 = vpow.pop %v2746
      %v2748 = vmul.f32 %v2721, 1.442695
      %v2749 = vpow.pop %v2748
      %v2750 = vmul.f32 %v2722, 1.442695
      %v2751 = vpow.pop %v2750
      %v2752 = vmul.f32 %v2723, 1.442695
      %v2753 = vpow.pop %v2752
      %v2754 = vmul.f32 %v2724, 1.442695
      %v2755 = vpow.pop %v2754
      %v2756 = vmul.f32 %v2725, 1.442695
      %v2757 = vpow.pop %v2756
      %v2758 = vmul.f32 %v2727, %v708
      %v2759 = vmul.f32 %v2729, %v709
      %v2760 = vmul.f32 %v2731, %v710
      %v2761 = vmul.f32 %v2733, %v711
      %v2762 = vmul.f32 %v2735, %v712
      %v2763 = vmul.f32 %v2737, %v713
      %v2764 = vmul.f32 %v2739, %v714
      %v2765 = vmul.f32 %v2741, %v715
      %v2766 = vmul.f32 %v2743, %v716
      %v2767 = vmul.f32 %v2745, %v717
      %v2768 = vmul.f32 %v2747, %v718
      %v2769 = vmul.f32 %v2749, %v719
      %v2770 = vmul.f32 %v2751, %v720
      %v2771 = vmul.f32 %v2753, %v721
      %v2772 = vmul.f32 %v2755, %v722
      %v2773 = vmul.f32 %v2757, %v723
      %2774 = vadd.xlane.f32.xlu0 %v2758
      %v2775 = vpop.xlane.xlu0 %2774
      %2776 = vadd.xlane.f32.xlu0 %v2759
      %v2777 = vpop.xlane.xlu0 %2776
      %2778 = vadd.xlane.f32.xlu0 %v2760
      %v2779 = vpop.xlane.xlu0 %2778
      %2780 = vadd.xlane.f32.xlu0 %v2761
      %v2781 = vpop.xlane.xlu0 %2780
      %2782 = vadd.xlane.f32.xlu0 %v2762
      %v2783 = vpop.xlane.xlu0 %2782
      %2784 = vadd.xlane.f32.xlu0 %v2763
      %v2785 = vpop.xlane.xlu0 %2784
      %2786 = vadd.xlane.f32.xlu0 %v2764
      %v2787 = vpop.xlane.xlu0 %2786
      %2788 = vadd.xlane.f32.xlu0 %v2765
      %v2789 = vpop.xlane.xlu0 %2788
      %2790 = vadd.xlane.f32.xlu0 %v2766
      %v2791 = vpop.xlane.xlu0 %2790
      %2792 = vadd.xlane.f32.xlu0 %v2767
      %v2793 = vpop.xlane.xlu0 %2792
      %2794 = vadd.xlane.f32.xlu0 %v2768
      %v2795 = vpop.xlane.xlu0 %2794
      %2796 = vadd.xlane.f32.xlu0 %v2769
      %v2797 = vpop.xlane.xlu0 %2796
      %2798 = vadd.xlane.f32.xlu0 %v2770
      %v2799 = vpop.xlane.xlu0 %2798
      %2800 = vadd.xlane.f32.xlu0 %v2771
      %v2801 = vpop.xlane.xlu0 %2800
      %2802 = vadd.xlane.f32.xlu0 %v2772
      %v2803 = vpop.xlane.xlu0 %2802
      %2804 = vadd.xlane.f32.xlu0 %v2773
      %v2805 = vpop.xlane.xlu0 %2804
      %v2806 = vrcp.pop %v2775
      %v2807 = vrcp.pop %v2777
      %v2808 = vrcp.pop %v2779
      %v2809 = vrcp.pop %v2781
      %v2810 = vrcp.pop %v2783
      %v2811 = vrcp.pop %v2785
      %v2812 = vrcp.pop %v2787
      %v2813 = vrcp.pop %v2789
      %v2814 = vrcp.pop %v2791
      %v2815 = vrcp.pop %v2793
      %v2816 = vrcp.pop %v2795
      %v2817 = vrcp.pop %v2797
      %v2818 = vrcp.pop %v2799
      %v2819 = vrcp.pop %v2801
      %v2820 = vrcp.pop %v2803
      %v2821 = vrcp.pop %v2805
      %v2822 = vmul.f32 %v2758, %v2806
      %v2823 = vmul.f32 %v2759, %v2807
      %v2824 = vmul.f32 %v2760, %v2808
      %v2825 = vmul.f32 %v2761, %v2809
      %v2826 = vmul.f32 %v2762, %v2810
      %v2827 = vmul.f32 %v2763, %v2811
      %v2828 = vmul.f32 %v2764, %v2812
      %v2829 = vmul.f32 %v2765, %v2813
      %v2830 = vmul.f32 %v2766, %v2814
      %v2831 = vmul.f32 %v2767, %v2815
      %v2832 = vmul.f32 %v2768, %v2816
      %v2833 = vmul.f32 %v2769, %v2817
      %v2834 = vmul.f32 %v2770, %v2818
      %v2835 = vmul.f32 %v2771, %v2819
      %v2836 = vmul.f32 %v2772, %v2820
      %v2837 = vmul.f32 %v2773, %v2821
      %v2838 = vld [vmem:[%s11] sm:$0x1]
      %v2840 = vperm.slane %v2838, 0
      %2842 = vmatpush.msra.mxu0 %v2315
      %2843 = vmatpush.msra.mxu0 %v2312
      %2844 = vmatpush.msra.mxu0 %v2309
      %2845 = vmatpush.msra.mxu0 %v2306
      %2846 = vmatpush.msra.mxu0 %v2303
      %2847 = vmatpush.msra.mxu0 %v2300
      %2848 = vmatpush.msra.mxu0 %v2297
      %2849 = vmatpush.msra.mxu0 %v2294
      %2850 = vmatpush.msra.mxu0 %v2291
      %2851 = vmatpush.msra.mxu0 %v2288
      %2852 = vmatpush.msra.mxu0 %v2285
      %2853 = vmatpush.msra.mxu0 %v2282
      %2854 = vmatpush.msra.mxu0 %v2279
      %2855 = vmatpush.msra.mxu0 %v2276
      %2856 = vmatpush.msra.mxu0 %v2273
      %2857 = vmatpush.msra.mxu0 %v2270
      %2858 = vmatmul.f32.gmra.mxu0 %v2822
      %v2859 = vpop.f32.mrf.mxu0
      %v2860 = vadd.f32 %v2840, %v2859
      %2861 = vmatmul.f32.gmra.mxu0 %v2823
      %v2862 = vpop.f32.mrf.mxu0
      %v2863 = vadd.f32 %v2840, %v2862
      %2864 = vmatmul.f32.gmra.mxu0 %v2824
      %v2865 = vpop.f32.mrf.mxu0
      %v2866 = vadd.f32 %v2840, %v2865
      %2867 = vmatmul.f32.gmra.mxu0 %v2825
      %v2868 = vpop.f32.mrf.mxu0
      %v2869 = vadd.f32 %v2840, %v2868
      %2870 = vmatmul.f32.gmra.mxu0 %v2826
      %v2871 = vpop.f32.mrf.mxu0
      %v2872 = vadd.f32 %v2840, %v2871
      %2873 = vmatmul.f32.gmra.mxu0 %v2827
      %v2874 = vpop.f32.mrf.mxu0
      %v2875 = vadd.f32 %v2840, %v2874
      %2876 = vmatmul.f32.gmra.mxu0 %v2828
      %v2877 = vpop.f32.mrf.mxu0
      %v2878 = vadd.f32 %v2840, %v2877
      %2879 = vmatmul.f32.gmra.mxu0 %v2829
      %v2880 = vpop.f32.mrf.mxu0
      %v2881 = vadd.f32 %v2840, %v2880
      %2882 = vmatmul.f32.gmra.mxu0 %v2830
      %v2883 = vpop.f32.mrf.mxu0
      %v2884 = vadd.f32 %v2840, %v2883
      %2885 = vmatmul.f32.gmra.mxu0 %v2831
      %v2886 = vpop.f32.mrf.mxu0
      %v2887 = vadd.f32 %v2840, %v2886
      %2888 = vmatmul.f32.gmra.mxu0 %v2832
      %v2889 = vpop.f32.mrf.mxu0
      %v2890 = vadd.f32 %v2840, %v2889
      %2891 = vmatmul.f32.gmra.mxu0 %v2833
      %v2892 = vpop.f32.mrf.mxu0
      %v2893 = vadd.f32 %v2840, %v2892
      %2894 = vmatmul.f32.gmra.mxu0 %v2834
      %v2895 = vpop.f32.mrf.mxu0
      %v2896 = vadd.f32 %v2840, %v2895
      %2897 = vmatmul.f32.gmra.mxu0 %v2835
      %v2898 = vpop.f32.mrf.mxu0
      %v2899 = vadd.f32 %v2840, %v2898
      %2900 = vmatmul.f32.gmra.mxu0 %v2836
      %v2901 = vpop.f32.mrf.mxu0
      %v2902 = vadd.f32 %v2840, %v2901
      %2903 = vmatmul.f32.gmra.mxu0 %v2837
      %v2904 = vpop.f32.mrf.mxu0
      %v2905 = vadd.f32 %v2840, %v2904
      %2906 = vdwg.mxu0
      %v2907 = vtanh.pop %v2860
      %v2908 = vtanh.pop %v2863
      %v2909 = vtanh.pop %v2866
      %v2910 = vtanh.pop %v2869
      %v2911 = vtanh.pop %v2872
      %v2912 = vtanh.pop %v2875
      %v2913 = vtanh.pop %v2878
      %v2914 = vtanh.pop %v2881
      %v2915 = vtanh.pop %v2884
      %v2916 = vtanh.pop %v2887
      %v2917 = vtanh.pop %v2890
      %v2918 = vtanh.pop %v2893
      %v2919 = vtanh.pop %v2896
      %v2920 = vtanh.pop %v2899
      %v2921 = vtanh.pop %v2902
      %v2922 = vtanh.pop %v2905
      %v2923 = vld [vmem:[%s12] sm:$0xff]
      %v2924 = vld [vmem:[%s12 + $0x8] sm:$0xff]
      %v2925 = vld [vmem:[%s12 + $0x10] sm:$0xff]
      %v2926 = vld [vmem:[%s12 + $0x18] sm:$0xf]
      %v2928 = vsel %vm851, %v2907, 0
      %v2931 = vsel %vm851, %v2908, 0
      %v2934 = vsel %vm851, %v2909, 0
      %v2937 = vsel %vm851, %v2910, 0
      %v2940 = vsel %vm851, %v2911, 0
      %v2943 = vsel %vm851, %v2912, 0
      %v2946 = vsel %vm851, %v2913, 0
      %v2949 = vsel %vm851, %v2914, 0
      %v2952 = vsel %vm851, %v2915, 0
      %v2955 = vsel %vm851, %v2916, 0
      %v2958 = vsel %vm851, %v2917, 0
      %v2961 = vsel %vm851, %v2918, 0
      %v2964 = vsel %vm851, %v2919, 0
      %v2967 = vsel %vm851, %v2920, 0
      %v2970 = vsel %vm851, %v2921, 0
      %v2973 = vsel %vm851, %v2922, 0
      %v2976 = vsel %vm900, %v2926, 0
      %2978 = vmatpush.msra.mxu0 0.0
      %2979 = vmatpush.msra.mxu0 0.0
      %2980 = vmatpush.msra.mxu0 0.0
      %2981 = vmatpush.msra.mxu0 0.0
      %2982 = vmatpush.msra.mxu0 0.0
      %2983 = vmatpush.msra.mxu0 0.0
      %2984 = vmatpush.msra.mxu0 0.0
      %2985 = vmatpush.msra.mxu0 0.0
      %2986 = vmatpush.msra.mxu0 0.0
      %2987 = vmatpush.msra.mxu0 0.0
      %2988 = vmatpush.msra.mxu0 0.0
      %2989 = vmatpush.msra.mxu0 0.0
      %2990 = vmatpush.msra.mxu0 %v2976
      %2991 = vmatpush.msra.mxu0 %v2925
      %2992 = vmatpush.msra.mxu0 %v2924
      %2993 = vmatpush.msra.mxu0 %v2923
      %2994 = vmatmul.f32.gmra.mxu0 %v2928
      %v2995 = vpop.f32.mrf.mxu0
      %v2996 = vadd.f32 0.0, %v2995
      %2997 = vmatmul.f32.gmra.mxu0 %v2931
      %v2998 = vpop.f32.mrf.mxu0
      %v2999 = vadd.f32 0.0, %v2998
      %3000 = vmatmul.f32.gmra.mxu0 %v2934
      %v3001 = vpop.f32.mrf.mxu0
      %v3002 = vadd.f32 0.0, %v3001
      %3003 = vmatmul.f32.gmra.mxu0 %v2937
      %v3004 = vpop.f32.mrf.mxu0
      %v3005 = vadd.f32 0.0, %v3004
      %3006 = vmatmul.f32.gmra.mxu0 %v2940
      %v3007 = vpop.f32.mrf.mxu0
      %v3008 = vadd.f32 0.0, %v3007
      %3009 = vmatmul.f32.gmra.mxu0 %v2943
      %v3010 = vpop.f32.mrf.mxu0
      %v3011 = vadd.f32 0.0, %v3010
      %3012 = vmatmul.f32.gmra.mxu0 %v2946
      %v3013 = vpop.f32.mrf.mxu0
      %v3014 = vadd.f32 0.0, %v3013
      %3015 = vmatmul.f32.gmra.mxu0 %v2949
      %v3016 = vpop.f32.mrf.mxu0
      %v3017 = vadd.f32 0.0, %v3016
      %3018 = vmatmul.f32.gmra.mxu0 %v2952
      %v3019 = vpop.f32.mrf.mxu0
      %v3020 = vadd.f32 0.0, %v3019
      %3021 = vmatmul.f32.gmra.mxu0 %v2955
      %v3022 = vpop.f32.mrf.mxu0
      %v3023 = vadd.f32 0.0, %v3022
      %3024 = vmatmul.f32.gmra.mxu0 %v2958
      %v3025 = vpop.f32.mrf.mxu0
      %v3026 = vadd.f32 0.0, %v3025
      %3027 = vmatmul.f32.gmra.mxu0 %v2961
      %v3028 = vpop.f32.mrf.mxu0
      %v3029 = vadd.f32 0.0, %v3028
      %3030 = vmatmul.f32.gmra.mxu0 %v2964
      %v3031 = vpop.f32.mrf.mxu0
      %v3032 = vadd.f32 0.0, %v3031
      %3033 = vmatmul.f32.gmra.mxu0 %v2967
      %v3034 = vpop.f32.mrf.mxu0
      %v3035 = vadd.f32 0.0, %v3034
      %3036 = vmatmul.f32.gmra.mxu0 %v2970
      %v3037 = vpop.f32.mrf.mxu0
      %v3038 = vadd.f32 0.0, %v3037
      %3039 = vmatmul.f32.gmra.mxu0 %v2973
      %v3040 = vpop.f32.mrf.mxu0
      %v3041 = vadd.f32 0.0, %v3040
      %3042 = vdwg.mxu0
      %v3043 = vld [vmem:[%s13] sm:$0xff]
      %v3044 = vld [vmem:[%s13 + $0x8] sm:$0xff]
      %v3045 = vld [vmem:[%s13 + $0x10] sm:$0xff]
      %v3046 = vld [vmem:[%s13 + $0x18] sm:$0xf]
      %v3048 = vsel %vm851, %v2996, 0
      %v3051 = vsel %vm851, %v2999, 0
      %v3054 = vsel %vm851, %v3002, 0
      %v3057 = vsel %vm851, %v3005, 0
      %v3060 = vsel %vm851, %v3008, 0
      %v3063 = vsel %vm851, %v3011, 0
      %v3066 = vsel %vm851, %v3014, 0
      %v3069 = vsel %vm851, %v3017, 0
      %v3072 = vsel %vm851, %v3020, 0
      %v3075 = vsel %vm851, %v3023, 0
      %v3078 = vsel %vm851, %v3026, 0
      %v3081 = vsel %vm851, %v3029, 0
      %v3084 = vsel %vm851, %v3032, 0
      %v3087 = vsel %vm851, %v3035, 0
      %v3090 = vsel %vm851, %v3038, 0
      %v3093 = vsel %vm851, %v3041, 0
      %v3096 = vsel %vm900, %v3046, 0
      %3098 = vmatpush.msra.mxu0 0.0
      %3099 = vmatpush.msra.mxu0 0.0
      %3100 = vmatpush.msra.mxu0 0.0
      %3101 = vmatpush.msra.mxu0 0.0
      %3102 = vmatpush.msra.mxu0 0.0
      %3103 = vmatpush.msra.mxu0 0.0
      %3104 = vmatpush.msra.mxu0 0.0
      %3105 = vmatpush.msra.mxu0 0.0
      %3106 = vmatpush.msra.mxu0 0.0
      %3107 = vmatpush.msra.mxu0 0.0
      %3108 = vmatpush.msra.mxu0 0.0
      %3109 = vmatpush.msra.mxu0 0.0
      %3110 = vmatpush.msra.mxu0 %v3096
      %3111 = vmatpush.msra.mxu0 %v3045
      %3112 = vmatpush.msra.mxu0 %v3044
      %3113 = vmatpush.msra.mxu0 %v3043
      %3114 = vmatmul.f32.gmra.mxu0 %v3048
      %v3115 = vpop.f32.mrf.mxu0
      %v3116 = vadd.f32 0.0, %v3115
      %3117 = vmatmul.f32.gmra.mxu0 %v3051
      %v3118 = vpop.f32.mrf.mxu0
      %v3119 = vadd.f32 0.0, %v3118
      %3120 = vmatmul.f32.gmra.mxu0 %v3054
      %v3121 = vpop.f32.mrf.mxu0
      %v3122 = vadd.f32 0.0, %v3121
      %3123 = vmatmul.f32.gmra.mxu0 %v3057
      %v3124 = vpop.f32.mrf.mxu0
      %v3125 = vadd.f32 0.0, %v3124
      %3126 = vmatmul.f32.gmra.mxu0 %v3060
      %v3127 = vpop.f32.mrf.mxu0
      %v3128 = vadd.f32 0.0, %v3127
      %3129 = vmatmul.f32.gmra.mxu0 %v3063
      %v3130 = vpop.f32.mrf.mxu0
      %v3131 = vadd.f32 0.0, %v3130
      %3132 = vmatmul.f32.gmra.mxu0 %v3066
      %v3133 = vpop.f32.mrf.mxu0
      %v3134 = vadd.f32 0.0, %v3133
      %3135 = vmatmul.f32.gmra.mxu0 %v3069
      %v3136 = vpop.f32.mrf.mxu0
      %v3137 = vadd.f32 0.0, %v3136
      %3138 = vmatmul.f32.gmra.mxu0 %v3072
      %v3139 = vpop.f32.mrf.mxu0
      %v3140 = vadd.f32 0.0, %v3139
      %3141 = vmatmul.f32.gmra.mxu0 %v3075
      %v3142 = vpop.f32.mrf.mxu0
      %v3143 = vadd.f32 0.0, %v3142
      %3144 = vmatmul.f32.gmra.mxu0 %v3078
      %v3145 = vpop.f32.mrf.mxu0
      %v3146 = vadd.f32 0.0, %v3145
      %3147 = vmatmul.f32.gmra.mxu0 %v3081
      %v3148 = vpop.f32.mrf.mxu0
      %v3149 = vadd.f32 0.0, %v3148
      %3150 = vmatmul.f32.gmra.mxu0 %v3084
      %v3151 = vpop.f32.mrf.mxu0
      %v3152 = vadd.f32 0.0, %v3151
      %3153 = vmatmul.f32.gmra.mxu0 %v3087
      %v3154 = vpop.f32.mrf.mxu0
      %v3155 = vadd.f32 0.0, %v3154
      %3156 = vmatmul.f32.gmra.mxu0 %v3090
      %v3157 = vpop.f32.mrf.mxu0
      %v3158 = vadd.f32 0.0, %v3157
      %3159 = vmatmul.f32.gmra.mxu0 %v3093
      %v3160 = vpop.f32.mrf.mxu0
      %v3161 = vadd.f32 0.0, %v3160
      %3162 = vdwg.mxu0
      %3179 = vrot.lane.b32.xlu0 %v3116, 127
      %v3180 = vpop.permute.xlu0 %3179
      %3181 = vrot.lane.b32.xlu0 %v3119, 127
      %v3182 = vpop.permute.xlu0 %3181
      %3183 = vrot.lane.b32.xlu0 %v3122, 127
      %v3184 = vpop.permute.xlu0 %3183
      %3185 = vrot.lane.b32.xlu0 %v3125, 127
      %v3186 = vpop.permute.xlu0 %3185
      %3187 = vrot.lane.b32.xlu0 %v3128, 127
      %v3188 = vpop.permute.xlu0 %3187
      %3189 = vrot.lane.b32.xlu0 %v3131, 127
      %v3190 = vpop.permute.xlu0 %3189
      %3191 = vrot.lane.b32.xlu0 %v3134, 127
      %v3192 = vpop.permute.xlu0 %3191
      %3193 = vrot.lane.b32.xlu0 %v3137, 127
      %v3194 = vpop.permute.xlu0 %3193
      %3195 = vrot.lane.b32.xlu0 %v3140, 127
      %v3196 = vpop.permute.xlu0 %3195
      %3197 = vrot.lane.b32.xlu0 %v3143, 127
      %v3198 = vpop.permute.xlu0 %3197
      %3199 = vrot.lane.b32.xlu0 %v3146, 127
      %v3200 = vpop.permute.xlu0 %3199
      %3201 = vrot.lane.b32.xlu0 %v3149, 127
      %v3202 = vpop.permute.xlu0 %3201
      %3203 = vrot.lane.b32.xlu0 %v3152, 127
      %v3204 = vpop.permute.xlu0 %3203
      %3205 = vrot.lane.b32.xlu0 %v3155, 127
      %v3206 = vpop.permute.xlu0 %3205
      %3207 = vrot.lane.b32.xlu0 %v3158, 127
      %v3208 = vpop.permute.xlu0 %3207
      %3209 = vrot.lane.b32.xlu0 %v3161, 127
      %v3210 = vpop.permute.xlu0 %3209
      %3227 = vxpose.xlu0.b32.start [1/16] %v3180, 128
      %3228 = vxpose.xlu0.b32.cont [2/16] %v3182, 128
      %3229 = vxpose.xlu0.b32.cont [3/16] %v3184, 128
      %3230 = vxpose.xlu0.b32.cont [4/16] %v3186, 128
      %3231 = vxpose.xlu0.b32.cont [5/16] %v3188, 128
      %3232 = vxpose.xlu0.b32.cont [6/16] %v3190, 128
      %3233 = vxpose.xlu0.b32.cont [7/16] %v3192, 128
      %3234 = vxpose.xlu0.b32.cont [8/16] %v3194, 128
      %3235 = vxpose.xlu0.b32.cont [9/16] %v3196, 128
      %3236 = vxpose.xlu0.b32.cont [10/16] %v3198, 128
      %3237 = vxpose.xlu0.b32.cont [11/16] %v3200, 128
      %3238 = vxpose.xlu0.b32.cont [12/16] %v3202, 128
      %3239 = vxpose.xlu0.b32.cont [13/16] %v3204, 128
      %3240 = vxpose.xlu0.b32.cont [14/16] %v3206, 128
      %3241 = vxpose.xlu0.b32.cont [15/16] %v3208, 128
      %3242 = vxpose.xlu0.b32.end [16/16] %v3210, 128
      %v3243 = vpop.trf.xlu0
      %v3244 = vpop.trf.xlu0
      %v3245 = vpop.trf.xlu0
      %v3246 = vpop.trf.xlu0
      %v3247 = vpop.trf.xlu0
      %v3248 = vpop.trf.xlu0
      %v3249 = vpop.trf.xlu0
      %v3250 = vpop.trf.xlu0
      %v3251 = vpop.trf.xlu0
      %v3252 = vpop.trf.xlu0
      %v3253 = vpop.trf.xlu0
      %v3254 = vpop.trf.xlu0
      %v3255 = vpop.trf.xlu0
      %v3256 = vpop.trf.xlu0
      %v3257 = vpop.trf.xlu0
      %v3258 = vpop.trf.xlu0
      %3259 = vset.pattern.permute.xlu0 0
      %3260 = vperm.xlu0 %3259, %v3116
      %v3261 = vpop.permute.xlu0 %3260
      %3263 = vset.pattern.permute.xlu0 0
      %3264 = vperm.xlu0 %3263, %v3119
      %v3265 = vpop.permute.xlu0 %3264
      %3267 = vset.pattern.permute.xlu0 0
      %3268 = vperm.xlu0 %3267, %v3122
      %v3269 = vpop.permute.xlu0 %3268
      %3271 = vset.pattern.permute.xlu0 0
      %3272 = vperm.xlu0 %3271, %v3125
      %v3273 = vpop.permute.xlu0 %3272
      %3275 = vset.pattern.permute.xlu0 0
      %3276 = vperm.xlu0 %3275, %v3128
      %v3277 = vpop.permute.xlu0 %3276
      %3279 = vset.pattern.permute.xlu0 0
      %3280 = vperm.xlu0 %3279, %v3131
      %v3281 = vpop.permute.xlu0 %3280
      %3283 = vset.pattern.permute.xlu0 0
      %3284 = vperm.xlu0 %3283, %v3134
      %v3285 = vpop.permute.xlu0 %3284
      %3287 = vset.pattern.permute.xlu0 0
      %3288 = vperm.xlu0 %3287, %v3137
      %v3289 = vpop.permute.xlu0 %3288
      %3291 = vset.pattern.permute.xlu0 0
      %3292 = vperm.xlu0 %3291, %v3140
      %v3293 = vpop.permute.xlu0 %3292
      %3295 = vset.pattern.permute.xlu0 0
      %3296 = vperm.xlu0 %3295, %v3143
      %v3297 = vpop.permute.xlu0 %3296
      %3299 = vset.pattern.permute.xlu0 0
      %3300 = vperm.xlu0 %3299, %v3146
      %v3301 = vpop.permute.xlu0 %3300
      %3303 = vset.pattern.permute.xlu0 0
      %3304 = vperm.xlu0 %3303, %v3149
      %v3305 = vpop.permute.xlu0 %3304
      %3307 = vset.pattern.permute.xlu0 0
      %3308 = vperm.xlu0 %3307, %v3152
      %v3309 = vpop.permute.xlu0 %3308
      %3311 = vset.pattern.permute.xlu0 0
      %3312 = vperm.xlu0 %3311, %v3155
      %v3313 = vpop.permute.xlu0 %3312
      %3315 = vset.pattern.permute.xlu0 0
      %3316 = vperm.xlu0 %3315, %v3158
      %v3317 = vpop.permute.xlu0 %3316
      %3319 = vset.pattern.permute.xlu0 0
      %3320 = vperm.xlu0 %3319, %v3161
      %v3321 = vpop.permute.xlu0 %3320
      %v3323 = vperm.slane %v3243, 0
      %v3324 = vadd.f32 %v3261, %v3323
      %v3325 = vadd.f32 %v3265, %v3323
      %v3326 = vadd.f32 %v3269, %v3323
      %v3327 = vadd.f32 %v3273, %v3323
      %v3328 = vadd.f32 %v3277, %v3323
      %v3329 = vadd.f32 %v3281, %v3323
      %v3330 = vadd.f32 %v3285, %v3323
      %v3331 = vadd.f32 %v3289, %v3323
      %v3332 = vadd.f32 %v3293, %v3323
      %v3333 = vadd.f32 %v3297, %v3323
      %v3334 = vadd.f32 %v3301, %v3323
      %v3335 = vadd.f32 %v3305, %v3323
      %v3336 = vadd.f32 %v3309, %v3323
      %v3337 = vadd.f32 %v3313, %v3323
      %v3338 = vadd.f32 %v3317, %v3323
      %v3339 = vadd.f32 %v3321, %v3323
      %vm3340 = vcmp.gt.f32.partialorder %v3324, 0.0
      %vm3341 = vcmp.gt.f32.partialorder %v3325, 0.0
      %vm3342 = vcmp.gt.f32.partialorder %v3326, 0.0
      %vm3343 = vcmp.gt.f32.partialorder %v3327, 0.0
      %vm3344 = vcmp.gt.f32.partialorder %v3328, 0.0
      %vm3345 = vcmp.gt.f32.partialorder %v3329, 0.0
      %vm3346 = vcmp.gt.f32.partialorder %v3330, 0.0
      %vm3347 = vcmp.gt.f32.partialorder %v3331, 0.0
      %vm3348 = vcmp.gt.f32.partialorder %v3332, 0.0
      %vm3349 = vcmp.gt.f32.partialorder %v3333, 0.0
      %vm3350 = vcmp.gt.f32.partialorder %v3334, 0.0
      %vm3351 = vcmp.gt.f32.partialorder %v3335, 0.0
      %vm3352 = vcmp.gt.f32.partialorder %v3336, 0.0
      %vm3353 = vcmp.gt.f32.partialorder %v3337, 0.0
      %vm3354 = vcmp.gt.f32.partialorder %v3338, 0.0
      %vm3355 = vcmp.gt.f32.partialorder %v3339, 0.0
      %v3356 = vmul.f32 %v3324, 0.2
      %v3357 = vmul.f32 %v3325, 0.2
      %v3358 = vmul.f32 %v3326, 0.2
      %v3359 = vmul.f32 %v3327, 0.2
      %v3360 = vmul.f32 %v3328, 0.2
      %v3361 = vmul.f32 %v3329, 0.2
      %v3362 = vmul.f32 %v3330, 0.2
      %v3363 = vmul.f32 %v3331, 0.2
      %v3364 = vmul.f32 %v3332, 0.2
      %v3365 = vmul.f32 %v3333, 0.2
      %v3366 = vmul.f32 %v3334, 0.2
      %v3367 = vmul.f32 %v3335, 0.2
      %v3368 = vmul.f32 %v3336, 0.2
      %v3369 = vmul.f32 %v3337, 0.2
      %v3370 = vmul.f32 %v3338, 0.2
      %v3371 = vmul.f32 %v3339, 0.2
      %v3372 = vsel %vm3340, %v3324, %v3356
      %v3373 = vsel %vm3341, %v3325, %v3357
      %v3374 = vsel %vm3342, %v3326, %v3358
      %v3375 = vsel %vm3343, %v3327, %v3359
      %v3376 = vsel %vm3344, %v3328, %v3360
      %v3377 = vsel %vm3345, %v3329, %v3361
      %v3378 = vsel %vm3346, %v3330, %v3362
      %v3379 = vsel %vm3347, %v3331, %v3363
      %v3380 = vsel %vm3348, %v3332, %v3364
      %v3381 = vsel %vm3349, %v3333, %v3365
      %v3382 = vsel %vm3350, %v3334, %v3366
      %v3383 = vsel %vm3351, %v3335, %v3367
      %v3384 = vsel %vm3352, %v3336, %v3368
      %v3385 = vsel %vm3353, %v3337, %v3369
      %v3386 = vsel %vm3354, %v3338, %v3370
      %v3387 = vsel %vm3355, %v3339, %v3371
      %v3388 = vsel %vm1194, %v3372, -1e+30
      %v3389 = vsel %vm1195, %v3373, -1e+30
      %v3390 = vsel %vm1196, %v3374, -1e+30
      %v3391 = vsel %vm1197, %v3375, -1e+30
      %v3392 = vsel %vm1198, %v3376, -1e+30
      %v3393 = vsel %vm1199, %v3377, -1e+30
      %v3394 = vsel %vm1200, %v3378, -1e+30
      %v3395 = vsel %vm1201, %v3379, -1e+30
      %v3396 = vsel %vm1202, %v3380, -1e+30
      %v3397 = vsel %vm1203, %v3381, -1e+30
      %v3398 = vsel %vm1204, %v3382, -1e+30
      %v3399 = vsel %vm1205, %v3383, -1e+30
      %v3400 = vsel %vm1206, %v3384, -1e+30
      %v3401 = vsel %vm1207, %v3385, -1e+30
      %v3402 = vsel %vm1208, %v3386, -1e+30
      %v3403 = vsel %vm1209, %v3387, -1e+30
      %3404 = vmax.xlane.f32.xlu0 %v3388
      %v3405 = vpop.xlane.xlu0 %3404
      %3406 = vmax.xlane.f32.xlu0 %v3389
      %v3407 = vpop.xlane.xlu0 %3406
      %3408 = vmax.xlane.f32.xlu0 %v3390
      %v3409 = vpop.xlane.xlu0 %3408
      %3410 = vmax.xlane.f32.xlu0 %v3391
      %v3411 = vpop.xlane.xlu0 %3410
      %3412 = vmax.xlane.f32.xlu0 %v3392
      %v3413 = vpop.xlane.xlu0 %3412
      %3414 = vmax.xlane.f32.xlu0 %v3393
      %v3415 = vpop.xlane.xlu0 %3414
      %3416 = vmax.xlane.f32.xlu0 %v3394
      %v3417 = vpop.xlane.xlu0 %3416
      %3418 = vmax.xlane.f32.xlu0 %v3395
      %v3419 = vpop.xlane.xlu0 %3418
      %3420 = vmax.xlane.f32.xlu0 %v3396
      %v3421 = vpop.xlane.xlu0 %3420
      %3422 = vmax.xlane.f32.xlu0 %v3397
      %v3423 = vpop.xlane.xlu0 %3422
      %3424 = vmax.xlane.f32.xlu0 %v3398
      %v3425 = vpop.xlane.xlu0 %3424
      %3426 = vmax.xlane.f32.xlu0 %v3399
      %v3427 = vpop.xlane.xlu0 %3426
      %3428 = vmax.xlane.f32.xlu0 %v3400
      %v3429 = vpop.xlane.xlu0 %3428
      %3430 = vmax.xlane.f32.xlu0 %v3401
      %v3431 = vpop.xlane.xlu0 %3430
      %3432 = vmax.xlane.f32.xlu0 %v3402
      %v3433 = vpop.xlane.xlu0 %3432
      %3434 = vmax.xlane.f32.xlu0 %v3403
      %v3435 = vpop.xlane.xlu0 %3434
      %v3436 = vsub.f32 %v3388, %v3405
      %v3437 = vsub.f32 %v3389, %v3407
      %v3438 = vsub.f32 %v3390, %v3409
      %v3439 = vsub.f32 %v3391, %v3411
      %v3440 = vsub.f32 %v3392, %v3413
      %v3441 = vsub.f32 %v3393, %v3415
      %v3442 = vsub.f32 %v3394, %v3417
      %v3443 = vsub.f32 %v3395, %v3419
      %v3444 = vsub.f32 %v3396, %v3421
      %v3445 = vsub.f32 %v3397, %v3423
      %v3446 = vsub.f32 %v3398, %v3425
      %v3447 = vsub.f32 %v3399, %v3427
      %v3448 = vsub.f32 %v3400, %v3429
      %v3449 = vsub.f32 %v3401, %v3431
      %v3450 = vsub.f32 %v3402, %v3433
      %v3451 = vsub.f32 %v3403, %v3435
      %v3452 = vmul.f32 %v3436, 1.442695
      %v3453 = vpow.pop %v3452
      %v3454 = vmul.f32 %v3437, 1.442695
      %v3455 = vpow.pop %v3454
      %v3456 = vmul.f32 %v3438, 1.442695
      %v3457 = vpow.pop %v3456
      %v3458 = vmul.f32 %v3439, 1.442695
      %v3459 = vpow.pop %v3458
      %v3460 = vmul.f32 %v3440, 1.442695
      %v3461 = vpow.pop %v3460
      %v3462 = vmul.f32 %v3441, 1.442695
      %v3463 = vpow.pop %v3462
      %v3464 = vmul.f32 %v3442, 1.442695
      %v3465 = vpow.pop %v3464
      %v3466 = vmul.f32 %v3443, 1.442695
      %v3467 = vpow.pop %v3466
      %v3468 = vmul.f32 %v3444, 1.442695
      %v3469 = vpow.pop %v3468
      %v3470 = vmul.f32 %v3445, 1.442695
      %v3471 = vpow.pop %v3470
      %v3472 = vmul.f32 %v3446, 1.442695
      %v3473 = vpow.pop %v3472
      %v3474 = vmul.f32 %v3447, 1.442695
      %v3475 = vpow.pop %v3474
      %v3476 = vmul.f32 %v3448, 1.442695
      %v3477 = vpow.pop %v3476
      %v3478 = vmul.f32 %v3449, 1.442695
      %v3479 = vpow.pop %v3478
      %v3480 = vmul.f32 %v3450, 1.442695
      %v3481 = vpow.pop %v3480
      %v3482 = vmul.f32 %v3451, 1.442695
      %v3483 = vpow.pop %v3482
      %v3484 = vmul.f32 %v3453, %v708
      %v3485 = vmul.f32 %v3455, %v709
      %v3486 = vmul.f32 %v3457, %v710
      %v3487 = vmul.f32 %v3459, %v711
      %v3488 = vmul.f32 %v3461, %v712
      %v3489 = vmul.f32 %v3463, %v713
      %v3490 = vmul.f32 %v3465, %v714
      %v3491 = vmul.f32 %v3467, %v715
      %v3492 = vmul.f32 %v3469, %v716
      %v3493 = vmul.f32 %v3471, %v717
      %v3494 = vmul.f32 %v3473, %v718
      %v3495 = vmul.f32 %v3475, %v719
      %v3496 = vmul.f32 %v3477, %v720
      %v3497 = vmul.f32 %v3479, %v721
      %v3498 = vmul.f32 %v3481, %v722
      %v3499 = vmul.f32 %v3483, %v723
      %3500 = vadd.xlane.f32.xlu0 %v3484
      %v3501 = vpop.xlane.xlu0 %3500
      %3502 = vadd.xlane.f32.xlu0 %v3485
      %v3503 = vpop.xlane.xlu0 %3502
      %3504 = vadd.xlane.f32.xlu0 %v3486
      %v3505 = vpop.xlane.xlu0 %3504
      %3506 = vadd.xlane.f32.xlu0 %v3487
      %v3507 = vpop.xlane.xlu0 %3506
      %3508 = vadd.xlane.f32.xlu0 %v3488
      %v3509 = vpop.xlane.xlu0 %3508
      %3510 = vadd.xlane.f32.xlu0 %v3489
      %v3511 = vpop.xlane.xlu0 %3510
      %3512 = vadd.xlane.f32.xlu0 %v3490
      %v3513 = vpop.xlane.xlu0 %3512
      %3514 = vadd.xlane.f32.xlu0 %v3491
      %v3515 = vpop.xlane.xlu0 %3514
      %3516 = vadd.xlane.f32.xlu0 %v3492
      %v3517 = vpop.xlane.xlu0 %3516
      %3518 = vadd.xlane.f32.xlu0 %v3493
      %v3519 = vpop.xlane.xlu0 %3518
      %3520 = vadd.xlane.f32.xlu0 %v3494
      %v3521 = vpop.xlane.xlu0 %3520
      %3522 = vadd.xlane.f32.xlu0 %v3495
      %v3523 = vpop.xlane.xlu0 %3522
      %3524 = vadd.xlane.f32.xlu0 %v3496
      %v3525 = vpop.xlane.xlu0 %3524
      %3526 = vadd.xlane.f32.xlu0 %v3497
      %v3527 = vpop.xlane.xlu0 %3526
      %3528 = vadd.xlane.f32.xlu0 %v3498
      %v3529 = vpop.xlane.xlu0 %3528
      %3530 = vadd.xlane.f32.xlu0 %v3499
      %v3531 = vpop.xlane.xlu0 %3530
      %v3532 = vrcp.pop %v3501
      %v3533 = vrcp.pop %v3503
      %v3534 = vrcp.pop %v3505
      %v3535 = vrcp.pop %v3507
      %v3536 = vrcp.pop %v3509
      %v3537 = vrcp.pop %v3511
      %v3538 = vrcp.pop %v3513
      %v3539 = vrcp.pop %v3515
      %v3540 = vrcp.pop %v3517
      %v3541 = vrcp.pop %v3519
      %v3542 = vrcp.pop %v3521
      %v3543 = vrcp.pop %v3523
      %v3544 = vrcp.pop %v3525
      %v3545 = vrcp.pop %v3527
      %v3546 = vrcp.pop %v3529
      %v3547 = vrcp.pop %v3531
      %v3548 = vmul.f32 %v3484, %v3532
      %v3549 = vmul.f32 %v3485, %v3533
      %v3550 = vmul.f32 %v3486, %v3534
      %v3551 = vmul.f32 %v3487, %v3535
      %v3552 = vmul.f32 %v3488, %v3536
      %v3553 = vmul.f32 %v3489, %v3537
      %v3554 = vmul.f32 %v3490, %v3538
      %v3555 = vmul.f32 %v3491, %v3539
      %v3556 = vmul.f32 %v3492, %v3540
      %v3557 = vmul.f32 %v3493, %v3541
      %v3558 = vmul.f32 %v3494, %v3542
      %v3559 = vmul.f32 %v3495, %v3543
      %v3560 = vmul.f32 %v3496, %v3544
      %v3561 = vmul.f32 %v3497, %v3545
      %v3562 = vmul.f32 %v3498, %v3546
      %v3563 = vmul.f32 %v3499, %v3547
      %v3564 = vld [vmem:[%s14] sm:$0x1]
      %v3566 = vperm.slane %v3564, 0
      %3568 = vmatpush.msra.mxu0 %v3041
      %3569 = vmatpush.msra.mxu0 %v3038
      %3570 = vmatpush.msra.mxu0 %v3035
      %3571 = vmatpush.msra.mxu0 %v3032
      %3572 = vmatpush.msra.mxu0 %v3029
      %3573 = vmatpush.msra.mxu0 %v3026
      %3574 = vmatpush.msra.mxu0 %v3023
      %3575 = vmatpush.msra.mxu0 %v3020
      %3576 = vmatpush.msra.mxu0 %v3017
      %3577 = vmatpush.msra.mxu0 %v3014
      %3578 = vmatpush.msra.mxu0 %v3011
      %3579 = vmatpush.msra.mxu0 %v3008
      %3580 = vmatpush.msra.mxu0 %v3005
      %3581 = vmatpush.msra.mxu0 %v3002
      %3582 = vmatpush.msra.mxu0 %v2999
      %3583 = vmatpush.msra.mxu0 %v2996
      %3584 = vmatmul.f32.gmra.mxu0 %v3548
      %v3585 = vpop.f32.mrf.mxu0
      %v3586 = vadd.f32 %v3566, %v3585
      %3587 = vmatmul.f32.gmra.mxu0 %v3549
      %v3588 = vpop.f32.mrf.mxu0
      %v3589 = vadd.f32 %v3566, %v3588
      %3590 = vmatmul.f32.gmra.mxu0 %v3550
      %v3591 = vpop.f32.mrf.mxu0
      %v3592 = vadd.f32 %v3566, %v3591
      %3593 = vmatmul.f32.gmra.mxu0 %v3551
      %v3594 = vpop.f32.mrf.mxu0
      %v3595 = vadd.f32 %v3566, %v3594
      %3596 = vmatmul.f32.gmra.mxu0 %v3552
      %v3597 = vpop.f32.mrf.mxu0
      %v3598 = vadd.f32 %v3566, %v3597
      %3599 = vmatmul.f32.gmra.mxu0 %v3553
      %v3600 = vpop.f32.mrf.mxu0
      %v3601 = vadd.f32 %v3566, %v3600
      %3602 = vmatmul.f32.gmra.mxu0 %v3554
      %v3603 = vpop.f32.mrf.mxu0
      %v3604 = vadd.f32 %v3566, %v3603
      %3605 = vmatmul.f32.gmra.mxu0 %v3555
      %v3606 = vpop.f32.mrf.mxu0
      %v3607 = vadd.f32 %v3566, %v3606
      %3608 = vmatmul.f32.gmra.mxu0 %v3556
      %v3609 = vpop.f32.mrf.mxu0
      %v3610 = vadd.f32 %v3566, %v3609
      %3611 = vmatmul.f32.gmra.mxu0 %v3557
      %v3612 = vpop.f32.mrf.mxu0
      %v3613 = vadd.f32 %v3566, %v3612
      %3614 = vmatmul.f32.gmra.mxu0 %v3558
      %v3615 = vpop.f32.mrf.mxu0
      %v3616 = vadd.f32 %v3566, %v3615
      %3617 = vmatmul.f32.gmra.mxu0 %v3559
      %v3618 = vpop.f32.mrf.mxu0
      %v3619 = vadd.f32 %v3566, %v3618
      %3620 = vmatmul.f32.gmra.mxu0 %v3560
      %v3621 = vpop.f32.mrf.mxu0
      %v3622 = vadd.f32 %v3566, %v3621
      %3623 = vmatmul.f32.gmra.mxu0 %v3561
      %v3624 = vpop.f32.mrf.mxu0
      %v3625 = vadd.f32 %v3566, %v3624
      %3626 = vmatmul.f32.gmra.mxu0 %v3562
      %v3627 = vpop.f32.mrf.mxu0
      %v3628 = vadd.f32 %v3566, %v3627
      %3629 = vmatmul.f32.gmra.mxu0 %v3563
      %v3630 = vpop.f32.mrf.mxu0
      %v3631 = vadd.f32 %v3566, %v3630
      %3632 = vdwg.mxu0
      %v3633 = vtanh.pop %v3586
      %v3634 = vtanh.pop %v3589
      %v3635 = vtanh.pop %v3592
      %v3636 = vtanh.pop %v3595
      %v3637 = vtanh.pop %v3598
      %v3638 = vtanh.pop %v3601
      %v3639 = vtanh.pop %v3604
      %v3640 = vtanh.pop %v3607
      %v3641 = vtanh.pop %v3610
      %v3642 = vtanh.pop %v3613
      %v3643 = vtanh.pop %v3616
      %v3644 = vtanh.pop %v3619
      %v3645 = vtanh.pop %v3622
      %v3646 = vtanh.pop %v3625
      %v3647 = vtanh.pop %v3628
      %v3648 = vtanh.pop %v3631
      %v3649 = vld [vmem:[%s15] sm:$0xff]
      %v3650 = vld [vmem:[%s15 + $0x8] sm:$0xff]
      %v3651 = vld [vmem:[%s15 + $0x10] sm:$0xff]
      %v3652 = vld [vmem:[%s15 + $0x18] sm:$0xf]
      %v3654 = vsel %vm851, %v3633, 0
      %v3657 = vsel %vm851, %v3634, 0
      %v3660 = vsel %vm851, %v3635, 0
      %v3663 = vsel %vm851, %v3636, 0
      %v3666 = vsel %vm851, %v3637, 0
      %v3669 = vsel %vm851, %v3638, 0
      %v3672 = vsel %vm851, %v3639, 0
      %v3675 = vsel %vm851, %v3640, 0
      %v3678 = vsel %vm851, %v3641, 0
      %v3681 = vsel %vm851, %v3642, 0
      %v3684 = vsel %vm851, %v3643, 0
      %v3687 = vsel %vm851, %v3644, 0
      %v3690 = vsel %vm851, %v3645, 0
      %v3693 = vsel %vm851, %v3646, 0
      %v3696 = vsel %vm851, %v3647, 0
      %v3699 = vsel %vm851, %v3648, 0
      %v3702 = vsel %vm900, %v3652, 0
      %3704 = vmatpush.msra.mxu0 0.0
      %3705 = vmatpush.msra.mxu0 0.0
      %3706 = vmatpush.msra.mxu0 0.0
      %3707 = vmatpush.msra.mxu0 0.0
      %3708 = vmatpush.msra.mxu0 0.0
      %3709 = vmatpush.msra.mxu0 0.0
      %3710 = vmatpush.msra.mxu0 0.0
      %3711 = vmatpush.msra.mxu0 0.0
      %3712 = vmatpush.msra.mxu0 0.0
      %3713 = vmatpush.msra.mxu0 0.0
      %3714 = vmatpush.msra.mxu0 0.0
      %3715 = vmatpush.msra.mxu0 0.0
      %3716 = vmatpush.msra.mxu0 %v3702
      %3717 = vmatpush.msra.mxu0 %v3651
      %3718 = vmatpush.msra.mxu0 %v3650
      %3719 = vmatpush.msra.mxu0 %v3649
      %3720 = vmatmul.f32.gmra.mxu0 %v3654
      %v3721 = vpop.f32.mrf.mxu0
      %v3722 = vadd.f32 0.0, %v3721
      %3723 = vmatmul.f32.gmra.mxu0 %v3657
      %v3724 = vpop.f32.mrf.mxu0
      %v3725 = vadd.f32 0.0, %v3724
      %3726 = vmatmul.f32.gmra.mxu0 %v3660
      %v3727 = vpop.f32.mrf.mxu0
      %v3728 = vadd.f32 0.0, %v3727
      %3729 = vmatmul.f32.gmra.mxu0 %v3663
      %v3730 = vpop.f32.mrf.mxu0
      %v3731 = vadd.f32 0.0, %v3730
      %3732 = vmatmul.f32.gmra.mxu0 %v3666
      %v3733 = vpop.f32.mrf.mxu0
      %v3734 = vadd.f32 0.0, %v3733
      %3735 = vmatmul.f32.gmra.mxu0 %v3669
      %v3736 = vpop.f32.mrf.mxu0
      %v3737 = vadd.f32 0.0, %v3736
      %3738 = vmatmul.f32.gmra.mxu0 %v3672
      %v3739 = vpop.f32.mrf.mxu0
      %v3740 = vadd.f32 0.0, %v3739
      %3741 = vmatmul.f32.gmra.mxu0 %v3675
      %v3742 = vpop.f32.mrf.mxu0
      %v3743 = vadd.f32 0.0, %v3742
      %3744 = vmatmul.f32.gmra.mxu0 %v3678
      %v3745 = vpop.f32.mrf.mxu0
      %v3746 = vadd.f32 0.0, %v3745
      %3747 = vmatmul.f32.gmra.mxu0 %v3681
      %v3748 = vpop.f32.mrf.mxu0
      %v3749 = vadd.f32 0.0, %v3748
      %3750 = vmatmul.f32.gmra.mxu0 %v3684
      %v3751 = vpop.f32.mrf.mxu0
      %v3752 = vadd.f32 0.0, %v3751
      %3753 = vmatmul.f32.gmra.mxu0 %v3687
      %v3754 = vpop.f32.mrf.mxu0
      %v3755 = vadd.f32 0.0, %v3754
      %3756 = vmatmul.f32.gmra.mxu0 %v3690
      %v3757 = vpop.f32.mrf.mxu0
      %v3758 = vadd.f32 0.0, %v3757
      %3759 = vmatmul.f32.gmra.mxu0 %v3693
      %v3760 = vpop.f32.mrf.mxu0
      %v3761 = vadd.f32 0.0, %v3760
      %3762 = vmatmul.f32.gmra.mxu0 %v3696
      %v3763 = vpop.f32.mrf.mxu0
      %v3764 = vadd.f32 0.0, %v3763
      %3765 = vmatmul.f32.gmra.mxu0 %v3699
      %v3766 = vpop.f32.mrf.mxu0
      %v3767 = vadd.f32 0.0, %v3766
      %3768 = vdwg.mxu0
      %v3769 = vld [vmem:[%s16] sm:$0xff]
      %v3770 = vld [vmem:[%s16 + $0x8] sm:$0xff]
      %v3771 = vld [vmem:[%s16 + $0x10] sm:$0xff]
      %v3772 = vld [vmem:[%s16 + $0x18] sm:$0xf]
      %v3774 = vsel %vm851, %v3722, 0
      %v3777 = vsel %vm851, %v3725, 0
      %v3780 = vsel %vm851, %v3728, 0
      %v3783 = vsel %vm851, %v3731, 0
      %v3786 = vsel %vm851, %v3734, 0
      %v3789 = vsel %vm851, %v3737, 0
      %v3792 = vsel %vm851, %v3740, 0
      %v3795 = vsel %vm851, %v3743, 0
      %v3798 = vsel %vm851, %v3746, 0
      %v3801 = vsel %vm851, %v3749, 0
      %v3804 = vsel %vm851, %v3752, 0
      %v3807 = vsel %vm851, %v3755, 0
      %v3810 = vsel %vm851, %v3758, 0
      %v3813 = vsel %vm851, %v3761, 0
      %v3816 = vsel %vm851, %v3764, 0
      %v3819 = vsel %vm851, %v3767, 0
      %v3822 = vsel %vm900, %v3772, 0
      %3824 = vmatpush.msra.mxu0 0.0
      %3825 = vmatpush.msra.mxu0 0.0
      %3826 = vmatpush.msra.mxu0 0.0
      %3827 = vmatpush.msra.mxu0 0.0
      %3828 = vmatpush.msra.mxu0 0.0
      %3829 = vmatpush.msra.mxu0 0.0
      %3830 = vmatpush.msra.mxu0 0.0
      %3831 = vmatpush.msra.mxu0 0.0
      %3832 = vmatpush.msra.mxu0 0.0
      %3833 = vmatpush.msra.mxu0 0.0
      %3834 = vmatpush.msra.mxu0 0.0
      %3835 = vmatpush.msra.mxu0 0.0
      %3836 = vmatpush.msra.mxu0 %v3822
      %3837 = vmatpush.msra.mxu0 %v3771
      %3838 = vmatpush.msra.mxu0 %v3770
      %3839 = vmatpush.msra.mxu0 %v3769
      %3840 = vmatmul.f32.gmra.mxu0 %v3774
      %v3841 = vpop.f32.mrf.mxu0
      %v3842 = vadd.f32 0.0, %v3841
      %3843 = vmatmul.f32.gmra.mxu0 %v3777
      %v3844 = vpop.f32.mrf.mxu0
      %v3845 = vadd.f32 0.0, %v3844
      %3846 = vmatmul.f32.gmra.mxu0 %v3780
      %v3847 = vpop.f32.mrf.mxu0
      %v3848 = vadd.f32 0.0, %v3847
      %3849 = vmatmul.f32.gmra.mxu0 %v3783
      %v3850 = vpop.f32.mrf.mxu0
      %v3851 = vadd.f32 0.0, %v3850
      %3852 = vmatmul.f32.gmra.mxu0 %v3786
      %v3853 = vpop.f32.mrf.mxu0
      %v3854 = vadd.f32 0.0, %v3853
      %3855 = vmatmul.f32.gmra.mxu0 %v3789
      %v3856 = vpop.f32.mrf.mxu0
      %v3857 = vadd.f32 0.0, %v3856
      %3858 = vmatmul.f32.gmra.mxu0 %v3792
      %v3859 = vpop.f32.mrf.mxu0
      %v3860 = vadd.f32 0.0, %v3859
      %3861 = vmatmul.f32.gmra.mxu0 %v3795
      %v3862 = vpop.f32.mrf.mxu0
      %v3863 = vadd.f32 0.0, %v3862
      %3864 = vmatmul.f32.gmra.mxu0 %v3798
      %v3865 = vpop.f32.mrf.mxu0
      %v3866 = vadd.f32 0.0, %v3865
      %3867 = vmatmul.f32.gmra.mxu0 %v3801
      %v3868 = vpop.f32.mrf.mxu0
      %v3869 = vadd.f32 0.0, %v3868
      %3870 = vmatmul.f32.gmra.mxu0 %v3804
      %v3871 = vpop.f32.mrf.mxu0
      %v3872 = vadd.f32 0.0, %v3871
      %3873 = vmatmul.f32.gmra.mxu0 %v3807
      %v3874 = vpop.f32.mrf.mxu0
      %v3875 = vadd.f32 0.0, %v3874
      %3876 = vmatmul.f32.gmra.mxu0 %v3810
      %v3877 = vpop.f32.mrf.mxu0
      %v3878 = vadd.f32 0.0, %v3877
      %3879 = vmatmul.f32.gmra.mxu0 %v3813
      %v3880 = vpop.f32.mrf.mxu0
      %v3881 = vadd.f32 0.0, %v3880
      %3882 = vmatmul.f32.gmra.mxu0 %v3816
      %v3883 = vpop.f32.mrf.mxu0
      %v3884 = vadd.f32 0.0, %v3883
      %3885 = vmatmul.f32.gmra.mxu0 %v3819
      %v3886 = vpop.f32.mrf.mxu0
      %v3887 = vadd.f32 0.0, %v3886
      %3888 = vdwg.mxu0
      %3905 = vrot.lane.b32.xlu0 %v3842, 127
      %v3906 = vpop.permute.xlu0 %3905
      %3907 = vrot.lane.b32.xlu0 %v3845, 127
      %v3908 = vpop.permute.xlu0 %3907
      %3909 = vrot.lane.b32.xlu0 %v3848, 127
      %v3910 = vpop.permute.xlu0 %3909
      %3911 = vrot.lane.b32.xlu0 %v3851, 127
      %v3912 = vpop.permute.xlu0 %3911
      %3913 = vrot.lane.b32.xlu0 %v3854, 127
      %v3914 = vpop.permute.xlu0 %3913
      %3915 = vrot.lane.b32.xlu0 %v3857, 127
      %v3916 = vpop.permute.xlu0 %3915
      %3917 = vrot.lane.b32.xlu0 %v3860, 127
      %v3918 = vpop.permute.xlu0 %3917
      %3919 = vrot.lane.b32.xlu0 %v3863, 127
      %v3920 = vpop.permute.xlu0 %3919
      %3921 = vrot.lane.b32.xlu0 %v3866, 127
      %v3922 = vpop.permute.xlu0 %3921
      %3923 = vrot.lane.b32.xlu0 %v3869, 127
      %v3924 = vpop.permute.xlu0 %3923
      %3925 = vrot.lane.b32.xlu0 %v3872, 127
      %v3926 = vpop.permute.xlu0 %3925
      %3927 = vrot.lane.b32.xlu0 %v3875, 127
      %v3928 = vpop.permute.xlu0 %3927
      %3929 = vrot.lane.b32.xlu0 %v3878, 127
      %v3930 = vpop.permute.xlu0 %3929
      %3931 = vrot.lane.b32.xlu0 %v3881, 127
      %v3932 = vpop.permute.xlu0 %3931
      %3933 = vrot.lane.b32.xlu0 %v3884, 127
      %v3934 = vpop.permute.xlu0 %3933
      %3935 = vrot.lane.b32.xlu0 %v3887, 127
      %v3936 = vpop.permute.xlu0 %3935
      %3953 = vxpose.xlu0.b32.start [1/16] %v3906, 128
      %3954 = vxpose.xlu0.b32.cont [2/16] %v3908, 128
      %3955 = vxpose.xlu0.b32.cont [3/16] %v3910, 128
      %3956 = vxpose.xlu0.b32.cont [4/16] %v3912, 128
      %3957 = vxpose.xlu0.b32.cont [5/16] %v3914, 128
      %3958 = vxpose.xlu0.b32.cont [6/16] %v3916, 128
      %3959 = vxpose.xlu0.b32.cont [7/16] %v3918, 128
      %3960 = vxpose.xlu0.b32.cont [8/16] %v3920, 128
      %3961 = vxpose.xlu0.b32.cont [9/16] %v3922, 128
      %3962 = vxpose.xlu0.b32.cont [10/16] %v3924, 128
      %3963 = vxpose.xlu0.b32.cont [11/16] %v3926, 128
      %3964 = vxpose.xlu0.b32.cont [12/16] %v3928, 128
      %3965 = vxpose.xlu0.b32.cont [13/16] %v3930, 128
      %3966 = vxpose.xlu0.b32.cont [14/16] %v3932, 128
      %3967 = vxpose.xlu0.b32.cont [15/16] %v3934, 128
      %3968 = vxpose.xlu0.b32.end [16/16] %v3936, 128
      %v3969 = vpop.trf.xlu0
      %v3970 = vpop.trf.xlu0
      %v3971 = vpop.trf.xlu0
      %v3972 = vpop.trf.xlu0
      %v3973 = vpop.trf.xlu0
      %v3974 = vpop.trf.xlu0
      %v3975 = vpop.trf.xlu0
      %v3976 = vpop.trf.xlu0
      %v3977 = vpop.trf.xlu0
      %v3978 = vpop.trf.xlu0
      %v3979 = vpop.trf.xlu0
      %v3980 = vpop.trf.xlu0
      %v3981 = vpop.trf.xlu0
      %v3982 = vpop.trf.xlu0
      %v3983 = vpop.trf.xlu0
      %v3984 = vpop.trf.xlu0
      %3985 = vset.pattern.permute.xlu0 0
      %3986 = vperm.xlu0 %3985, %v3842
      %v3987 = vpop.permute.xlu0 %3986
      %3989 = vset.pattern.permute.xlu0 0
      %3990 = vperm.xlu0 %3989, %v3845
      %v3991 = vpop.permute.xlu0 %3990
      %3993 = vset.pattern.permute.xlu0 0
      %3994 = vperm.xlu0 %3993, %v3848
      %v3995 = vpop.permute.xlu0 %3994
      %3997 = vset.pattern.permute.xlu0 0
      %3998 = vperm.xlu0 %3997, %v3851
      %v3999 = vpop.permute.xlu0 %3998
      %4001 = vset.pattern.permute.xlu0 0
      %4002 = vperm.xlu0 %4001, %v3854
      %v4003 = vpop.permute.xlu0 %4002
      %4005 = vset.pattern.permute.xlu0 0
      %4006 = vperm.xlu0 %4005, %v3857
      %v4007 = vpop.permute.xlu0 %4006
      %4009 = vset.pattern.permute.xlu0 0
      %4010 = vperm.xlu0 %4009, %v3860
      %v4011 = vpop.permute.xlu0 %4010
      %4013 = vset.pattern.permute.xlu0 0
      %4014 = vperm.xlu0 %4013, %v3863
      %v4015 = vpop.permute.xlu0 %4014
      %4017 = vset.pattern.permute.xlu0 0
      %4018 = vperm.xlu0 %4017, %v3866
      %v4019 = vpop.permute.xlu0 %4018
      %4021 = vset.pattern.permute.xlu0 0
      %4022 = vperm.xlu0 %4021, %v3869
      %v4023 = vpop.permute.xlu0 %4022
      %4025 = vset.pattern.permute.xlu0 0
      %4026 = vperm.xlu0 %4025, %v3872
      %v4027 = vpop.permute.xlu0 %4026
      %4029 = vset.pattern.permute.xlu0 0
      %4030 = vperm.xlu0 %4029, %v3875
      %v4031 = vpop.permute.xlu0 %4030
      %4033 = vset.pattern.permute.xlu0 0
      %4034 = vperm.xlu0 %4033, %v3878
      %v4035 = vpop.permute.xlu0 %4034
      %4037 = vset.pattern.permute.xlu0 0
      %4038 = vperm.xlu0 %4037, %v3881
      %v4039 = vpop.permute.xlu0 %4038
      %4041 = vset.pattern.permute.xlu0 0
      %4042 = vperm.xlu0 %4041, %v3884
      %v4043 = vpop.permute.xlu0 %4042
      %4045 = vset.pattern.permute.xlu0 0
      %4046 = vperm.xlu0 %4045, %v3887
      %v4047 = vpop.permute.xlu0 %4046
      %v4049 = vperm.slane %v3969, 0
      %v4050 = vadd.f32 %v3987, %v4049
      %v4051 = vadd.f32 %v3991, %v4049
      %v4052 = vadd.f32 %v3995, %v4049
      %v4053 = vadd.f32 %v3999, %v4049
      %v4054 = vadd.f32 %v4003, %v4049
      %v4055 = vadd.f32 %v4007, %v4049
      %v4056 = vadd.f32 %v4011, %v4049
      %v4057 = vadd.f32 %v4015, %v4049
      %v4058 = vadd.f32 %v4019, %v4049
      %v4059 = vadd.f32 %v4023, %v4049
      %v4060 = vadd.f32 %v4027, %v4049
      %v4061 = vadd.f32 %v4031, %v4049
      %v4062 = vadd.f32 %v4035, %v4049
      %v4063 = vadd.f32 %v4039, %v4049
      %v4064 = vadd.f32 %v4043, %v4049
      %v4065 = vadd.f32 %v4047, %v4049
      %vm4066 = vcmp.gt.f32.partialorder %v4050, 0.0
      %vm4067 = vcmp.gt.f32.partialorder %v4051, 0.0
      %vm4068 = vcmp.gt.f32.partialorder %v4052, 0.0
      %vm4069 = vcmp.gt.f32.partialorder %v4053, 0.0
      %vm4070 = vcmp.gt.f32.partialorder %v4054, 0.0
      %vm4071 = vcmp.gt.f32.partialorder %v4055, 0.0
      %vm4072 = vcmp.gt.f32.partialorder %v4056, 0.0
      %vm4073 = vcmp.gt.f32.partialorder %v4057, 0.0
      %vm4074 = vcmp.gt.f32.partialorder %v4058, 0.0
      %vm4075 = vcmp.gt.f32.partialorder %v4059, 0.0
      %vm4076 = vcmp.gt.f32.partialorder %v4060, 0.0
      %vm4077 = vcmp.gt.f32.partialorder %v4061, 0.0
      %vm4078 = vcmp.gt.f32.partialorder %v4062, 0.0
      %vm4079 = vcmp.gt.f32.partialorder %v4063, 0.0
      %vm4080 = vcmp.gt.f32.partialorder %v4064, 0.0
      %vm4081 = vcmp.gt.f32.partialorder %v4065, 0.0
      %v4082 = vmul.f32 %v4050, 0.2
      %v4083 = vmul.f32 %v4051, 0.2
      %v4084 = vmul.f32 %v4052, 0.2
      %v4085 = vmul.f32 %v4053, 0.2
      %v4086 = vmul.f32 %v4054, 0.2
      %v4087 = vmul.f32 %v4055, 0.2
      %v4088 = vmul.f32 %v4056, 0.2
      %v4089 = vmul.f32 %v4057, 0.2
      %v4090 = vmul.f32 %v4058, 0.2
      %v4091 = vmul.f32 %v4059, 0.2
      %v4092 = vmul.f32 %v4060, 0.2
      %v4093 = vmul.f32 %v4061, 0.2
      %v4094 = vmul.f32 %v4062, 0.2
      %v4095 = vmul.f32 %v4063, 0.2
      %v4096 = vmul.f32 %v4064, 0.2
      %v4097 = vmul.f32 %v4065, 0.2
      %v4098 = vsel %vm4066, %v4050, %v4082
      %v4099 = vsel %vm4067, %v4051, %v4083
      %v4100 = vsel %vm4068, %v4052, %v4084
      %v4101 = vsel %vm4069, %v4053, %v4085
      %v4102 = vsel %vm4070, %v4054, %v4086
      %v4103 = vsel %vm4071, %v4055, %v4087
      %v4104 = vsel %vm4072, %v4056, %v4088
      %v4105 = vsel %vm4073, %v4057, %v4089
      %v4106 = vsel %vm4074, %v4058, %v4090
      %v4107 = vsel %vm4075, %v4059, %v4091
      %v4108 = vsel %vm4076, %v4060, %v4092
      %v4109 = vsel %vm4077, %v4061, %v4093
      %v4110 = vsel %vm4078, %v4062, %v4094
      %v4111 = vsel %vm4079, %v4063, %v4095
      %v4112 = vsel %vm4080, %v4064, %v4096
      %v4113 = vsel %vm4081, %v4065, %v4097
      %v4114 = vsel %vm1194, %v4098, -1e+30
      %v4115 = vsel %vm1195, %v4099, -1e+30
      %v4116 = vsel %vm1196, %v4100, -1e+30
      %v4117 = vsel %vm1197, %v4101, -1e+30
      %v4118 = vsel %vm1198, %v4102, -1e+30
      %v4119 = vsel %vm1199, %v4103, -1e+30
      %v4120 = vsel %vm1200, %v4104, -1e+30
      %v4121 = vsel %vm1201, %v4105, -1e+30
      %v4122 = vsel %vm1202, %v4106, -1e+30
      %v4123 = vsel %vm1203, %v4107, -1e+30
      %v4124 = vsel %vm1204, %v4108, -1e+30
      %v4125 = vsel %vm1205, %v4109, -1e+30
      %v4126 = vsel %vm1206, %v4110, -1e+30
      %v4127 = vsel %vm1207, %v4111, -1e+30
      %v4128 = vsel %vm1208, %v4112, -1e+30
      %v4129 = vsel %vm1209, %v4113, -1e+30
      %4130 = vmax.xlane.f32.xlu0 %v4114
      %v4131 = vpop.xlane.xlu0 %4130
      %4132 = vmax.xlane.f32.xlu0 %v4115
      %v4133 = vpop.xlane.xlu0 %4132
      %4134 = vmax.xlane.f32.xlu0 %v4116
      %v4135 = vpop.xlane.xlu0 %4134
      %4136 = vmax.xlane.f32.xlu0 %v4117
      %v4137 = vpop.xlane.xlu0 %4136
      %4138 = vmax.xlane.f32.xlu0 %v4118
      %v4139 = vpop.xlane.xlu0 %4138
      %4140 = vmax.xlane.f32.xlu0 %v4119
      %v4141 = vpop.xlane.xlu0 %4140
      %4142 = vmax.xlane.f32.xlu0 %v4120
      %v4143 = vpop.xlane.xlu0 %4142
      %4144 = vmax.xlane.f32.xlu0 %v4121
      %v4145 = vpop.xlane.xlu0 %4144
      %4146 = vmax.xlane.f32.xlu0 %v4122
      %v4147 = vpop.xlane.xlu0 %4146
      %4148 = vmax.xlane.f32.xlu0 %v4123
      %v4149 = vpop.xlane.xlu0 %4148
      %4150 = vmax.xlane.f32.xlu0 %v4124
      %v4151 = vpop.xlane.xlu0 %4150
      %4152 = vmax.xlane.f32.xlu0 %v4125
      %v4153 = vpop.xlane.xlu0 %4152
      %4154 = vmax.xlane.f32.xlu0 %v4126
      %v4155 = vpop.xlane.xlu0 %4154
      %4156 = vmax.xlane.f32.xlu0 %v4127
      %v4157 = vpop.xlane.xlu0 %4156
      %4158 = vmax.xlane.f32.xlu0 %v4128
      %v4159 = vpop.xlane.xlu0 %4158
      %4160 = vmax.xlane.f32.xlu0 %v4129
      %v4161 = vpop.xlane.xlu0 %4160
      %v4162 = vsub.f32 %v4114, %v4131
      %v4163 = vsub.f32 %v4115, %v4133
      %v4164 = vsub.f32 %v4116, %v4135
      %v4165 = vsub.f32 %v4117, %v4137
      %v4166 = vsub.f32 %v4118, %v4139
      %v4167 = vsub.f32 %v4119, %v4141
      %v4168 = vsub.f32 %v4120, %v4143
      %v4169 = vsub.f32 %v4121, %v4145
      %v4170 = vsub.f32 %v4122, %v4147
      %v4171 = vsub.f32 %v4123, %v4149
      %v4172 = vsub.f32 %v4124, %v4151
      %v4173 = vsub.f32 %v4125, %v4153
      %v4174 = vsub.f32 %v4126, %v4155
      %v4175 = vsub.f32 %v4127, %v4157
      %v4176 = vsub.f32 %v4128, %v4159
      %v4177 = vsub.f32 %v4129, %v4161
      %v4178 = vmul.f32 %v4162, 1.442695
      %v4179 = vpow.pop %v4178
      %v4180 = vmul.f32 %v4163, 1.442695
      %v4181 = vpow.pop %v4180
      %v4182 = vmul.f32 %v4164, 1.442695
      %v4183 = vpow.pop %v4182
      %v4184 = vmul.f32 %v4165, 1.442695
      %v4185 = vpow.pop %v4184
      %v4186 = vmul.f32 %v4166, 1.442695
      %v4187 = vpow.pop %v4186
      %v4188 = vmul.f32 %v4167, 1.442695
      %v4189 = vpow.pop %v4188
      %v4190 = vmul.f32 %v4168, 1.442695
      %v4191 = vpow.pop %v4190
      %v4192 = vmul.f32 %v4169, 1.442695
      %v4193 = vpow.pop %v4192
      %v4194 = vmul.f32 %v4170, 1.442695
      %v4195 = vpow.pop %v4194
      %v4196 = vmul.f32 %v4171, 1.442695
      %v4197 = vpow.pop %v4196
      %v4198 = vmul.f32 %v4172, 1.442695
      %v4199 = vpow.pop %v4198
      %v4200 = vmul.f32 %v4173, 1.442695
      %v4201 = vpow.pop %v4200
      %v4202 = vmul.f32 %v4174, 1.442695
      %v4203 = vpow.pop %v4202
      %v4204 = vmul.f32 %v4175, 1.442695
      %v4205 = vpow.pop %v4204
      %v4206 = vmul.f32 %v4176, 1.442695
      %v4207 = vpow.pop %v4206
      %v4208 = vmul.f32 %v4177, 1.442695
      %v4209 = vpow.pop %v4208
      %v4210 = vmul.f32 %v4179, %v708
      %v4211 = vmul.f32 %v4181, %v709
      %v4212 = vmul.f32 %v4183, %v710
      %v4213 = vmul.f32 %v4185, %v711
      %v4214 = vmul.f32 %v4187, %v712
      %v4215 = vmul.f32 %v4189, %v713
      %v4216 = vmul.f32 %v4191, %v714
      %v4217 = vmul.f32 %v4193, %v715
      %v4218 = vmul.f32 %v4195, %v716
      %v4219 = vmul.f32 %v4197, %v717
      %v4220 = vmul.f32 %v4199, %v718
      %v4221 = vmul.f32 %v4201, %v719
      %v4222 = vmul.f32 %v4203, %v720
      %v4223 = vmul.f32 %v4205, %v721
      %v4224 = vmul.f32 %v4207, %v722
      %v4225 = vmul.f32 %v4209, %v723
      %4226 = vadd.xlane.f32.xlu0 %v4210
      %v4227 = vpop.xlane.xlu0 %4226
      %4228 = vadd.xlane.f32.xlu0 %v4211
      %v4229 = vpop.xlane.xlu0 %4228
      %4230 = vadd.xlane.f32.xlu0 %v4212
      %v4231 = vpop.xlane.xlu0 %4230
      %4232 = vadd.xlane.f32.xlu0 %v4213
      %v4233 = vpop.xlane.xlu0 %4232
      %4234 = vadd.xlane.f32.xlu0 %v4214
      %v4235 = vpop.xlane.xlu0 %4234
      %4236 = vadd.xlane.f32.xlu0 %v4215
      %v4237 = vpop.xlane.xlu0 %4236
      %4238 = vadd.xlane.f32.xlu0 %v4216
      %v4239 = vpop.xlane.xlu0 %4238
      %4240 = vadd.xlane.f32.xlu0 %v4217
      %v4241 = vpop.xlane.xlu0 %4240
      %4242 = vadd.xlane.f32.xlu0 %v4218
      %v4243 = vpop.xlane.xlu0 %4242
      %4244 = vadd.xlane.f32.xlu0 %v4219
      %v4245 = vpop.xlane.xlu0 %4244
      %4246 = vadd.xlane.f32.xlu0 %v4220
      %v4247 = vpop.xlane.xlu0 %4246
      %4248 = vadd.xlane.f32.xlu0 %v4221
      %v4249 = vpop.xlane.xlu0 %4248
      %4250 = vadd.xlane.f32.xlu0 %v4222
      %v4251 = vpop.xlane.xlu0 %4250
      %4252 = vadd.xlane.f32.xlu0 %v4223
      %v4253 = vpop.xlane.xlu0 %4252
      %4254 = vadd.xlane.f32.xlu0 %v4224
      %v4255 = vpop.xlane.xlu0 %4254
      %4256 = vadd.xlane.f32.xlu0 %v4225
      %v4257 = vpop.xlane.xlu0 %4256
      %v4258 = vrcp.pop %v4227
      %v4259 = vrcp.pop %v4229
      %v4260 = vrcp.pop %v4231
      %v4261 = vrcp.pop %v4233
      %v4262 = vrcp.pop %v4235
      %v4263 = vrcp.pop %v4237
      %v4264 = vrcp.pop %v4239
      %v4265 = vrcp.pop %v4241
      %v4266 = vrcp.pop %v4243
      %v4267 = vrcp.pop %v4245
      %v4268 = vrcp.pop %v4247
      %v4269 = vrcp.pop %v4249
      %v4270 = vrcp.pop %v4251
      %v4271 = vrcp.pop %v4253
      %v4272 = vrcp.pop %v4255
      %v4273 = vrcp.pop %v4257
      %v4274 = vmul.f32 %v4210, %v4258
      %v4275 = vmul.f32 %v4211, %v4259
      %v4276 = vmul.f32 %v4212, %v4260
      %v4277 = vmul.f32 %v4213, %v4261
      %v4278 = vmul.f32 %v4214, %v4262
      %v4279 = vmul.f32 %v4215, %v4263
      %v4280 = vmul.f32 %v4216, %v4264
      %v4281 = vmul.f32 %v4217, %v4265
      %v4282 = vmul.f32 %v4218, %v4266
      %v4283 = vmul.f32 %v4219, %v4267
      %v4284 = vmul.f32 %v4220, %v4268
      %v4285 = vmul.f32 %v4221, %v4269
      %v4286 = vmul.f32 %v4222, %v4270
      %v4287 = vmul.f32 %v4223, %v4271
      %v4288 = vmul.f32 %v4224, %v4272
      %v4289 = vmul.f32 %v4225, %v4273
      %v4290 = vld [vmem:[%s17] sm:$0x1]
      %v4292 = vperm.slane %v4290, 0
      %4294 = vmatpush.msra.mxu0 %v3767
      %4295 = vmatpush.msra.mxu0 %v3764
      %4296 = vmatpush.msra.mxu0 %v3761
      %4297 = vmatpush.msra.mxu0 %v3758
      %4298 = vmatpush.msra.mxu0 %v3755
      %4299 = vmatpush.msra.mxu0 %v3752
      %4300 = vmatpush.msra.mxu0 %v3749
      %4301 = vmatpush.msra.mxu0 %v3746
      %4302 = vmatpush.msra.mxu0 %v3743
      %4303 = vmatpush.msra.mxu0 %v3740
      %4304 = vmatpush.msra.mxu0 %v3737
      %4305 = vmatpush.msra.mxu0 %v3734
      %4306 = vmatpush.msra.mxu0 %v3731
      %4307 = vmatpush.msra.mxu0 %v3728
      %4308 = vmatpush.msra.mxu0 %v3725
      %4309 = vmatpush.msra.mxu0 %v3722
      %4310 = vmatmul.f32.gmra.mxu0 %v4274
      %v4311 = vpop.f32.mrf.mxu0
      %v4312 = vadd.f32 %v4292, %v4311
      %4313 = vmatmul.f32.gmra.mxu0 %v4275
      %v4314 = vpop.f32.mrf.mxu0
      %v4315 = vadd.f32 %v4292, %v4314
      %4316 = vmatmul.f32.gmra.mxu0 %v4276
      %v4317 = vpop.f32.mrf.mxu0
      %v4318 = vadd.f32 %v4292, %v4317
      %4319 = vmatmul.f32.gmra.mxu0 %v4277
      %v4320 = vpop.f32.mrf.mxu0
      %v4321 = vadd.f32 %v4292, %v4320
      %4322 = vmatmul.f32.gmra.mxu0 %v4278
      %v4323 = vpop.f32.mrf.mxu0
      %v4324 = vadd.f32 %v4292, %v4323
      %4325 = vmatmul.f32.gmra.mxu0 %v4279
      %v4326 = vpop.f32.mrf.mxu0
      %v4327 = vadd.f32 %v4292, %v4326
      %4328 = vmatmul.f32.gmra.mxu0 %v4280
      %v4329 = vpop.f32.mrf.mxu0
      %v4330 = vadd.f32 %v4292, %v4329
      %4331 = vmatmul.f32.gmra.mxu0 %v4281
      %v4332 = vpop.f32.mrf.mxu0
      %v4333 = vadd.f32 %v4292, %v4332
      %4334 = vmatmul.f32.gmra.mxu0 %v4282
      %v4335 = vpop.f32.mrf.mxu0
      %v4336 = vadd.f32 %v4292, %v4335
      %4337 = vmatmul.f32.gmra.mxu0 %v4283
      %v4338 = vpop.f32.mrf.mxu0
      %v4339 = vadd.f32 %v4292, %v4338
      %4340 = vmatmul.f32.gmra.mxu0 %v4284
      %v4341 = vpop.f32.mrf.mxu0
      %v4342 = vadd.f32 %v4292, %v4341
      %4343 = vmatmul.f32.gmra.mxu0 %v4285
      %v4344 = vpop.f32.mrf.mxu0
      %v4345 = vadd.f32 %v4292, %v4344
      %4346 = vmatmul.f32.gmra.mxu0 %v4286
      %v4347 = vpop.f32.mrf.mxu0
      %v4348 = vadd.f32 %v4292, %v4347
      %4349 = vmatmul.f32.gmra.mxu0 %v4287
      %v4350 = vpop.f32.mrf.mxu0
      %v4351 = vadd.f32 %v4292, %v4350
      %4352 = vmatmul.f32.gmra.mxu0 %v4288
      %v4353 = vpop.f32.mrf.mxu0
      %v4354 = vadd.f32 %v4292, %v4353
      %4355 = vmatmul.f32.gmra.mxu0 %v4289
      %v4356 = vpop.f32.mrf.mxu0
      %v4357 = vadd.f32 %v4292, %v4356
      %4358 = vdwg.mxu0
      %v4359 = vtanh.pop %v4312
      %v4360 = vtanh.pop %v4315
      %v4361 = vtanh.pop %v4318
      %v4362 = vtanh.pop %v4321
      %v4363 = vtanh.pop %v4324
      %v4364 = vtanh.pop %v4327
      %v4365 = vtanh.pop %v4330
      %v4366 = vtanh.pop %v4333
      %v4367 = vtanh.pop %v4336
      %v4368 = vtanh.pop %v4339
      %v4369 = vtanh.pop %v4342
      %v4370 = vtanh.pop %v4345
      %v4371 = vtanh.pop %v4348
      %v4372 = vtanh.pop %v4351
      %v4373 = vtanh.pop %v4354
      %v4374 = vtanh.pop %v4357
      %v4375 = vld [vmem:[%s18] sm:$0xff]
      %v4376 = vld [vmem:[%s18 + $0x8] sm:$0xff]
      %v4377 = vld [vmem:[%s18 + $0x10] sm:$0xff]
      %v4378 = vld [vmem:[%s18 + $0x18] sm:$0xf]
      %v4379 = vld [vmem:[#allocation2] sm:$0x1]
      %v4381 = vperm.slane %v4379, 0
      %v4384 = vsel %vm851, %v4359, 0
      %v4387 = vsel %vm851, %v4360, 0
      %v4390 = vsel %vm851, %v4361, 0
      %v4393 = vsel %vm851, %v4362, 0
      %v4396 = vsel %vm851, %v4363, 0
      %v4399 = vsel %vm851, %v4364, 0
      %v4402 = vsel %vm851, %v4365, 0
      %v4405 = vsel %vm851, %v4366, 0
      %v4408 = vsel %vm851, %v4367, 0
      %v4411 = vsel %vm851, %v4368, 0
      %v4414 = vsel %vm851, %v4369, 0
      %v4417 = vsel %vm851, %v4370, 0
      %v4420 = vsel %vm851, %v4371, 0
      %v4423 = vsel %vm851, %v4372, 0
      %v4426 = vsel %vm851, %v4373, 0
      %v4429 = vsel %vm851, %v4374, 0
      %v4432 = vsel %vm900, %v4378, 0
      %4434 = vmatpush.msra.mxu0 0.0
      %4435 = vmatpush.msra.mxu0 0.0
      %4436 = vmatpush.msra.mxu0 0.0
      %4437 = vmatpush.msra.mxu0 0.0
      %4438 = vmatpush.msra.mxu0 0.0
      %4439 = vmatpush.msra.mxu0 0.0
      %4440 = vmatpush.msra.mxu0 0.0
      %4441 = vmatpush.msra.mxu0 0.0
      %4442 = vmatpush.msra.mxu0 0.0
      %4443 = vmatpush.msra.mxu0 0.0
      %4444 = vmatpush.msra.mxu0 0.0
      %4445 = vmatpush.msra.mxu0 0.0
      %4446 = vmatpush.msra.mxu0 %v4432
      %4447 = vmatpush.msra.mxu0 %v4377
      %4448 = vmatpush.msra.mxu0 %v4376
      %4449 = vmatpush.msra.mxu0 %v4375
      %4450 = vmatmul.f32.gmra.mxu0 %v4384
      %v4451 = vpop.f32.mrf.mxu0
      %v4452 = vadd.f32 %v4381, %v4451
      %4453 = vmatmul.f32.gmra.mxu0 %v4387
      %v4454 = vpop.f32.mrf.mxu0
      %v4455 = vadd.f32 %v4381, %v4454
      %4456 = vmatmul.f32.gmra.mxu0 %v4390
      %v4457 = vpop.f32.mrf.mxu0
      %v4458 = vadd.f32 %v4381, %v4457
      %4459 = vmatmul.f32.gmra.mxu0 %v4393
      %v4460 = vpop.f32.mrf.mxu0
      %v4461 = vadd.f32 %v4381, %v4460
      %4462 = vmatmul.f32.gmra.mxu0 %v4396
      %v4463 = vpop.f32.mrf.mxu0
      %v4464 = vadd.f32 %v4381, %v4463
      %4465 = vmatmul.f32.gmra.mxu0 %v4399
      %v4466 = vpop.f32.mrf.mxu0
      %v4467 = vadd.f32 %v4381, %v4466
      %4468 = vmatmul.f32.gmra.mxu0 %v4402
      %v4469 = vpop.f32.mrf.mxu0
      %v4470 = vadd.f32 %v4381, %v4469
      %4471 = vmatmul.f32.gmra.mxu0 %v4405
      %v4472 = vpop.f32.mrf.mxu0
      %v4473 = vadd.f32 %v4381, %v4472
      %4474 = vmatmul.f32.gmra.mxu0 %v4408
      %v4475 = vpop.f32.mrf.mxu0
      %v4476 = vadd.f32 %v4381, %v4475
      %4477 = vmatmul.f32.gmra.mxu0 %v4411
      %v4478 = vpop.f32.mrf.mxu0
      %v4479 = vadd.f32 %v4381, %v4478
      %4480 = vmatmul.f32.gmra.mxu0 %v4414
      %v4481 = vpop.f32.mrf.mxu0
      %v4482 = vadd.f32 %v4381, %v4481
      %4483 = vmatmul.f32.gmra.mxu0 %v4417
      %v4484 = vpop.f32.mrf.mxu0
      %v4485 = vadd.f32 %v4381, %v4484
      %4486 = vmatmul.f32.gmra.mxu0 %v4420
      %v4487 = vpop.f32.mrf.mxu0
      %v4488 = vadd.f32 %v4381, %v4487
      %4489 = vmatmul.f32.gmra.mxu0 %v4423
      %v4490 = vpop.f32.mrf.mxu0
      %v4491 = vadd.f32 %v4381, %v4490
      %4492 = vmatmul.f32.gmra.mxu0 %v4426
      %v4493 = vpop.f32.mrf.mxu0
      %v4494 = vadd.f32 %v4381, %v4493
      %4495 = vmatmul.f32.gmra.mxu0 %v4429
      %v4496 = vpop.f32.mrf.mxu0
      %v4497 = vadd.f32 %v4381, %v4496
      %4498 = vdwg.mxu0
      %vm4499 = vcmask 7168
      %4500 = vst.msk [vmem:[%s686] sm:$0xff] %vm4499, %v4452
      %4501 = vst.msk [vmem:[%s686 + $0x8] sm:$0xff] %vm4499, %v4455
      %4502 = vst.msk [vmem:[%s686 + $0x10] sm:$0xff] %vm4499, %v4458
      %4503 = vst.msk [vmem:[%s686 + $0x18] sm:$0xff] %vm4499, %v4461
      %4504 = vst.msk [vmem:[%s686 + $0x20] sm:$0xff] %vm4499, %v4464
      %4505 = vst.msk [vmem:[%s686 + $0x28] sm:$0xff] %vm4499, %v4467
      %4506 = vst.msk [vmem:[%s686 + $0x30] sm:$0xff] %vm4499, %v4470
      %4507 = vst.msk [vmem:[%s686 + $0x38] sm:$0xff] %vm4499, %v4473
      %4508 = vst.msk [vmem:[%s686 + $0x40] sm:$0xff] %vm4499, %v4476
      %4509 = vst.msk [vmem:[%s686 + $0x48] sm:$0xff] %vm4499, %v4479
      %4510 = vst.msk [vmem:[%s686 + $0x50] sm:$0xff] %vm4499, %v4482
      %4511 = vst.msk [vmem:[%s686 + $0x58] sm:$0xff] %vm4499, %v4485
      %4512 = vst.msk [vmem:[%s686 + $0x60] sm:$0xff] %vm4499, %v4488
      %4513 = vst.msk [vmem:[%s686 + $0x68] sm:$0xff] %vm4499, %v4491
      %4514 = vst.msk [vmem:[%s686 + $0x70] sm:$0xff] %vm4499, %v4494
      %4515 = vst.msk [vmem:[%s686 + $0x78] sm:$0xff] %vm4499, %v4497
      %v4516 = vld [vmem:[%s2] sm:$0xff]
      %v4517 = vld [vmem:[%s2 + $0x8] sm:$0xff]
      %4518 = vmatpush.msra.mxu0 %v4497
      %4519 = vmatpush.msra.mxu0 %v4494
      %4520 = vmatpush.msra.mxu0 %v4491
      %4521 = vmatpush.msra.mxu0 %v4488
      %4522 = vmatpush.msra.mxu0 %v4485
      %4523 = vmatpush.msra.mxu0 %v4482
      %4524 = vmatpush.msra.mxu0 %v4479
      %4525 = vmatpush.msra.mxu0 %v4476
      %4526 = vmatpush.msra.mxu0 %v4473
      %4527 = vmatpush.msra.mxu0 %v4470
      %4528 = vmatpush.msra.mxu0 %v4467
      %4529 = vmatpush.msra.mxu0 %v4464
      %4530 = vmatpush.msra.mxu0 %v4461
      %4531 = vmatpush.msra.mxu0 %v4458
      %4532 = vmatpush.msra.mxu0 %v4455
      %4533 = vmatpush.msra.mxu0 %v4452
      %4534 = vmatmul.f32.gmra.mxu0 %v4516
      %v4535 = vpop.f32.mrf.mxu0
      %v4536 = vadd.f32 0.0, %v4535
      %4537 = vmatmul.f32.gmra.mxu0 %v4517
      %v4538 = vpop.f32.mrf.mxu0
      %v4539 = vadd.f32 0.0, %v4538
      %4540 = vdwg.mxu0
      %4541 = vst.msk [vmem:[%s691] sm:$0xff] %vm4499, %v4536
      %4542 = vst.msk [vmem:[%s691 + $0x8] sm:$0xff] %vm4499, %v4539
      %p4543 = scmp.lt.s32.totalorder %s35, 1
      %s4544 = scalar_select %p4543, %s35, 1
      %s4545 = smul.addr %s4544, 16
      %s4546 = smul.addr %s4545, 8
      %s4547 = scalar_lea.vmem %s20, %s4546
      %p4548 = scmp.lt.s32.totalorder %s35, 1
      %s4549 = scalar_select %p4548, %s35, 1
      %s4550 = smul.addr %s4549, 2
      %s4551 = smul.addr %s4550, 8
      %s4552 = scalar_lea.vmem %s21, %s4551
      // Predicated region
      $region101: #{_gsr_forward_impl.1} parent=99 // pred_check
        %p4553 = pneg %p483
      $region102: #{_gsr_forward_impl.1} parent=99 // pred_check_branch
        %4555 = sbr.rel (%p4553) target = $region104
      $region103: #{_gsr_forward_impl.1} parent=99 // pred_region
        _
      $region104: #{_gsr_forward_impl.1} parent=99 // pred_fallthru
        _
      // Predicated region
      $region105: #{_gsr_forward_impl.1} parent=99 // pred_check
        %p4556 = pneg %p509
      $region106: #{_gsr_forward_impl.1} parent=99 // pred_check_branch
        %4558 = sbr.rel (%p4556) target = $region108
      $region107: #{_gsr_forward_impl.1} parent=99 // pred_region
        _
      $region108: #{_gsr_forward_impl.1} parent=99 // pred_fallthru
        _
    $region100: #{_gsr_forward_impl.1} parent=5 // pred_fallthru
      _
    %p4559 = scmp.le.s32.totalorder 2, %s30
    // Predicated region
    $region109: #{_gsr_forward_impl.1} parent=5 // pred_check
      %p4560 = pneg %p4559
    $region110: #{_gsr_forward_impl.1} parent=5 // pred_check_branch
      %4562 = sbr.rel (%p4560) target = $region112
    $region111: #{_gsr_forward_impl.1} parent=5 // pred_region
      %s4563 = ssub.s32 %s30, 2
      // Predicated region
      $region113: #{_gsr_forward_impl.1} parent=111 // pred_check
        %p4564 = pneg %p489
      $region114: #{_gsr_forward_impl.1} parent=111 // pred_check_branch
        %4566 = sbr.rel (%p4564) target = $region116
      $region115: #{_gsr_forward_impl.1} parent=111 // pred_region
        %p4567 = scmp.lt.s32.totalorder %s36, 1
        %s4568 = scalar_select %p4567, %s36, 1
        %s4569 = smul.addr %s4568, 16
        %s4570 = smul.addr %s4569, 8
        %s4571 = scalar_lea.vmem %s20, %s4570
      $region116: #{_gsr_forward_impl.1} parent=111 // pred_fallthru
        _
      // Predicated region
      $region117: #{_gsr_forward_impl.1} parent=111 // pred_check
        %p4572 = pneg %p515
      $region118: #{_gsr_forward_impl.1} parent=111 // pred_check_branch
        %4574 = sbr.rel (%p4572) target = $region120
      $region119: #{_gsr_forward_impl.1} parent=111 // pred_region
        %p4575 = scmp.lt.s32.totalorder %s36, 1
        %s4576 = scalar_select %p4575, %s36, 1
        %s4577 = smul.addr %s4576, 2
        %s4578 = smul.addr %s4577, 8
        %s4579 = scalar_lea.vmem %s21, %s4578
      $region120: #{_gsr_forward_impl.1} parent=111 // pred_fallthru
        _
    $region112: #{_gsr_forward_impl.1} parent=5 // pred_fallthru
      _
  $region6: #{_gsr_forward_impl.1} parent=0 // loop_footer
    %s34 = sadd.s32 1, %s30
  $region7: #{_gsr_forward_impl.1} parent=0 // loop_footer_branch
    %29 = sbr.rel target = $region3
  $region8: #{_gsr_forward_impl.1} parent=0 // loop_exit
    _

</llo_original>
